<compile_context>
chip_gen: v6e
topology: v6e:2x2x1
jax: 0.10.0
libtpu: 0.0.40
codegen_flags: <defaults>
</compile_context>

<pallas_src>
import functools

import jax
import jax.numpy as jnp
from jax.experimental import pallas as pl
from jax.experimental.pallas import tpu as pltpu

D_IN, D_H1, D_H2, D_H3, D_OUT = 2048, 512, 256, 128, 1
NEG_SLOPE = 0.01  # F.leaky_relu default


def _leaky_relu(x):
    return jnp.where(x > 0, x, NEG_SLOPE * x)


def _round_up(x, m):
    return ((x + m - 1) // m) * m


def global_disc_kernel(x_ref,
                       w1_ref, b1_ref,
                       w2_ref, b2_ref,
                       w3_ref, b3_ref,
                       w4_ref, b4_ref,
                       o_ref,
                       *, approx_sigmoid):
    """One (tm, 2048) row tile; all weights resident in VMEM."""
    cdt = w1_ref.dtype  # compute dtype for MXU inputs (f32 or bf16)

    # fc1 / fc2 / fc3 on the MXU, f32 accumulation, f32 epilogue.
    h = jnp.dot(x_ref[...], w1_ref[...], preferred_element_type=jnp.float32)
    h = _leaky_relu(h + b1_ref[...])

    h = jnp.dot(h.astype(cdt), w2_ref[...], preferred_element_type=jnp.float32)
    h = _leaky_relu(h + b2_ref[...])

    h = jnp.dot(h.astype(cdt), w3_ref[...], preferred_element_type=jnp.float32)
    h = _leaky_relu(h + b3_ref[...])                      # (tm, 128) f32

    # fc4: 128 -> 1 projection on VPU (mul) + XLU (lane reduce); the MXU would
    # only use 1 of its output columns for this.
    z = jnp.sum(h * w4_ref[...].astype(jnp.float32), axis=-1, keepdims=True)
    z = z + b4_ref[...]                                   # (tm, 1)

    denom = 1.0 + jnp.exp(-z)
    if approx_sigmoid:
        sig = pl.reciprocal(denom, approx=True)           # EUP slot
    else:
        sig = 1.0 / denom
    o_ref[...] = sig.astype(o_ref.dtype)


@functools.partial(jax.jit, static_argnames=("tm", "compute_dtype"))
def global_discriminator(x, params, *, tm=512, compute_dtype=jnp.bfloat16):
    """x: (..., 2048) float32. Returns (..., 1) float32 sigmoid logits."""
    (w1, b1), (w2, b2), (w3, b3), (w4, b4) = params
    assert x.shape[-1] == D_IN
    lead = x.shape[:-1]

    x2d = x.reshape(-1, D_IN)
    M = x2d.shape[0]

    # Row tile: multiple of 128 (MXU-friendly), clamped to the (padded) data.
    tm_req = _round_up(max(tm, 128), 128)
    tm_eff = min(tm_req, _round_up(M, 128))
    M_pad = _round_up(M, tm_eff)
    if M_pad != M:
        x2d = jnp.pad(x2d, ((0, M_pad - M), (0, 0)))

    cdt = compute_dtype
    x2d = x2d.astype(cdt)
    w1c, w2c, w3c = w1.astype(cdt), w2.astype(cdt), w3.astype(cdt)
    w4_row = w4.reshape(1, D_H3).astype(cdt)   # (1, 128) row for VPU/XLU proj
    b4_2d = b4.reshape(1, 1).astype(jnp.float32)

    row_spec = lambda c: pl.BlockSpec((tm_eff, c), lambda i: (i, 0))
    whole = lambda r, c: pl.BlockSpec((r, c), lambda i: (0, 0))

    kernel = functools.partial(global_disc_kernel,
                               approx_sigmoid=(cdt != jnp.float32))

    out2d = pl.pallas_call(
        kernel,
        out_shape=jax.ShapeDtypeStruct((M_pad, D_OUT), jnp.float32),
        grid=(M_pad // tm_eff,),
        in_specs=[
            row_spec(D_IN),
            whole(D_IN, D_H1), whole(1, D_H1),
            whole(D_H1, D_H2), whole(1, D_H2),
            whole(D_H2, D_H3), whole(1, D_H3),
            whole(1, D_H3), whole(1, 1),
        ],
        out_specs=row_spec(D_OUT),
        compiler_params=pltpu.CompilerParams(
            dimension_semantics=("parallel",),     # megacore / 2-TC sharding
            vmem_limit_bytes=32 * 1024 * 1024),    # safe on v5e/v6e/v7x
    )(x2d, w1c, b1, w2c, b2, w3c, b3, w4_row, b4_2d)

    out2d = out2d[:M]
    return out2d.reshape(lead + (D_OUT,))


def init_params(key):
    """Synthetic PyTorch-Linear-style params.  Weights stored as (in, out)."""
    dims = [(D_IN, D_H1), (D_H1, D_H2), (D_H2, D_H3), (D_H3, D_OUT)]
    params = []
    for (cin, cout) in dims:
        key, kw, kb = jax.random.split(key, 3)
        bound = 1.0 / jnp.sqrt(cin)
        w = jax.random.uniform(kw, (cin, cout), jnp.float32, -bound, bound)
        b = jax.random.uniform(kb, (1, cout), jnp.float32, -bound, bound)
        params.append((w, b))
    return params


def reference(x, params):
    """Pure-JAX reference of the PyTorch forward."""
    (w1, b1), (w2, b2), (w3, b3), (w4, b4) = params
    h = x.reshape(-1, D_IN)
    h = _leaky_relu(h @ w1 + b1)
    h = _leaky_relu(h @ w2 + b2)
    h = _leaky_relu(h @ w3 + b3)
    h = jax.nn.sigmoid(h @ w4 + b4)
    return h.reshape(x.shape[:-1] + (D_OUT,))


if __name__ == "__main__":
    key = jax.random.PRNGKey(0)
    kx, kx2, kp = jax.random.split(key, 3)

    params = init_params(kp)

    # Small example consistent with the module: batch of 8 feature vectors.
    x = jax.random.normal(kx, (8, D_IN), jnp.float32)
    ref = reference(x, params)

    out_f32 = jax.block_until_ready(
        global_discriminator(x, params, compute_dtype=jnp.float32))
    out_bf16 = jax.block_until_ready(
        global_discriminator(x, params, compute_dtype=jnp.bfloat16))

    assert out_f32.shape == (8, D_OUT)
    assert out_bf16.shape == (8, D_OUT)
    assert jnp.allclose(out_f32, ref, atol=1e-2, rtol=1e-2)
    assert jnp.allclose(out_bf16, ref, atol=2.5e-2, rtol=2.5e-2)

    # Larger batch exercising grid > 1 and row padding (300 rows, tm=256).
    xl = jax.random.normal(kx2, (300, D_IN), jnp.float32)
    refl = reference(xl, params)
    outl = jax.block_until_ready(
        global_discriminator(xl, params, tm=256, compute_dtype=jnp.bfloat16))
    assert outl.shape == (300, D_OUT)
    assert jnp.allclose(outl, refl, atol=2.5e-2, rtol=2.5e-2)

    print("KERNEL_OK")
</pallas_src>

<mosaic_0001>
module attributes {stable_mosaic.version = 11 : i64} {
  func.func @global_disc_kernel(%arg0: i32, %arg1: memref<128x2048xf32, #tpu.memory_space<vmem>>, %arg2: memref<2048x512xf32, #tpu.memory_space<vmem>>, %arg3: memref<1x512xf32, #tpu.memory_space<vmem>>, %arg4: memref<512x256xf32, #tpu.memory_space<vmem>>, %arg5: memref<1x256xf32, #tpu.memory_space<vmem>>, %arg6: memref<256x128xf32, #tpu.memory_space<vmem>>, %arg7: memref<1x128xf32, #tpu.memory_space<vmem>>, %arg8: memref<1x128xf32, #tpu.memory_space<vmem>>, %arg9: memref<1x1xf32, #tpu.memory_space<vmem>>, %arg10: memref<128x1xf32, #tpu.memory_space<vmem>>) attributes {dimension_semantics = [#tpu.dimension_semantics<parallel>], iteration_bounds = array<i64: 1>, scalar_prefetch = 0 : i64, scratch_operands = 0 : i64, tpu.core_type = #tpu.core_type<tc>, window_params = [{transform_indices = @transform_0, window_bounds = array<i64: 128, 2048>}, {pipeline_mode = #tpu.pipeline_mode<synchronous>, transform_indices = @transform_1, window_bounds = array<i64: 2048, 512>}, {pipeline_mode = #tpu.pipeline_mode<synchronous>, transform_indices = @transform_2, window_bounds = array<i64: 1, 512>}, {pipeline_mode = #tpu.pipeline_mode<synchronous>, transform_indices = @transform_3, window_bounds = array<i64: 512, 256>}, {pipeline_mode = #tpu.pipeline_mode<synchronous>, transform_indices = @transform_4, window_bounds = array<i64: 1, 256>}, {pipeline_mode = #tpu.pipeline_mode<synchronous>, transform_indices = @transform_5, window_bounds = array<i64: 256, 128>}, {pipeline_mode = #tpu.pipeline_mode<synchronous>, transform_indices = @transform_6, window_bounds = array<i64: 1, 128>}, {pipeline_mode = #tpu.pipeline_mode<synchronous>, transform_indices = @transform_7, window_bounds = array<i64: 1, 128>}, {pipeline_mode = #tpu.pipeline_mode<synchronous>, transform_indices = @transform_8, window_bounds = array<i64: 1, 1>}, {transform_indices = @transform_9, window_bounds = array<i64: 128, 1>}]} {
    %c0 = arith.constant 0 : index
    %c0_0 = arith.constant 0 : index
    %0 = vector.load %arg1[%c0, %c0_0] : memref<128x2048xf32, #tpu.memory_space<vmem>>, vector<128x2048xf32>
    %c0_1 = arith.constant 0 : index
    %c0_2 = arith.constant 0 : index
    %1 = vector.load %arg2[%c0_1, %c0_2] : memref<2048x512xf32, #tpu.memory_space<vmem>>, vector<2048x512xf32>
    %cst = arith.constant dense<0.000000e+00> : vector<128x512xf32>
    %2 = tpu.matmul %0, %1, %cst {dimension_numbers = #tpu.dot_dimension_numbers<[1], [0], [0], [1], [0, 0, 1, 1], [], []>} : vector<128x2048xf32>, vector<2048x512xf32>, vector<128x512xf32> -> vector<128x512xf32>
    %c0_3 = arith.constant 0 : index
    %c0_4 = arith.constant 0 : index
    %3 = vector.load %arg3[%c0_3, %c0_4] : memref<1x512xf32, #tpu.memory_space<vmem>>, vector<1x512xf32>
    %4 = vector.broadcast %3 : vector<1x512xf32> to vector<128x512xf32>
    %5 = arith.addf %2, %4 : vector<128x512xf32>
    %cst_5 = arith.constant 0.000000e+00 : f32
    %6 = vector.broadcast %cst_5 : f32 to vector<128x512xf32>
    %7 = arith.cmpf ogt, %5, %6 : vector<128x512xf32>
    %cst_6 = arith.constant 0.00999999977 : f32
    %8 = vector.broadcast %cst_6 : f32 to vector<128x512xf32>
    %9 = arith.mulf %8, %5 : vector<128x512xf32>
    %10 = arith.select %7, %5, %9 : vector<128x512xi1>, vector<128x512xf32>
    %c0_7 = arith.constant 0 : index
    %c0_8 = arith.constant 0 : index
    %11 = vector.load %arg4[%c0_7, %c0_8] : memref<512x256xf32, #tpu.memory_space<vmem>>, vector<512x256xf32>
    %cst_9 = arith.constant dense<0.000000e+00> : vector<128x256xf32>
    %12 = tpu.matmul %10, %11, %cst_9 {dimension_numbers = #tpu.dot_dimension_numbers<[1], [0], [0], [1], [0, 0, 1, 1], [], []>} : vector<128x512xf32>, vector<512x256xf32>, vector<128x256xf32> -> vector<128x256xf32>
    %c0_10 = arith.constant 0 : index
    %c0_11 = arith.constant 0 : index
    %13 = vector.load %arg5[%c0_10, %c0_11] : memref<1x256xf32, #tpu.memory_space<vmem>>, vector<1x256xf32>
    %14 = vector.broadcast %13 : vector<1x256xf32> to vector<128x256xf32>
    %15 = arith.addf %12, %14 : vector<128x256xf32>
    %cst_12 = arith.constant 0.000000e+00 : f32
    %16 = vector.broadcast %cst_12 : f32 to vector<128x256xf32>
    %17 = arith.cmpf ogt, %15, %16 : vector<128x256xf32>
    %cst_13 = arith.constant 0.00999999977 : f32
    %18 = vector.broadcast %cst_13 : f32 to vector<128x256xf32>
    %19 = arith.mulf %18, %15 : vector<128x256xf32>
    %20 = arith.select %17, %15, %19 : vector<128x256xi1>, vector<128x256xf32>
    %c0_14 = arith.constant 0 : index
    %c0_15 = arith.constant 0 : index
    %21 = vector.load %arg6[%c0_14, %c0_15] : memref<256x128xf32, #tpu.memory_space<vmem>>, vector<256x128xf32>
    %cst_16 = arith.constant dense<0.000000e+00> : vector<128x128xf32>
    %22 = tpu.matmul %20, %21, %cst_16 {dimension_numbers = #tpu.dot_dimension_numbers<[1], [0], [0], [1], [0, 0, 1, 1], [], []>} : vector<128x256xf32>, vector<256x128xf32>, vector<128x128xf32> -> vector<128x128xf32>
    %c0_17 = arith.constant 0 : index
    %c0_18 = arith.constant 0 : index
    %23 = vector.load %arg7[%c0_17, %c0_18] : memref<1x128xf32, #tpu.memory_space<vmem>>, vector<1x128xf32>
    %24 = vector.broadcast %23 : vector<1x128xf32> to vector<128x128xf32>
    %25 = arith.addf %22, %24 : vector<128x128xf32>
    %cst_19 = arith.constant 0.000000e+00 : f32
    %26 = vector.broadcast %cst_19 : f32 to vector<128x128xf32>
    %27 = arith.cmpf ogt, %25, %26 : vector<128x128xf32>
    %cst_20 = arith.constant 0.00999999977 : f32
    %28 = vector.broadcast %cst_20 : f32 to vector<128x128xf32>
    %29 = arith.mulf %28, %25 : vector<128x128xf32>
    %30 = arith.select %27, %25, %29 : vector<128x128xi1>, vector<128x128xf32>
    %c0_21 = arith.constant 0 : index
    %c0_22 = arith.constant 0 : index
    %31 = vector.load %arg8[%c0_21, %c0_22] : memref<1x128xf32, #tpu.memory_space<vmem>>, vector<1x128xf32>
    %32 = vector.broadcast %31 : vector<1x128xf32> to vector<128x128xf32>
    %33 = arith.mulf %30, %32 : vector<128x128xf32>
    %cst_23 = arith.constant dense<0.000000e+00> : vector<128xf32>
    %34 = vector.multi_reduction <add>, %33, %cst_23 [1] : vector<128x128xf32> to vector<128xf32>
    %35 = vector.shape_cast %34 : vector<128xf32> to vector<128x1xf32>
    %c0_24 = arith.constant 0 : index
    %c0_25 = arith.constant 0 : index
    %36 = vector.load %arg9[%c0_24, %c0_25] : memref<1x1xf32, #tpu.memory_space<vmem>>, vector<1x1xf32>
    %37 = vector.broadcast %36 : vector<1x1xf32> to vector<128x1xf32>
    %38 = arith.addf %35, %37 : vector<128x1xf32>
    %cst_26 = arith.constant 0.000000e+00 : f32
    %39 = vector.broadcast %cst_26 : f32 to vector<128x1xf32>
    %40 = arith.subf %39, %38 : vector<128x1xf32>
    %41 = math.exp %40 : vector<128x1xf32>
    %cst_27 = arith.constant 1.000000e+00 : f32
    %42 = vector.broadcast %cst_27 : f32 to vector<128x1xf32>
    %43 = arith.addf %42, %41 : vector<128x1xf32>
    %cst_28 = arith.constant 1.000000e+00 : f32
    %44 = vector.broadcast %cst_28 : f32 to vector<128x1xf32>
    %45 = arith.divf %44, %43 : vector<128x1xf32>
    %c0_29 = arith.constant 0 : index
    %c0_30 = arith.constant 0 : index
    %46 = vector.load %arg10[%c0_29, %c0_30] : memref<128x1xf32, #tpu.memory_space<vmem>>, vector<128x1xf32>
    tpu.vector_store %arg10[%c0_29, %c0_30], %45 {strides = array<i32>} : memref<128x1xf32, #tpu.memory_space<vmem>>, vector<128x1xf32>,
    return
  }
  func.func @transform_0(%arg0: i32) -> (i32, i32) {
    %c0_i32 = arith.constant 0 : i32
    %c0_i32_0 = arith.constant 0 : i32
    return %arg0, %c0_i32 : i32, i32
  }
  func.func @transform_1(%arg0: i32) -> (i32, i32) {
    %c0_i32 = arith.constant 0 : i32
    %c0_i32_0 = arith.constant 0 : i32
    %c0_i32_1 = arith.constant 0 : i32
    return %c0_i32, %c0_i32_0 : i32, i32
  }
  func.func @transform_2(%arg0: i32) -> (i32, i32) {
    %c0_i32 = arith.constant 0 : i32
    %c0_i32_0 = arith.constant 0 : i32
    %c0_i32_1 = arith.constant 0 : i32
    return %c0_i32, %c0_i32_0 : i32, i32
  }
  func.func @transform_3(%arg0: i32) -> (i32, i32) {
    %c0_i32 = arith.constant 0 : i32
    %c0_i32_0 = arith.constant 0 : i32
    %c0_i32_1 = arith.constant 0 : i32
    return %c0_i32, %c0_i32_0 : i32, i32
  }
  func.func @transform_4(%arg0: i32) -> (i32, i32) {
    %c0_i32 = arith.constant 0 : i32
    %c0_i32_0 = arith.constant 0 : i32
    %c0_i32_1 = arith.constant 0 : i32
    return %c0_i32, %c0_i32_0 : i32, i32
  }
  func.func @transform_5(%arg0: i32) -> (i32, i32) {
    %c0_i32 = arith.constant 0 : i32
    %c0_i32_0 = arith.constant 0 : i32
    %c0_i32_1 = arith.constant 0 : i32
    return %c0_i32, %c0_i32_0 : i32, i32
  }
  func.func @transform_6(%arg0: i32) -> (i32, i32) {
    %c0_i32 = arith.constant 0 : i32
    %c0_i32_0 = arith.constant 0 : i32
    %c0_i32_1 = arith.constant 0 : i32
    return %c0_i32, %c0_i32_0 : i32, i32
  }
  func.func @transform_7(%arg0: i32) -> (i32, i32) {
    %c0_i32 = arith.constant 0 : i32
    %c0_i32_0 = arith.constant 0 : i32
    %c0_i32_1 = arith.constant 0 : i32
    return %c0_i32, %c0_i32_0 : i32, i32
  }
  func.func @transform_8(%arg0: i32) -> (i32, i32) {
    %c0_i32 = arith.constant 0 : i32
    %c0_i32_0 = arith.constant 0 : i32
    %c0_i32_1 = arith.constant 0 : i32
    return %c0_i32, %c0_i32_0 : i32, i32
  }
  func.func @transform_9(%arg0: i32) -> (i32, i32) {
    %c0_i32 = arith.constant 0 : i32
    %c0_i32_0 = arith.constant 0 : i32
    return %arg0, %c0_i32 : i32, i32
  }
}

</mosaic_0001>

<llo_original>
// kernel: global_discriminator.1
$region0: #{global_discriminator.1}
  #allocation0 [shape = 'u32[]', space=smem, size = 0x4, offset = 0x4, fixed_abs, tag = 'smem constant byte address 0x4 - core index']
  #allocation1 [shape = 'u32[144,128]{1,0:T(1,128)}', space=vmem, size = 0x12000, scoped, tag = 'internal scratch']
  #allocation2 [shape = 'f32[1,1]{1,0:T(1,128)S(1)}', space=vmem, size = 0x200, scoped, tag = 'scoped memory for global_discriminator.1']
  %s0 = inlined_call_operand.vmem [shape: f32[128,2048], index: 0, kind: input, shape index: {}]
  %s1 = inlined_call_operand.hbm [shape: f32[2048,512], index: 1, kind: input, shape index: {}]
  %s2 = inlined_call_operand.hbm [shape: f32[1,512], index: 2, kind: input, shape index: {}]
  %s3 = inlined_call_operand.hbm [shape: f32[512,256], index: 3, kind: input, shape index: {}]
  %s4 = inlined_call_operand.hbm [shape: f32[1,256], index: 4, kind: input, shape index: {}]
  %s5 = inlined_call_operand.hbm [shape: f32[256,128], index: 5, kind: input, shape index: {}]
  %s6 = inlined_call_operand.hbm [shape: f32[1,128], index: 6, kind: input, shape index: {}]
  %s7 = inlined_call_operand.hbm [shape: f32[1,128], index: 7, kind: input, shape index: {}]
  %s8 = inlined_call_operand.<no memory space> [shape: f32[1,1], index: 8, kind: input, shape index: {}]
  %s9 = inlined_call_operand.vmem [shape: f32[128,1], index: 9, kind: output, shape index: {}]
  %s10 = sld [smem:[#allocation0]]
  $region74: #{global_discriminator.1} parent=0
    _
  %s12 = ssub.s32 1, %s10
  %s13 = scalar_select 0, %s12, %s10
  %v14 = vstv %s8
  %15 = vst [vmem:[#allocation2] sm:$0x1] %v14
  $region1: #{global_discriminator.1} parent=0
    #allocation3 [shape = 'u8[4194304]{0}', space=vmem, size = 0x400000, scoped, tag = 'input window, operand 1, single buffered']
    #allocation4 [shape = 's32[1]{0}', space=sflag, size = 0x4, scoped, tag = 'scoped memory for global_discriminator.1']
    #allocation5 [shape = 'u8[2048]{0}', space=vmem, size = 0x800, scoped, tag = 'input window, operand 2, single buffered']
    #allocation6 [shape = 's32[1]{0}', space=sflag, size = 0x4, scoped, tag = 'scoped memory for global_discriminator.1']
    #allocation7 [shape = 'u8[524288]{0}', space=vmem, size = 0x80000, scoped, tag = 'input window, operand 3, single buffered']
    #allocation8 [shape = 'u8[1024]{0}', space=vmem, size = 0x400, scoped, tag = 'input window, operand 4, single buffered']
    #allocation9 [shape = 's32[1]{0}', space=sflag, size = 0x4, scoped, tag = 'scoped memory for global_discriminator.1']
    #allocation10 [shape = 'u8[131072]{0}', space=vmem, size = 0x20000, scoped, tag = 'input window, operand 5, single buffered']
    #allocation11 [shape = 'u8[512]{0}', space=vmem, size = 0x400, scoped, tag = 'input window, operand 6, single buffered']
    #allocation12 [shape = 's32[1]{0}', space=sflag, size = 0x4, scoped, tag = 'scoped memory for global_discriminator.1']
    #allocation13 [shape = 'u8[512]{0}', space=vmem, size = 0x400, scoped, tag = 'input window, operand 7, single buffered']
    %16 = vsyncpa [#allocation4], 0
    %17 = vsyncpa [#allocation6], 0
    %18 = vsyncpa [#allocation9], 0
    %19 = vsyncpa [#allocation12], 0
    // Predicated region
    $region2: #{global_discriminator.1} parent=1 // pred_check
      _
    $region3: #{global_discriminator.1} parent=1 // pred_check_branch
      %21 = sbr.rel (0) target = $region5
    $region4: #{global_discriminator.1} parent=1 // pred_region
      _
    $region5: #{global_discriminator.1} parent=1 // pred_fallthru
      _
    // Predicated region
    $region6: #{global_discriminator.1} parent=1 // pred_check
      _
    $region7: #{global_discriminator.1} parent=1 // pred_check_branch
      %23 = sbr.rel (0) target = $region9
    $region8: #{global_discriminator.1} parent=1 // pred_region
      %s25 = ssub.s32 131072, 131072
      %26 = vsyncadd [#allocation4], %s25
      %s27 = sshll.u32 [#allocation3], 4
      %s28 = int_to_ptr.vmem [resolvable:$true] %s27
      %33 = dma.hbm_to_vmem [thread:$0]  %s1, 131072, %s28, [#allocation4], 512, 512, 32
    $region9: #{global_discriminator.1} parent=1 // pred_fallthru
      _
    // Predicated region
    $region10: #{global_discriminator.1} parent=1 // pred_check
      _
    $region11: #{global_discriminator.1} parent=1 // pred_check_branch
      %35 = sbr.rel (0) target = $region13
    $region12: #{global_discriminator.1} parent=1 // pred_region
      %s37 = ssub.s32 64, 64
      %38 = vsyncadd [#allocation6], %s37
      %s40 = sshll.u32 [#allocation5], 4
      %s41 = int_to_ptr.vmem [resolvable:$true] %s40
      %43 = dma.hbm_to_vmem [thread:$0]  %s2, 64, %s41, [#allocation6]
    $region13: #{global_discriminator.1} parent=1 // pred_fallthru
      _
    // Predicated region
    $region14: #{global_discriminator.1} parent=1 // pred_check
      _
    $region15: #{global_discriminator.1} parent=1 // pred_check_branch
      %45 = sbr.rel (0) target = $region17
    $region16: #{global_discriminator.1} parent=1 // pred_region
      %s47 = ssub.s32 16384, 16384
      %48 = vsyncadd [#allocation6], %s47
      %s49 = sshll.u32 [#allocation7], 4
      %s50 = int_to_ptr.vmem [resolvable:$true] %s49
      %55 = dma.hbm_to_vmem [thread:$0]  %s3, 16384, %s50, [#allocation6], 256, 256, 16
    $region17: #{global_discriminator.1} parent=1 // pred_fallthru
      _
    // Predicated region
    $region18: #{global_discriminator.1} parent=1 // pred_check
      _
    $region19: #{global_discriminator.1} parent=1 // pred_check_branch
      %57 = sbr.rel (0) target = $region21
    $region20: #{global_discriminator.1} parent=1 // pred_region
      %s59 = ssub.s32 32, 32
      %60 = vsyncadd [#allocation9], %s59
      %s62 = sshll.u32 [#allocation8], 4
      %s63 = int_to_ptr.vmem [resolvable:$true] %s62
      %65 = dma.hbm_to_vmem [thread:$0]  %s4, 32, %s63, [#allocation9]
    $region21: #{global_discriminator.1} parent=1 // pred_fallthru
      _
    // Predicated region
    $region22: #{global_discriminator.1} parent=1 // pred_check
      _
    $region23: #{global_discriminator.1} parent=1 // pred_check_branch
      %67 = sbr.rel (0) target = $region25
    $region24: #{global_discriminator.1} parent=1 // pred_region
      %s69 = ssub.s32 4096, 4096
      %70 = vsyncadd [#allocation9], %s69
      %s71 = sshll.u32 [#allocation10], 4
      %s72 = int_to_ptr.vmem [resolvable:$true] %s71
      %77 = dma.hbm_to_vmem [thread:$0]  %s5, 4096, %s72, [#allocation9], 128, 128, 8
    $region25: #{global_discriminator.1} parent=1 // pred_fallthru
      _
    // Predicated region
    $region26: #{global_discriminator.1} parent=1 // pred_check
      _
    $region27: #{global_discriminator.1} parent=1 // pred_check_branch
      %79 = sbr.rel (0) target = $region29
    $region28: #{global_discriminator.1} parent=1 // pred_region
      %s81 = ssub.s32 16, 16
      %82 = vsyncadd [#allocation12], %s81
      %s84 = sshll.u32 [#allocation11], 4
      %s85 = int_to_ptr.vmem [resolvable:$true] %s84
      %87 = dma.hbm_to_vmem [thread:$0]  %s6, 16, %s85, [#allocation12]
    $region29: #{global_discriminator.1} parent=1 // pred_fallthru
      _
    // Predicated region
    $region30: #{global_discriminator.1} parent=1 // pred_check
      _
    $region31: #{global_discriminator.1} parent=1 // pred_check_branch
      %89 = sbr.rel (0) target = $region33
    $region32: #{global_discriminator.1} parent=1 // pred_region
      %s91 = ssub.s32 16, 16
      %92 = vsyncadd [#allocation12], %s91
      %s94 = sshll.u32 [#allocation13], 4
      %s95 = int_to_ptr.vmem [resolvable:$true] %s94
      %97 = dma.hbm_to_vmem [thread:$0]  %s7, 16, %s95, [#allocation12]
    $region33: #{global_discriminator.1} parent=1 // pred_fallthru
      _
    // Predicated region
    $region34: #{global_discriminator.1} parent=1 // pred_check
      _
    $region35: #{global_discriminator.1} parent=1 // pred_check_branch
      %99 = sbr.rel (0) target = $region37
    $region36: #{global_discriminator.1} parent=1 // pred_region
      _
    $region37: #{global_discriminator.1} parent=1 // pred_fallthru
      _
    // Predicated region
    $region38: #{global_discriminator.1} parent=1 // pred_check
      _
    $region39: #{global_discriminator.1} parent=1 // pred_check_branch
      %101 = sbr.rel (0) target = $region41
    $region40: #{global_discriminator.1} parent=1 // pred_region
      %102 = dma.done [#allocation4], 131072
    $region41: #{global_discriminator.1} parent=1 // pred_fallthru
      _
    // Predicated region
    $region42: #{global_discriminator.1} parent=1 // pred_check
      _
    $region43: #{global_discriminator.1} parent=1 // pred_check_branch
      %104 = sbr.rel (0) target = $region45
    $region44: #{global_discriminator.1} parent=1 // pred_region
      %105 = dma.done [#allocation6], 64
    $region45: #{global_discriminator.1} parent=1 // pred_fallthru
      _
    // Predicated region
    $region46: #{global_discriminator.1} parent=1 // pred_check
      _
    $region47: #{global_discriminator.1} parent=1 // pred_check_branch
      %107 = sbr.rel (0) target = $region49
    $region48: #{global_discriminator.1} parent=1 // pred_region
      %108 = dma.done [#allocation6], 16384
    $region49: #{global_discriminator.1} parent=1 // pred_fallthru
      _
    // Predicated region
    $region50: #{global_discriminator.1} parent=1 // pred_check
      _
    $region51: #{global_discriminator.1} parent=1 // pred_check_branch
      %110 = sbr.rel (0) target = $region53
    $region52: #{global_discriminator.1} parent=1 // pred_region
      %111 = dma.done [#allocation9], 32
    $region53: #{global_discriminator.1} parent=1 // pred_fallthru
      _
    // Predicated region
    $region54: #{global_discriminator.1} parent=1 // pred_check
      _
    $region55: #{global_discriminator.1} parent=1 // pred_check_branch
      %113 = sbr.rel (0) target = $region57
    $region56: #{global_discriminator.1} parent=1 // pred_region
      %114 = dma.done [#allocation9], 4096
    $region57: #{global_discriminator.1} parent=1 // pred_fallthru
      _
    // Predicated region
    $region58: #{global_discriminator.1} parent=1 // pred_check
      _
    $region59: #{global_discriminator.1} parent=1 // pred_check_branch
      %116 = sbr.rel (0) target = $region61
    $region60: #{global_discriminator.1} parent=1 // pred_region
      %117 = dma.done [#allocation12], 16
    $region61: #{global_discriminator.1} parent=1 // pred_fallthru
      _
    // Predicated region
    $region62: #{global_discriminator.1} parent=1 // pred_check
      _
    $region63: #{global_discriminator.1} parent=1 // pred_check_branch
      %119 = sbr.rel (0) target = $region65
    $region64: #{global_discriminator.1} parent=1 // pred_region
      %120 = dma.done [#allocation12], 16
    $region65: #{global_discriminator.1} parent=1 // pred_fallthru
      _
    %v121 = vld [vmem:[%s0] sm:$0xff]
    %v122 = vld [vmem:[%s0 + $0x8] sm:$0xff]
    %v123 = vld [vmem:[%s0 + $0x10] sm:$0xff]
    %v124 = vld [vmem:[%s0 + $0x18] sm:$0xff]
    %v125 = vld [vmem:[%s0 + $0x20] sm:$0xff]
    %v126 = vld [vmem:[%s0 + $0x28] sm:$0xff]
    %v127 = vld [vmem:[%s0 + $0x30] sm:$0xff]
    %v128 = vld [vmem:[%s0 + $0x38] sm:$0xff]
    %v129 = vld [vmem:[%s0 + $0x40] sm:$0xff]
    %v130 = vld [vmem:[%s0 + $0x48] sm:$0xff]
    %v131 = vld [vmem:[%s0 + $0x50] sm:$0xff]
    %v132 = vld [vmem:[%s0 + $0x58] sm:$0xff]
    %v133 = vld [vmem:[%s0 + $0x60] sm:$0xff]
    %v134 = vld [vmem:[%s0 + $0x68] sm:$0xff]
    %v135 = vld [vmem:[%s0 + $0x70] sm:$0xff]
    %v136 = vld [vmem:[%s0 + $0x78] sm:$0xff]
    %v137 = vld [vmem:[%s0 + $0x80] sm:$0xff]
    %v138 = vld [vmem:[%s0 + $0x88] sm:$0xff]
    %v139 = vld [vmem:[%s0 + $0x90] sm:$0xff]
    %v140 = vld [vmem:[%s0 + $0x98] sm:$0xff]
    %v141 = vld [vmem:[%s0 + $0xa0] sm:$0xff]
    %v142 = vld [vmem:[%s0 + $0xa8] sm:$0xff]
    %v143 = vld [vmem:[%s0 + $0xb0] sm:$0xff]
    %v144 = vld [vmem:[%s0 + $0xb8] sm:$0xff]
    %v145 = vld [vmem:[%s0 + $0xc0] sm:$0xff]
    %v146 = vld [vmem:[%s0 + $0xc8] sm:$0xff]
    %v147 = vld [vmem:[%s0 + $0xd0] sm:$0xff]
    %v148 = vld [vmem:[%s0 + $0xd8] sm:$0xff]
    %v149 = vld [vmem:[%s0 + $0xe0] sm:$0xff]
    %v150 = vld [vmem:[%s0 + $0xe8] sm:$0xff]
    %v151 = vld [vmem:[%s0 + $0xf0] sm:$0xff]
    %v152 = vld [vmem:[%s0 + $0xf8] sm:$0xff]
    %v153 = vld [vmem:[%s0 + $0x100] sm:$0xff]
    %v154 = vld [vmem:[%s0 + $0x108] sm:$0xff]
    %v155 = vld [vmem:[%s0 + $0x110] sm:$0xff]
    %v156 = vld [vmem:[%s0 + $0x118] sm:$0xff]
    %v157 = vld [vmem:[%s0 + $0x120] sm:$0xff]
    %v158 = vld [vmem:[%s0 + $0x128] sm:$0xff]
    %v159 = vld [vmem:[%s0 + $0x130] sm:$0xff]
    %v160 = vld [vmem:[%s0 + $0x138] sm:$0xff]
    %v161 = vld [vmem:[%s0 + $0x140] sm:$0xff]
    %v162 = vld [vmem:[%s0 + $0x148] sm:$0xff]
    %v163 = vld [vmem:[%s0 + $0x150] sm:$0xff]
    %v164 = vld [vmem:[%s0 + $0x158] sm:$0xff]
    %v165 = vld [vmem:[%s0 + $0x160] sm:$0xff]
    %v166 = vld [vmem:[%s0 + $0x168] sm:$0xff]
    %v167 = vld [vmem:[%s0 + $0x170] sm:$0xff]
    %v168 = vld [vmem:[%s0 + $0x178] sm:$0xff]
    %v169 = vld [vmem:[%s0 + $0x180] sm:$0xff]
    %v170 = vld [vmem:[%s0 + $0x188] sm:$0xff]
    %v171 = vld [vmem:[%s0 + $0x190] sm:$0xff]
    %v172 = vld [vmem:[%s0 + $0x198] sm:$0xff]
    %v173 = vld [vmem:[%s0 + $0x1a0] sm:$0xff]
    %v174 = vld [vmem:[%s0 + $0x1a8] sm:$0xff]
    %v175 = vld [vmem:[%s0 + $0x1b0] sm:$0xff]
    %v176 = vld [vmem:[%s0 + $0x1b8] sm:$0xff]
    %v177 = vld [vmem:[%s0 + $0x1c0] sm:$0xff]
    %v178 = vld [vmem:[%s0 + $0x1c8] sm:$0xff]
    %v179 = vld [vmem:[%s0 + $0x1d0] sm:$0xff]
    %v180 = vld [vmem:[%s0 + $0x1d8] sm:$0xff]
    %v181 = vld [vmem:[%s0 + $0x1e0] sm:$0xff]
    %v182 = vld [vmem:[%s0 + $0x1e8] sm:$0xff]
    %v183 = vld [vmem:[%s0 + $0x1f0] sm:$0xff]
    %v184 = vld [vmem:[%s0 + $0x1f8] sm:$0xff]
    %v185 = vld [vmem:[%s0 + $0x200] sm:$0xff]
    %v186 = vld [vmem:[%s0 + $0x208] sm:$0xff]
    %v187 = vld [vmem:[%s0 + $0x210] sm:$0xff]
    %v188 = vld [vmem:[%s0 + $0x218] sm:$0xff]
    %v189 = vld [vmem:[%s0 + $0x220] sm:$0xff]
    %v190 = vld [vmem:[%s0 + $0x228] sm:$0xff]
    %v191 = vld [vmem:[%s0 + $0x230] sm:$0xff]
    %v192 = vld [vmem:[%s0 + $0x238] sm:$0xff]
    %v193 = vld [vmem:[%s0 + $0x240] sm:$0xff]
    %v194 = vld [vmem:[%s0 + $0x248] sm:$0xff]
    %v195 = vld [vmem:[%s0 + $0x250] sm:$0xff]
    %v196 = vld [vmem:[%s0 + $0x258] sm:$0xff]
    %v197 = vld [vmem:[%s0 + $0x260] sm:$0xff]
    %v198 = vld [vmem:[%s0 + $0x268] sm:$0xff]
    %v199 = vld [vmem:[%s0 + $0x270] sm:$0xff]
    %v200 = vld [vmem:[%s0 + $0x278] sm:$0xff]
    %v201 = vld [vmem:[%s0 + $0x280] sm:$0xff]
    %v202 = vld [vmem:[%s0 + $0x288] sm:$0xff]
    %v203 = vld [vmem:[%s0 + $0x290] sm:$0xff]
    %v204 = vld [vmem:[%s0 + $0x298] sm:$0xff]
    %v205 = vld [vmem:[%s0 + $0x2a0] sm:$0xff]
    %v206 = vld [vmem:[%s0 + $0x2a8] sm:$0xff]
    %v207 = vld [vmem:[%s0 + $0x2b0] sm:$0xff]
    %v208 = vld [vmem:[%s0 + $0x2b8] sm:$0xff]
    %v209 = vld [vmem:[%s0 + $0x2c0] sm:$0xff]
    %v210 = vld [vmem:[%s0 + $0x2c8] sm:$0xff]
    %v211 = vld [vmem:[%s0 + $0x2d0] sm:$0xff]
    %v212 = vld [vmem:[%s0 + $0x2d8] sm:$0xff]
    %v213 = vld [vmem:[%s0 + $0x2e0] sm:$0xff]
    %v214 = vld [vmem:[%s0 + $0x2e8] sm:$0xff]
    %v215 = vld [vmem:[%s0 + $0x2f0] sm:$0xff]
    %v216 = vld [vmem:[%s0 + $0x2f8] sm:$0xff]
    %v217 = vld [vmem:[%s0 + $0x300] sm:$0xff]
    %v218 = vld [vmem:[%s0 + $0x308] sm:$0xff]
    %v219 = vld [vmem:[%s0 + $0x310] sm:$0xff]
    %v220 = vld [vmem:[%s0 + $0x318] sm:$0xff]
    %v221 = vld [vmem:[%s0 + $0x320] sm:$0xff]
    %v222 = vld [vmem:[%s0 + $0x328] sm:$0xff]
    %v223 = vld [vmem:[%s0 + $0x330] sm:$0xff]
    %v224 = vld [vmem:[%s0 + $0x338] sm:$0xff]
    %v225 = vld [vmem:[%s0 + $0x340] sm:$0xff]
    %v226 = vld [vmem:[%s0 + $0x348] sm:$0xff]
    %v227 = vld [vmem:[%s0 + $0x350] sm:$0xff]
    %v228 = vld [vmem:[%s0 + $0x358] sm:$0xff]
    %v229 = vld [vmem:[%s0 + $0x360] sm:$0xff]
    %v230 = vld [vmem:[%s0 + $0x368] sm:$0xff]
    %v231 = vld [vmem:[%s0 + $0x370] sm:$0xff]
    %v232 = vld [vmem:[%s0 + $0x378] sm:$0xff]
    %v233 = vld [vmem:[%s0 + $0x380] sm:$0xff]
    %v234 = vld [vmem:[%s0 + $0x388] sm:$0xff]
    %v235 = vld [vmem:[%s0 + $0x390] sm:$0xff]
    %v236 = vld [vmem:[%s0 + $0x398] sm:$0xff]
    %v237 = vld [vmem:[%s0 + $0x3a0] sm:$0xff]
    %v238 = vld [vmem:[%s0 + $0x3a8] sm:$0xff]
    %v239 = vld [vmem:[%s0 + $0x3b0] sm:$0xff]
    %v240 = vld [vmem:[%s0 + $0x3b8] sm:$0xff]
    %v241 = vld [vmem:[%s0 + $0x3c0] sm:$0xff]
    %v242 = vld [vmem:[%s0 + $0x3c8] sm:$0xff]
    %v243 = vld [vmem:[%s0 + $0x3d0] sm:$0xff]
    %v244 = vld [vmem:[%s0 + $0x3d8] sm:$0xff]
    %v245 = vld [vmem:[%s0 + $0x3e0] sm:$0xff]
    %v246 = vld [vmem:[%s0 + $0x3e8] sm:$0xff]
    %v247 = vld [vmem:[%s0 + $0x3f0] sm:$0xff]
    %v248 = vld [vmem:[%s0 + $0x3f8] sm:$0xff]
    %v249 = vld [vmem:[%s0 + $0x400] sm:$0xff]
    %v250 = vld [vmem:[%s0 + $0x408] sm:$0xff]
    %v251 = vld [vmem:[%s0 + $0x410] sm:$0xff]
    %v252 = vld [vmem:[%s0 + $0x418] sm:$0xff]
    %v253 = vld [vmem:[%s0 + $0x420] sm:$0xff]
    %v254 = vld [vmem:[%s0 + $0x428] sm:$0xff]
    %v255 = vld [vmem:[%s0 + $0x430] sm:$0xff]
    %v256 = vld [vmem:[%s0 + $0x438] sm:$0xff]
    %v257 = vld [vmem:[%s0 + $0x440] sm:$0xff]
    %v258 = vld [vmem:[%s0 + $0x448] sm:$0xff]
    %v259 = vld [vmem:[%s0 + $0x450] sm:$0xff]
    %v260 = vld [vmem:[%s0 + $0x458] sm:$0xff]
    %v261 = vld [vmem:[%s0 + $0x460] sm:$0xff]
    %v262 = vld [vmem:[%s0 + $0x468] sm:$0xff]
    %v263 = vld [vmem:[%s0 + $0x470] sm:$0xff]
    %v264 = vld [vmem:[%s0 + $0x478] sm:$0xff]
    %v265 = vld [vmem:[%s0 + $0x480] sm:$0xff]
    %v266 = vld [vmem:[%s0 + $0x488] sm:$0xff]
    %v267 = vld [vmem:[%s0 + $0x490] sm:$0xff]
    %v268 = vld [vmem:[%s0 + $0x498] sm:$0xff]
    %v269 = vld [vmem:[%s0 + $0x4a0] sm:$0xff]
    %v270 = vld [vmem:[%s0 + $0x4a8] sm:$0xff]
    %v271 = vld [vmem:[%s0 + $0x4b0] sm:$0xff]
    %v272 = vld [vmem:[%s0 + $0x4b8] sm:$0xff]
    %v273 = vld [vmem:[%s0 + $0x4c0] sm:$0xff]
    %v274 = vld [vmem:[%s0 + $0x4c8] sm:$0xff]
    %v275 = vld [vmem:[%s0 + $0x4d0] sm:$0xff]
    %v276 = vld [vmem:[%s0 + $0x4d8] sm:$0xff]
    %v277 = vld [vmem:[%s0 + $0x4e0] sm:$0xff]
    %v278 = vld [vmem:[%s0 + $0x4e8] sm:$0xff]
    %v279 = vld [vmem:[%s0 + $0x4f0] sm:$0xff]
    %v280 = vld [vmem:[%s0 + $0x4f8] sm:$0xff]
    %v281 = vld [vmem:[%s0 + $0x500] sm:$0xff]
    %v282 = vld [vmem:[%s0 + $0x508] sm:$0xff]
    %v283 = vld [vmem:[%s0 + $0x510] sm:$0xff]
    %v284 = vld [vmem:[%s0 + $0x518] sm:$0xff]
    %v285 = vld [vmem:[%s0 + $0x520] sm:$0xff]
    %v286 = vld [vmem:[%s0 + $0x528] sm:$0xff]
    %v287 = vld [vmem:[%s0 + $0x530] sm:$0xff]
    %v288 = vld [vmem:[%s0 + $0x538] sm:$0xff]
    %v289 = vld [vmem:[%s0 + $0x540] sm:$0xff]
    %v290 = vld [vmem:[%s0 + $0x548] sm:$0xff]
    %v291 = vld [vmem:[%s0 + $0x550] sm:$0xff]
    %v292 = vld [vmem:[%s0 + $0x558] sm:$0xff]
    %v293 = vld [vmem:[%s0 + $0x560] sm:$0xff]
    %v294 = vld [vmem:[%s0 + $0x568] sm:$0xff]
    %v295 = vld [vmem:[%s0 + $0x570] sm:$0xff]
    %v296 = vld [vmem:[%s0 + $0x578] sm:$0xff]
    %v297 = vld [vmem:[%s0 + $0x580] sm:$0xff]
    %v298 = vld [vmem:[%s0 + $0x588] sm:$0xff]
    %v299 = vld [vmem:[%s0 + $0x590] sm:$0xff]
    %v300 = vld [vmem:[%s0 + $0x598] sm:$0xff]
    %v301 = vld [vmem:[%s0 + $0x5a0] sm:$0xff]
    %v302 = vld [vmem:[%s0 + $0x5a8] sm:$0xff]
    %v303 = vld [vmem:[%s0 + $0x5b0] sm:$0xff]
    %v304 = vld [vmem:[%s0 + $0x5b8] sm:$0xff]
    %v305 = vld [vmem:[%s0 + $0x5c0] sm:$0xff]
    %v306 = vld [vmem:[%s0 + $0x5c8] sm:$0xff]
    %v307 = vld [vmem:[%s0 + $0x5d0] sm:$0xff]
    %v308 = vld [vmem:[%s0 + $0x5d8] sm:$0xff]
    %v309 = vld [vmem:[%s0 + $0x5e0] sm:$0xff]
    %v310 = vld [vmem:[%s0 + $0x5e8] sm:$0xff]
    %v311 = vld [vmem:[%s0 + $0x5f0] sm:$0xff]
    %v312 = vld [vmem:[%s0 + $0x5f8] sm:$0xff]
    %v313 = vld [vmem:[%s0 + $0x600] sm:$0xff]
    %v314 = vld [vmem:[%s0 + $0x608] sm:$0xff]
    %v315 = vld [vmem:[%s0 + $0x610] sm:$0xff]
    %v316 = vld [vmem:[%s0 + $0x618] sm:$0xff]
    %v317 = vld [vmem:[%s0 + $0x620] sm:$0xff]
    %v318 = vld [vmem:[%s0 + $0x628] sm:$0xff]
    %v319 = vld [vmem:[%s0 + $0x630] sm:$0xff]
    %v320 = vld [vmem:[%s0 + $0x638] sm:$0xff]
    %v321 = vld [vmem:[%s0 + $0x640] sm:$0xff]
    %v322 = vld [vmem:[%s0 + $0x648] sm:$0xff]
    %v323 = vld [vmem:[%s0 + $0x650] sm:$0xff]
    %v324 = vld [vmem:[%s0 + $0x658] sm:$0xff]
    %v325 = vld [vmem:[%s0 + $0x660] sm:$0xff]
    %v326 = vld [vmem:[%s0 + $0x668] sm:$0xff]
    %v327 = vld [vmem:[%s0 + $0x670] sm:$0xff]
    %v328 = vld [vmem:[%s0 + $0x678] sm:$0xff]
    %v329 = vld [vmem:[%s0 + $0x680] sm:$0xff]
    %v330 = vld [vmem:[%s0 + $0x688] sm:$0xff]
    %v331 = vld [vmem:[%s0 + $0x690] sm:$0xff]
    %v332 = vld [vmem:[%s0 + $0x698] sm:$0xff]
    %v333 = vld [vmem:[%s0 + $0x6a0] sm:$0xff]
    %v334 = vld [vmem:[%s0 + $0x6a8] sm:$0xff]
    %v335 = vld [vmem:[%s0 + $0x6b0] sm:$0xff]
    %v336 = vld [vmem:[%s0 + $0x6b8] sm:$0xff]
    %v337 = vld [vmem:[%s0 + $0x6c0] sm:$0xff]
    %v338 = vld [vmem:[%s0 + $0x6c8] sm:$0xff]
    %v339 = vld [vmem:[%s0 + $0x6d0] sm:$0xff]
    %v340 = vld [vmem:[%s0 + $0x6d8] sm:$0xff]
    %v341 = vld [vmem:[%s0 + $0x6e0] sm:$0xff]
    %v342 = vld [vmem:[%s0 + $0x6e8] sm:$0xff]
    %v343 = vld [vmem:[%s0 + $0x6f0] sm:$0xff]
    %v344 = vld [vmem:[%s0 + $0x6f8] sm:$0xff]
    %v345 = vld [vmem:[%s0 + $0x700] sm:$0xff]
    %v346 = vld [vmem:[%s0 + $0x708] sm:$0xff]
    %v347 = vld [vmem:[%s0 + $0x710] sm:$0xff]
    %v348 = vld [vmem:[%s0 + $0x718] sm:$0xff]
    %v349 = vld [vmem:[%s0 + $0x720] sm:$0xff]
    %v350 = vld [vmem:[%s0 + $0x728] sm:$0xff]
    %v351 = vld [vmem:[%s0 + $0x730] sm:$0xff]
    %v352 = vld [vmem:[%s0 + $0x738] sm:$0xff]
    %v353 = vld [vmem:[%s0 + $0x740] sm:$0xff]
    %v354 = vld [vmem:[%s0 + $0x748] sm:$0xff]
    %v355 = vld [vmem:[%s0 + $0x750] sm:$0xff]
    %v356 = vld [vmem:[%s0 + $0x758] sm:$0xff]
    %v357 = vld [vmem:[%s0 + $0x760] sm:$0xff]
    %v358 = vld [vmem:[%s0 + $0x768] sm:$0xff]
    %v359 = vld [vmem:[%s0 + $0x770] sm:$0xff]
    %v360 = vld [vmem:[%s0 + $0x778] sm:$0xff]
    %v361 = vld [vmem:[%s0 + $0x780] sm:$0xff]
    %v362 = vld [vmem:[%s0 + $0x788] sm:$0xff]
    %v363 = vld [vmem:[%s0 + $0x790] sm:$0xff]
    %v364 = vld [vmem:[%s0 + $0x798] sm:$0xff]
    %v365 = vld [vmem:[%s0 + $0x7a0] sm:$0xff]
    %v366 = vld [vmem:[%s0 + $0x7a8] sm:$0xff]
    %v367 = vld [vmem:[%s0 + $0x7b0] sm:$0xff]
    %v368 = vld [vmem:[%s0 + $0x7b8] sm:$0xff]
    %v369 = vld [vmem:[%s0 + $0x7c0] sm:$0xff]
    %v370 = vld [vmem:[%s0 + $0x7c8] sm:$0xff]
    %v371 = vld [vmem:[%s0 + $0x7d0] sm:$0xff]
    %v372 = vld [vmem:[%s0 + $0x7d8] sm:$0xff]
    %v373 = vld [vmem:[%s0 + $0x7e0] sm:$0xff]
    %v374 = vld [vmem:[%s0 + $0x7e8] sm:$0xff]
    %v375 = vld [vmem:[%s0 + $0x7f0] sm:$0xff]
    %v376 = vld [vmem:[%s0 + $0x7f8] sm:$0xff]
    %v377 = vld [vmem:[#allocation3] sm:$0xff]
    %v378 = vld [vmem:[#allocation3 + $0x8] sm:$0xff]
    %v379 = vld [vmem:[#allocation3 + $0x10] sm:$0xff]
    %v380 = vld [vmem:[#allocation3 + $0x18] sm:$0xff]
    %v381 = vld [vmem:[#allocation3 + $0x20] sm:$0xff]
    %v382 = vld [vmem:[#allocation3 + $0x28] sm:$0xff]
    %v383 = vld [vmem:[#allocation3 + $0x30] sm:$0xff]
    %v384 = vld [vmem:[#allocation3 + $0x38] sm:$0xff]
    %v385 = vld [vmem:[#allocation3 + $0x40] sm:$0xff]
    %v386 = vld [vmem:[#allocation3 + $0x48] sm:$0xff]
    %v387 = vld [vmem:[#allocation3 + $0x50] sm:$0xff]
    %v388 = vld [vmem:[#allocation3 + $0x58] sm:$0xff]
    %v389 = vld [vmem:[#allocation3 + $0x60] sm:$0xff]
    %v390 = vld [vmem:[#allocation3 + $0x68] sm:$0xff]
    %v391 = vld [vmem:[#allocation3 + $0x70] sm:$0xff]
    %v392 = vld [vmem:[#allocation3 + $0x78] sm:$0xff]
    %v393 = vld [vmem:[#allocation3 + $0x80] sm:$0xff]
    %v394 = vld [vmem:[#allocation3 + $0x88] sm:$0xff]
    %v395 = vld [vmem:[#allocation3 + $0x90] sm:$0xff]
    %v396 = vld [vmem:[#allocation3 + $0x98] sm:$0xff]
    %v397 = vld [vmem:[#allocation3 + $0xa0] sm:$0xff]
    %v398 = vld [vmem:[#allocation3 + $0xa8] sm:$0xff]
    %v399 = vld [vmem:[#allocation3 + $0xb0] sm:$0xff]
    %v400 = vld [vmem:[#allocation3 + $0xb8] sm:$0xff]
    %v401 = vld [vmem:[#allocation3 + $0xc0] sm:$0xff]
    %v402 = vld [vmem:[#allocation3 + $0xc8] sm:$0xff]
    %v403 = vld [vmem:[#allocation3 + $0xd0] sm:$0xff]
    %v404 = vld [vmem:[#allocation3 + $0xd8] sm:$0xff]
    %v405 = vld [vmem:[#allocation3 + $0xe0] sm:$0xff]
    %v406 = vld [vmem:[#allocation3 + $0xe8] sm:$0xff]
    %v407 = vld [vmem:[#allocation3 + $0xf0] sm:$0xff]
    %v408 = vld [vmem:[#allocation3 + $0xf8] sm:$0xff]
    %v409 = vld [vmem:[#allocation3 + $0x100] sm:$0xff]
    %v410 = vld [vmem:[#allocation3 + $0x108] sm:$0xff]
    %v411 = vld [vmem:[#allocation3 + $0x110] sm:$0xff]
    %v412 = vld [vmem:[#allocation3 + $0x118] sm:$0xff]
    %v413 = vld [vmem:[#allocation3 + $0x120] sm:$0xff]
    %v414 = vld [vmem:[#allocation3 + $0x128] sm:$0xff]
    %v415 = vld [vmem:[#allocation3 + $0x130] sm:$0xff]
    %v416 = vld [vmem:[#allocation3 + $0x138] sm:$0xff]
    %v417 = vld [vmem:[#allocation3 + $0x140] sm:$0xff]
    %v418 = vld [vmem:[#allocation3 + $0x148] sm:$0xff]
    %v419 = vld [vmem:[#allocation3 + $0x150] sm:$0xff]
    %v420 = vld [vmem:[#allocation3 + $0x158] sm:$0xff]
    %v421 = vld [vmem:[#allocation3 + $0x160] sm:$0xff]
    %v422 = vld [vmem:[#allocation3 + $0x168] sm:$0xff]
    %v423 = vld [vmem:[#allocation3 + $0x170] sm:$0xff]
    %v424 = vld [vmem:[#allocation3 + $0x178] sm:$0xff]
    %v425 = vld [vmem:[#allocation3 + $0x180] sm:$0xff]
    %v426 = vld [vmem:[#allocation3 + $0x188] sm:$0xff]
    %v427 = vld [vmem:[#allocation3 + $0x190] sm:$0xff]
    %v428 = vld [vmem:[#allocation3 + $0x198] sm:$0xff]
    %v429 = vld [vmem:[#allocation3 + $0x1a0] sm:$0xff]
    %v430 = vld [vmem:[#allocation3 + $0x1a8] sm:$0xff]
    %v431 = vld [vmem:[#allocation3 + $0x1b0] sm:$0xff]
    %v432 = vld [vmem:[#allocation3 + $0x1b8] sm:$0xff]
    %v433 = vld [vmem:[#allocation3 + $0x1c0] sm:$0xff]
    %v434 = vld [vmem:[#allocation3 + $0x1c8] sm:$0xff]
    %v435 = vld [vmem:[#allocation3 + $0x1d0] sm:$0xff]
    %v436 = vld [vmem:[#allocation3 + $0x1d8] sm:$0xff]
    %v437 = vld [vmem:[#allocation3 + $0x1e0] sm:$0xff]
    %v438 = vld [vmem:[#allocation3 + $0x1e8] sm:$0xff]
    %v439 = vld [vmem:[#allocation3 + $0x1f0] sm:$0xff]
    %v440 = vld [vmem:[#allocation3 + $0x1f8] sm:$0xff]
    %v441 = vld [vmem:[#allocation3 + $0x200] sm:$0xff]
    %v442 = vld [vmem:[#allocation3 + $0x208] sm:$0xff]
    %v443 = vld [vmem:[#allocation3 + $0x210] sm:$0xff]
    %v444 = vld [vmem:[#allocation3 + $0x218] sm:$0xff]
    %v445 = vld [vmem:[#allocation3 + $0x220] sm:$0xff]
    %v446 = vld [vmem:[#allocation3 + $0x228] sm:$0xff]
    %v447 = vld [vmem:[#allocation3 + $0x230] sm:$0xff]
    %v448 = vld [vmem:[#allocation3 + $0x238] sm:$0xff]
    %v449 = vld [vmem:[#allocation3 + $0x240] sm:$0xff]
    %v450 = vld [vmem:[#allocation3 + $0x248] sm:$0xff]
    %v451 = vld [vmem:[#allocation3 + $0x250] sm:$0xff]
    %v452 = vld [vmem:[#allocation3 + $0x258] sm:$0xff]
    %v453 = vld [vmem:[#allocation3 + $0x260] sm:$0xff]
    %v454 = vld [vmem:[#allocation3 + $0x268] sm:$0xff]
    %v455 = vld [vmem:[#allocation3 + $0x270] sm:$0xff]
    %v456 = vld [vmem:[#allocation3 + $0x278] sm:$0xff]
    %v457 = vld [vmem:[#allocation3 + $0x280] sm:$0xff]
    %v458 = vld [vmem:[#allocation3 + $0x288] sm:$0xff]
    %v459 = vld [vmem:[#allocation3 + $0x290] sm:$0xff]
    %v460 = vld [vmem:[#allocation3 + $0x298] sm:$0xff]
    %v461 = vld [vmem:[#allocation3 + $0x2a0] sm:$0xff]
    %v462 = vld [vmem:[#allocation3 + $0x2a8] sm:$0xff]
    %v463 = vld [vmem:[#allocation3 + $0x2b0] sm:$0xff]
    %v464 = vld [vmem:[#allocation3 + $0x2b8] sm:$0xff]
    %v465 = vld [vmem:[#allocation3 + $0x2c0] sm:$0xff]
    %v466 = vld [vmem:[#allocation3 + $0x2c8] sm:$0xff]
    %v467 = vld [vmem:[#allocation3 + $0x2d0] sm:$0xff]
    %v468 = vld [vmem:[#allocation3 + $0x2d8] sm:$0xff]
    %v469 = vld [vmem:[#allocation3 + $0x2e0] sm:$0xff]
    %v470 = vld [vmem:[#allocation3 + $0x2e8] sm:$0xff]
    %v471 = vld [vmem:[#allocation3 + $0x2f0] sm:$0xff]
    %v472 = vld [vmem:[#allocation3 + $0x2f8] sm:$0xff]
    %v473 = vld [vmem:[#allocation3 + $0x300] sm:$0xff]
    %v474 = vld [vmem:[#allocation3 + $0x308] sm:$0xff]
    %v475 = vld [vmem:[#allocation3 + $0x310] sm:$0xff]
    %v476 = vld [vmem:[#allocation3 + $0x318] sm:$0xff]
    %v477 = vld [vmem:[#allocation3 + $0x320] sm:$0xff]
    %v478 = vld [vmem:[#allocation3 + $0x328] sm:$0xff]
    %v479 = vld [vmem:[#allocation3 + $0x330] sm:$0xff]
    %v480 = vld [vmem:[#allocation3 + $0x338] sm:$0xff]
    %v481 = vld [vmem:[#allocation3 + $0x340] sm:$0xff]
    %v482 = vld [vmem:[#allocation3 + $0x348] sm:$0xff]
    %v483 = vld [vmem:[#allocation3 + $0x350] sm:$0xff]
    %v484 = vld [vmem:[#allocation3 + $0x358] sm:$0xff]
    %v485 = vld [vmem:[#allocation3 + $0x360] sm:$0xff]
    %v486 = vld [vmem:[#allocation3 + $0x368] sm:$0xff]
    %v487 = vld [vmem:[#allocation3 + $0x370] sm:$0xff]
    %v488 = vld [vmem:[#allocation3 + $0x378] sm:$0xff]
    %v489 = vld [vmem:[#allocation3 + $0x380] sm:$0xff]
    %v490 = vld [vmem:[#allocation3 + $0x388] sm:$0xff]
    %v491 = vld [vmem:[#allocation3 + $0x390] sm:$0xff]
    %v492 = vld [vmem:[#allocation3 + $0x398] sm:$0xff]
    %v493 = vld [vmem:[#allocation3 + $0x3a0] sm:$0xff]
    %v494 = vld [vmem:[#allocation3 + $0x3a8] sm:$0xff]
    %v495 = vld [vmem:[#allocation3 + $0x3b0] sm:$0xff]
    %v496 = vld [vmem:[#allocation3 + $0x3b8] sm:$0xff]
    %v497 = vld [vmem:[#allocation3 + $0x3c0] sm:$0xff]
    %v498 = vld [vmem:[#allocation3 + $0x3c8] sm:$0xff]
    %v499 = vld [vmem:[#allocation3 + $0x3d0] sm:$0xff]
    %v500 = vld [vmem:[#allocation3 + $0x3d8] sm:$0xff]
    %v501 = vld [vmem:[#allocation3 + $0x3e0] sm:$0xff]
    %v502 = vld [vmem:[#allocation3 + $0x3e8] sm:$0xff]
    %v503 = vld [vmem:[#allocation3 + $0x3f0] sm:$0xff]
    %v504 = vld [vmem:[#allocation3 + $0x3f8] sm:$0xff]
    %v505 = vld [vmem:[#allocation3 + $0x400] sm:$0xff]
    %v506 = vld [vmem:[#allocation3 + $0x408] sm:$0xff]
    %v507 = vld [vmem:[#allocation3 + $0x410] sm:$0xff]
    %v508 = vld [vmem:[#allocation3 + $0x418] sm:$0xff]
    %v509 = vld [vmem:[#allocation3 + $0x420] sm:$0xff]
    %v510 = vld [vmem:[#allocation3 + $0x428] sm:$0xff]
    %v511 = vld [vmem:[#allocation3 + $0x430] sm:$0xff]
    %v512 = vld [vmem:[#allocation3 + $0x438] sm:$0xff]
    %v513 = vld [vmem:[#allocation3 + $0x440] sm:$0xff]
    %v514 = vld [vmem:[#allocation3 + $0x448] sm:$0xff]
    %v515 = vld [vmem:[#allocation3 + $0x450] sm:$0xff]
    %v516 = vld [vmem:[#allocation3 + $0x458] sm:$0xff]
    %v517 = vld [vmem:[#allocation3 + $0x460] sm:$0xff]
    %v518 = vld [vmem:[#allocation3 + $0x468] sm:$0xff]
    %v519 = vld [vmem:[#allocation3 + $0x470] sm:$0xff]
    %v520 = vld [vmem:[#allocation3 + $0x478] sm:$0xff]
    %v521 = vld [vmem:[#allocation3 + $0x480] sm:$0xff]
    %v522 = vld [vmem:[#allocation3 + $0x488] sm:$0xff]
    %v523 = vld [vmem:[#allocation3 + $0x490] sm:$0xff]
    %v524 = vld [vmem:[#allocation3 + $0x498] sm:$0xff]
    %v525 = vld [vmem:[#allocation3 + $0x4a0] sm:$0xff]
    %v526 = vld [vmem:[#allocation3 + $0x4a8] sm:$0xff]
    %v527 = vld [vmem:[#allocation3 + $0x4b0] sm:$0xff]
    %v528 = vld [vmem:[#allocation3 + $0x4b8] sm:$0xff]
    %v529 = vld [vmem:[#allocation3 + $0x4c0] sm:$0xff]
    %v530 = vld [vmem:[#allocation3 + $0x4c8] sm:$0xff]
    %v531 = vld [vmem:[#allocation3 + $0x4d0] sm:$0xff]
    %v532 = vld [vmem:[#allocation3 + $0x4d8] sm:$0xff]
    %v533 = vld [vmem:[#allocation3 + $0x4e0] sm:$0xff]
    %v534 = vld [vmem:[#allocation3 + $0x4e8] sm:$0xff]
    %v535 = vld [vmem:[#allocation3 + $0x4f0] sm:$0xff]
    %v536 = vld [vmem:[#allocation3 + $0x4f8] sm:$0xff]
    %v537 = vld [vmem:[#allocation3 + $0x500] sm:$0xff]
    %v538 = vld [vmem:[#allocation3 + $0x508] sm:$0xff]
    %v539 = vld [vmem:[#allocation3 + $0x510] sm:$0xff]
    %v540 = vld [vmem:[#allocation3 + $0x518] sm:$0xff]
    %v541 = vld [vmem:[#allocation3 + $0x520] sm:$0xff]
    %v542 = vld [vmem:[#allocation3 + $0x528] sm:$0xff]
    %v543 = vld [vmem:[#allocation3 + $0x530] sm:$0xff]
    %v544 = vld [vmem:[#allocation3 + $0x538] sm:$0xff]
    %v545 = vld [vmem:[#allocation3 + $0x540] sm:$0xff]
    %v546 = vld [vmem:[#allocation3 + $0x548] sm:$0xff]
    %v547 = vld [vmem:[#allocation3 + $0x550] sm:$0xff]
    %v548 = vld [vmem:[#allocation3 + $0x558] sm:$0xff]
    %v549 = vld [vmem:[#allocation3 + $0x560] sm:$0xff]
    %v550 = vld [vmem:[#allocation3 + $0x568] sm:$0xff]
    %v551 = vld [vmem:[#allocation3 + $0x570] sm:$0xff]
    %v552 = vld [vmem:[#allocation3 + $0x578] sm:$0xff]
    %v553 = vld [vmem:[#allocation3 + $0x580] sm:$0xff]
    %v554 = vld [vmem:[#allocation3 + $0x588] sm:$0xff]
    %v555 = vld [vmem:[#allocation3 + $0x590] sm:$0xff]
    %v556 = vld [vmem:[#allocation3 + $0x598] sm:$0xff]
    %v557 = vld [vmem:[#allocation3 + $0x5a0] sm:$0xff]
    %v558 = vld [vmem:[#allocation3 + $0x5a8] sm:$0xff]
    %v559 = vld [vmem:[#allocation3 + $0x5b0] sm:$0xff]
    %v560 = vld [vmem:[#allocation3 + $0x5b8] sm:$0xff]
    %v561 = vld [vmem:[#allocation3 + $0x5c0] sm:$0xff]
    %v562 = vld [vmem:[#allocation3 + $0x5c8] sm:$0xff]
    %v563 = vld [vmem:[#allocation3 + $0x5d0] sm:$0xff]
    %v564 = vld [vmem:[#allocation3 + $0x5d8] sm:$0xff]
    %v565 = vld [vmem:[#allocation3 + $0x5e0] sm:$0xff]
    %v566 = vld [vmem:[#allocation3 + $0x5e8] sm:$0xff]
    %v567 = vld [vmem:[#allocation3 + $0x5f0] sm:$0xff]
    %v568 = vld [vmem:[#allocation3 + $0x5f8] sm:$0xff]
    %v569 = vld [vmem:[#allocation3 + $0x600] sm:$0xff]
    %v570 = vld [vmem:[#allocation3 + $0x608] sm:$0xff]
    %v571 = vld [vmem:[#allocation3 + $0x610] sm:$0xff]
    %v572 = vld [vmem:[#allocation3 + $0x618] sm:$0xff]
    %v573 = vld [vmem:[#allocation3 + $0x620] sm:$0xff]
    %v574 = vld [vmem:[#allocation3 + $0x628] sm:$0xff]
    %v575 = vld [vmem:[#allocation3 + $0x630] sm:$0xff]
    %v576 = vld [vmem:[#allocation3 + $0x638] sm:$0xff]
    %v577 = vld [vmem:[#allocation3 + $0x640] sm:$0xff]
    %v578 = vld [vmem:[#allocation3 + $0x648] sm:$0xff]
    %v579 = vld [vmem:[#allocation3 + $0x650] sm:$0xff]
    %v580 = vld [vmem:[#allocation3 + $0x658] sm:$0xff]
    %v581 = vld [vmem:[#allocation3 + $0x660] sm:$0xff]
    %v582 = vld [vmem:[#allocation3 + $0x668] sm:$0xff]
    %v583 = vld [vmem:[#allocation3 + $0x670] sm:$0xff]
    %v584 = vld [vmem:[#allocation3 + $0x678] sm:$0xff]
    %v585 = vld [vmem:[#allocation3 + $0x680] sm:$0xff]
    %v586 = vld [vmem:[#allocation3 + $0x688] sm:$0xff]
    %v587 = vld [vmem:[#allocation3 + $0x690] sm:$0xff]
    %v588 = vld [vmem:[#allocation3 + $0x698] sm:$0xff]
    %v589 = vld [vmem:[#allocation3 + $0x6a0] sm:$0xff]
    %v590 = vld [vmem:[#allocation3 + $0x6a8] sm:$0xff]
    %v591 = vld [vmem:[#allocation3 + $0x6b0] sm:$0xff]
    %v592 = vld [vmem:[#allocation3 + $0x6b8] sm:$0xff]
    %v593 = vld [vmem:[#allocation3 + $0x6c0] sm:$0xff]
    %v594 = vld [vmem:[#allocation3 + $0x6c8] sm:$0xff]
    %v595 = vld [vmem:[#allocation3 + $0x6d0] sm:$0xff]
    %v596 = vld [vmem:[#allocation3 + $0x6d8] sm:$0xff]
    %v597 = vld [vmem:[#allocation3 + $0x6e0] sm:$0xff]
    %v598 = vld [vmem:[#allocation3 + $0x6e8] sm:$0xff]
    %v599 = vld [vmem:[#allocation3 + $0x6f0] sm:$0xff]
    %v600 = vld [vmem:[#allocation3 + $0x6f8] sm:$0xff]
    %v601 = vld [vmem:[#allocation3 + $0x700] sm:$0xff]
    %v602 = vld [vmem:[#allocation3 + $0x708] sm:$0xff]
    %v603 = vld [vmem:[#allocation3 + $0x710] sm:$0xff]
    %v604 = vld [vmem:[#allocation3 + $0x718] sm:$0xff]
    %v605 = vld [vmem:[#allocation3 + $0x720] sm:$0xff]
    %v606 = vld [vmem:[#allocation3 + $0x728] sm:$0xff]
    %v607 = vld [vmem:[#allocation3 + $0x730] sm:$0xff]
    %v608 = vld [vmem:[#allocation3 + $0x738] sm:$0xff]
    %v609 = vld [vmem:[#allocation3 + $0x740] sm:$0xff]
    %v610 = vld [vmem:[#allocation3 + $0x748] sm:$0xff]
    %v611 = vld [vmem:[#allocation3 + $0x750] sm:$0xff]
    %v612 = vld [vmem:[#allocation3 + $0x758] sm:$0xff]
    %v613 = vld [vmem:[#allocation3 + $0x760] sm:$0xff]
    %v614 = vld [vmem:[#allocation3 + $0x768] sm:$0xff]
    %v615 = vld [vmem:[#allocation3 + $0x770] sm:$0xff]
    %v616 = vld [vmem:[#allocation3 + $0x778] sm:$0xff]
    %v617 = vld [vmem:[#allocation3 + $0x780] sm:$0xff]
    %v618 = vld [vmem:[#allocation3 + $0x788] sm:$0xff]
    %v619 = vld [vmem:[#allocation3 + $0x790] sm:$0xff]
    %v620 = vld [vmem:[#allocation3 + $0x798] sm:$0xff]
    %v621 = vld [vmem:[#allocation3 + $0x7a0] sm:$0xff]
    %v622 = vld [vmem:[#allocation3 + $0x7a8] sm:$0xff]
    %v623 = vld [vmem:[#allocation3 + $0x7b0] sm:$0xff]
    %v624 = vld [vmem:[#allocation3 + $0x7b8] sm:$0xff]
    %v625 = vld [vmem:[#allocation3 + $0x7c0] sm:$0xff]
    %v626 = vld [vmem:[#allocation3 + $0x7c8] sm:$0xff]
    %v627 = vld [vmem:[#allocation3 + $0x7d0] sm:$0xff]
    %v628 = vld [vmem:[#allocation3 + $0x7d8] sm:$0xff]
    %v629 = vld [vmem:[#allocation3 + $0x7e0] sm:$0xff]
    %v630 = vld [vmem:[#allocation3 + $0x7e8] sm:$0xff]
    %v631 = vld [vmem:[#allocation3 + $0x7f0] sm:$0xff]
    %v632 = vld [vmem:[#allocation3 + $0x7f8] sm:$0xff]
    %v633 = vld [vmem:[#allocation3 + $0x800] sm:$0xff]
    %v634 = vld [vmem:[#allocation3 + $0x808] sm:$0xff]
    %v635 = vld [vmem:[#allocation3 + $0x810] sm:$0xff]
    %v636 = vld [vmem:[#allocation3 + $0x818] sm:$0xff]
    %v637 = vld [vmem:[#allocation3 + $0x820] sm:$0xff]
    %v638 = vld [vmem:[#allocation3 + $0x828] sm:$0xff]
    %v639 = vld [vmem:[#allocation3 + $0x830] sm:$0xff]
    %v640 = vld [vmem:[#allocation3 + $0x838] sm:$0xff]
    %v641 = vld [vmem:[#allocation3 + $0x840] sm:$0xff]
    %v642 = vld [vmem:[#allocation3 + $0x848] sm:$0xff]
    %v643 = vld [vmem:[#allocation3 + $0x850] sm:$0xff]
    %v644 = vld [vmem:[#allocation3 + $0x858] sm:$0xff]
    %v645 = vld [vmem:[#allocation3 + $0x860] sm:$0xff]
    %v646 = vld [vmem:[#allocation3 + $0x868] sm:$0xff]
    %v647 = vld [vmem:[#allocation3 + $0x870] sm:$0xff]
    %v648 = vld [vmem:[#allocation3 + $0x878] sm:$0xff]
    %v649 = vld [vmem:[#allocation3 + $0x880] sm:$0xff]
    %v650 = vld [vmem:[#allocation3 + $0x888] sm:$0xff]
    %v651 = vld [vmem:[#allocation3 + $0x890] sm:$0xff]
    %v652 = vld [vmem:[#allocation3 + $0x898] sm:$0xff]
    %v653 = vld [vmem:[#allocation3 + $0x8a0] sm:$0xff]
    %v654 = vld [vmem:[#allocation3 + $0x8a8] sm:$0xff]
    %v655 = vld [vmem:[#allocation3 + $0x8b0] sm:$0xff]
    %v656 = vld [vmem:[#allocation3 + $0x8b8] sm:$0xff]
    %v657 = vld [vmem:[#allocation3 + $0x8c0] sm:$0xff]
    %v658 = vld [vmem:[#allocation3 + $0x8c8] sm:$0xff]
    %v659 = vld [vmem:[#allocation3 + $0x8d0] sm:$0xff]
    %v660 = vld [vmem:[#allocation3 + $0x8d8] sm:$0xff]
    %v661 = vld [vmem:[#allocation3 + $0x8e0] sm:$0xff]
    %v662 = vld [vmem:[#allocation3 + $0x8e8] sm:$0xff]
    %v663 = vld [vmem:[#allocation3 + $0x8f0] sm:$0xff]
    %v664 = vld [vmem:[#allocation3 + $0x8f8] sm:$0xff]
    %v665 = vld [vmem:[#allocation3 + $0x900] sm:$0xff]
    %v666 = vld [vmem:[#allocation3 + $0x908] sm:$0xff]
    %v667 = vld [vmem:[#allocation3 + $0x910] sm:$0xff]
    %v668 = vld [vmem:[#allocation3 + $0x918] sm:$0xff]
    %v669 = vld [vmem:[#allocation3 + $0x920] sm:$0xff]
    %v670 = vld [vmem:[#allocation3 + $0x928] sm:$0xff]
    %v671 = vld [vmem:[#allocation3 + $0x930] sm:$0xff]
    %v672 = vld [vmem:[#allocation3 + $0x938] sm:$0xff]
    %v673 = vld [vmem:[#allocation3 + $0x940] sm:$0xff]
    %v674 = vld [vmem:[#allocation3 + $0x948] sm:$0xff]
    %v675 = vld [vmem:[#allocation3 + $0x950] sm:$0xff]
    %v676 = vld [vmem:[#allocation3 + $0x958] sm:$0xff]
    %v677 = vld [vmem:[#allocation3 + $0x960] sm:$0xff]
    %v678 = vld [vmem:[#allocation3 + $0x968] sm:$0xff]
    %v679 = vld [vmem:[#allocation3 + $0x970] sm:$0xff]
    %v680 = vld [vmem:[#allocation3 + $0x978] sm:$0xff]
    %v681 = vld [vmem:[#allocation3 + $0x980] sm:$0xff]
    %v682 = vld [vmem:[#allocation3 + $0x988] sm:$0xff]
    %v683 = vld [vmem:[#allocation3 + $0x990] sm:$0xff]
    %v684 = vld [vmem:[#allocation3 + $0x998] sm:$0xff]
    %v685 = vld [vmem:[#allocation3 + $0x9a0] sm:$0xff]
    %v686 = vld [vmem:[#allocation3 + $0x9a8] sm:$0xff]
    %v687 = vld [vmem:[#allocation3 + $0x9b0] sm:$0xff]
    %v688 = vld [vmem:[#allocation3 + $0x9b8] sm:$0xff]
    %v689 = vld [vmem:[#allocation3 + $0x9c0] sm:$0xff]
    %v690 = vld [vmem:[#allocation3 + $0x9c8] sm:$0xff]
    %v691 = vld [vmem:[#allocation3 + $0x9d0] sm:$0xff]
    %v692 = vld [vmem:[#allocation3 + $0x9d8] sm:$0xff]
    %v693 = vld [vmem:[#allocation3 + $0x9e0] sm:$0xff]
    %v694 = vld [vmem:[#allocation3 + $0x9e8] sm:$0xff]
    %v695 = vld [vmem:[#allocation3 + $0x9f0] sm:$0xff]
    %v696 = vld [vmem:[#allocation3 + $0x9f8] sm:$0xff]
    %v697 = vld [vmem:[#allocation3 + $0xa00] sm:$0xff]
    %v698 = vld [vmem:[#allocation3 + $0xa08] sm:$0xff]
    %v699 = vld [vmem:[#allocation3 + $0xa10] sm:$0xff]
    %v700 = vld [vmem:[#allocation3 + $0xa18] sm:$0xff]
    %v701 = vld [vmem:[#allocation3 + $0xa20] sm:$0xff]
    %v702 = vld [vmem:[#allocation3 + $0xa28] sm:$0xff]
    %v703 = vld [vmem:[#allocation3 + $0xa30] sm:$0xff]
    %v704 = vld [vmem:[#allocation3 + $0xa38] sm:$0xff]
    %v705 = vld [vmem:[#allocation3 + $0xa40] sm:$0xff]
    %v706 = vld [vmem:[#allocation3 + $0xa48] sm:$0xff]
    %v707 = vld [vmem:[#allocation3 + $0xa50] sm:$0xff]
    %v708 = vld [vmem:[#allocation3 + $0xa58] sm:$0xff]
    %v709 = vld [vmem:[#allocation3 + $0xa60] sm:$0xff]
    %v710 = vld [vmem:[#allocation3 + $0xa68] sm:$0xff]
    %v711 = vld [vmem:[#allocation3 + $0xa70] sm:$0xff]
    %v712 = vld [vmem:[#allocation3 + $0xa78] sm:$0xff]
    %v713 = vld [vmem:[#allocation3 + $0xa80] sm:$0xff]
    %v714 = vld [vmem:[#allocation3 + $0xa88] sm:$0xff]
    %v715 = vld [vmem:[#allocation3 + $0xa90] sm:$0xff]
    %v716 = vld [vmem:[#allocation3 + $0xa98] sm:$0xff]
    %v717 = vld [vmem:[#allocation3 + $0xaa0] sm:$0xff]
    %v718 = vld [vmem:[#allocation3 + $0xaa8] sm:$0xff]
    %v719 = vld [vmem:[#allocation3 + $0xab0] sm:$0xff]
    %v720 = vld [vmem:[#allocation3 + $0xab8] sm:$0xff]
    %v721 = vld [vmem:[#allocation3 + $0xac0] sm:$0xff]
    %v722 = vld [vmem:[#allocation3 + $0xac8] sm:$0xff]
    %v723 = vld [vmem:[#allocation3 + $0xad0] sm:$0xff]
    %v724 = vld [vmem:[#allocation3 + $0xad8] sm:$0xff]
    %v725 = vld [vmem:[#allocation3 + $0xae0] sm:$0xff]
    %v726 = vld [vmem:[#allocation3 + $0xae8] sm:$0xff]
    %v727 = vld [vmem:[#allocation3 + $0xaf0] sm:$0xff]
    %v728 = vld [vmem:[#allocation3 + $0xaf8] sm:$0xff]
    %v729 = vld [vmem:[#allocation3 + $0xb00] sm:$0xff]
    %v730 = vld [vmem:[#allocation3 + $0xb08] sm:$0xff]
    %v731 = vld [vmem:[#allocation3 + $0xb10] sm:$0xff]
    %v732 = vld [vmem:[#allocation3 + $0xb18] sm:$0xff]
    %v733 = vld [vmem:[#allocation3 + $0xb20] sm:$0xff]
    %v734 = vld [vmem:[#allocation3 + $0xb28] sm:$0xff]
    %v735 = vld [vmem:[#allocation3 + $0xb30] sm:$0xff]
    %v736 = vld [vmem:[#allocation3 + $0xb38] sm:$0xff]
    %v737 = vld [vmem:[#allocation3 + $0xb40] sm:$0xff]
    %v738 = vld [vmem:[#allocation3 + $0xb48] sm:$0xff]
    %v739 = vld [vmem:[#allocation3 + $0xb50] sm:$0xff]
    %v740 = vld [vmem:[#allocation3 + $0xb58] sm:$0xff]
    %v741 = vld [vmem:[#allocation3 + $0xb60] sm:$0xff]
    %v742 = vld [vmem:[#allocation3 + $0xb68] sm:$0xff]
    %v743 = vld [vmem:[#allocation3 + $0xb70] sm:$0xff]
    %v744 = vld [vmem:[#allocation3 + $0xb78] sm:$0xff]
    %v745 = vld [vmem:[#allocation3 + $0xb80] sm:$0xff]
    %v746 = vld [vmem:[#allocation3 + $0xb88] sm:$0xff]
    %v747 = vld [vmem:[#allocation3 + $0xb90] sm:$0xff]
    %v748 = vld [vmem:[#allocation3 + $0xb98] sm:$0xff]
    %v749 = vld [vmem:[#allocation3 + $0xba0] sm:$0xff]
    %v750 = vld [vmem:[#allocation3 + $0xba8] sm:$0xff]
    %v751 = vld [vmem:[#allocation3 + $0xbb0] sm:$0xff]
    %v752 = vld [vmem:[#allocation3 + $0xbb8] sm:$0xff]
    %v753 = vld [vmem:[#allocation3 + $0xbc0] sm:$0xff]
    %v754 = vld [vmem:[#allocation3 + $0xbc8] sm:$0xff]
    %v755 = vld [vmem:[#allocation3 + $0xbd0] sm:$0xff]
    %v756 = vld [vmem:[#allocation3 + $0xbd8] sm:$0xff]
    %v757 = vld [vmem:[#allocation3 + $0xbe0] sm:$0xff]
    %v758 = vld [vmem:[#allocation3 + $0xbe8] sm:$0xff]
    %v759 = vld [vmem:[#allocation3 + $0xbf0] sm:$0xff]
    %v760 = vld [vmem:[#allocation3 + $0xbf8] sm:$0xff]
    %v761 = vld [vmem:[#allocation3 + $0xc00] sm:$0xff]
    %v762 = vld [vmem:[#allocation3 + $0xc08] sm:$0xff]
    %v763 = vld [vmem:[#allocation3 + $0xc10] sm:$0xff]
    %v764 = vld [vmem:[#allocation3 + $0xc18] sm:$0xff]
    %v765 = vld [vmem:[#allocation3 + $0xc20] sm:$0xff]
    %v766 = vld [vmem:[#allocation3 + $0xc28] sm:$0xff]
    %v767 = vld [vmem:[#allocation3 + $0xc30] sm:$0xff]
    %v768 = vld [vmem:[#allocation3 + $0xc38] sm:$0xff]
    %v769 = vld [vmem:[#allocation3 + $0xc40] sm:$0xff]
    %v770 = vld [vmem:[#allocation3 + $0xc48] sm:$0xff]
    %v771 = vld [vmem:[#allocation3 + $0xc50] sm:$0xff]
    %v772 = vld [vmem:[#allocation3 + $0xc58] sm:$0xff]
    %v773 = vld [vmem:[#allocation3 + $0xc60] sm:$0xff]
    %v774 = vld [vmem:[#allocation3 + $0xc68] sm:$0xff]
    %v775 = vld [vmem:[#allocation3 + $0xc70] sm:$0xff]
    %v776 = vld [vmem:[#allocation3 + $0xc78] sm:$0xff]
    %v777 = vld [vmem:[#allocation3 + $0xc80] sm:$0xff]
    %v778 = vld [vmem:[#allocation3 + $0xc88] sm:$0xff]
    %v779 = vld [vmem:[#allocation3 + $0xc90] sm:$0xff]
    %v780 = vld [vmem:[#allocation3 + $0xc98] sm:$0xff]
    %v781 = vld [vmem:[#allocation3 + $0xca0] sm:$0xff]
    %v782 = vld [vmem:[#allocation3 + $0xca8] sm:$0xff]
    %v783 = vld [vmem:[#allocation3 + $0xcb0] sm:$0xff]
    %v784 = vld [vmem:[#allocation3 + $0xcb8] sm:$0xff]
    %v785 = vld [vmem:[#allocation3 + $0xcc0] sm:$0xff]
    %v786 = vld [vmem:[#allocation3 + $0xcc8] sm:$0xff]
    %v787 = vld [vmem:[#allocation3 + $0xcd0] sm:$0xff]
    %v788 = vld [vmem:[#allocation3 + $0xcd8] sm:$0xff]
    %v789 = vld [vmem:[#allocation3 + $0xce0] sm:$0xff]
    %v790 = vld [vmem:[#allocation3 + $0xce8] sm:$0xff]
    %v791 = vld [vmem:[#allocation3 + $0xcf0] sm:$0xff]
    %v792 = vld [vmem:[#allocation3 + $0xcf8] sm:$0xff]
    %v793 = vld [vmem:[#allocation3 + $0xd00] sm:$0xff]
    %v794 = vld [vmem:[#allocation3 + $0xd08] sm:$0xff]
    %v795 = vld [vmem:[#allocation3 + $0xd10] sm:$0xff]
    %v796 = vld [vmem:[#allocation3 + $0xd18] sm:$0xff]
    %v797 = vld [vmem:[#allocation3 + $0xd20] sm:$0xff]
    %v798 = vld [vmem:[#allocation3 + $0xd28] sm:$0xff]
    %v799 = vld [vmem:[#allocation3 + $0xd30] sm:$0xff]
    %v800 = vld [vmem:[#allocation3 + $0xd38] sm:$0xff]
    %v801 = vld [vmem:[#allocation3 + $0xd40] sm:$0xff]
    %v802 = vld [vmem:[#allocation3 + $0xd48] sm:$0xff]
    %v803 = vld [vmem:[#allocation3 + $0xd50] sm:$0xff]
    %v804 = vld [vmem:[#allocation3 + $0xd58] sm:$0xff]
    %v805 = vld [vmem:[#allocation3 + $0xd60] sm:$0xff]
    %v806 = vld [vmem:[#allocation3 + $0xd68] sm:$0xff]
    %v807 = vld [vmem:[#allocation3 + $0xd70] sm:$0xff]
    %v808 = vld [vmem:[#allocation3 + $0xd78] sm:$0xff]
    %v809 = vld [vmem:[#allocation3 + $0xd80] sm:$0xff]
    %v810 = vld [vmem:[#allocation3 + $0xd88] sm:$0xff]
    %v811 = vld [vmem:[#allocation3 + $0xd90] sm:$0xff]
    %v812 = vld [vmem:[#allocation3 + $0xd98] sm:$0xff]
    %v813 = vld [vmem:[#allocation3 + $0xda0] sm:$0xff]
    %v814 = vld [vmem:[#allocation3 + $0xda8] sm:$0xff]
    %v815 = vld [vmem:[#allocation3 + $0xdb0] sm:$0xff]
    %v816 = vld [vmem:[#allocation3 + $0xdb8] sm:$0xff]
    %v817 = vld [vmem:[#allocation3 + $0xdc0] sm:$0xff]
    %v818 = vld [vmem:[#allocation3 + $0xdc8] sm:$0xff]
    %v819 = vld [vmem:[#allocation3 + $0xdd0] sm:$0xff]
    %v820 = vld [vmem:[#allocation3 + $0xdd8] sm:$0xff]
    %v821 = vld [vmem:[#allocation3 + $0xde0] sm:$0xff]
    %v822 = vld [vmem:[#allocation3 + $0xde8] sm:$0xff]
    %v823 = vld [vmem:[#allocation3 + $0xdf0] sm:$0xff]
    %v824 = vld [vmem:[#allocation3 + $0xdf8] sm:$0xff]
    %v825 = vld [vmem:[#allocation3 + $0xe00] sm:$0xff]
    %v826 = vld [vmem:[#allocation3 + $0xe08] sm:$0xff]
    %v827 = vld [vmem:[#allocation3 + $0xe10] sm:$0xff]
    %v828 = vld [vmem:[#allocation3 + $0xe18] sm:$0xff]
    %v829 = vld [vmem:[#allocation3 + $0xe20] sm:$0xff]
    %v830 = vld [vmem:[#allocation3 + $0xe28] sm:$0xff]
    %v831 = vld [vmem:[#allocation3 + $0xe30] sm:$0xff]
    %v832 = vld [vmem:[#allocation3 + $0xe38] sm:$0xff]
    %v833 = vld [vmem:[#allocation3 + $0xe40] sm:$0xff]
    %v834 = vld [vmem:[#allocation3 + $0xe48] sm:$0xff]
    %v835 = vld [vmem:[#allocation3 + $0xe50] sm:$0xff]
    %v836 = vld [vmem:[#allocation3 + $0xe58] sm:$0xff]
    %v837 = vld [vmem:[#allocation3 + $0xe60] sm:$0xff]
    %v838 = vld [vmem:[#allocation3 + $0xe68] sm:$0xff]
    %v839 = vld [vmem:[#allocation3 + $0xe70] sm:$0xff]
    %v840 = vld [vmem:[#allocation3 + $0xe78] sm:$0xff]
    %v841 = vld [vmem:[#allocation3 + $0xe80] sm:$0xff]
    %v842 = vld [vmem:[#allocation3 + $0xe88] sm:$0xff]
    %v843 = vld [vmem:[#allocation3 + $0xe90] sm:$0xff]
    %v844 = vld [vmem:[#allocation3 + $0xe98] sm:$0xff]
    %v845 = vld [vmem:[#allocation3 + $0xea0] sm:$0xff]
    %v846 = vld [vmem:[#allocation3 + $0xea8] sm:$0xff]
    %v847 = vld [vmem:[#allocation3 + $0xeb0] sm:$0xff]
    %v848 = vld [vmem:[#allocation3 + $0xeb8] sm:$0xff]
    %v849 = vld [vmem:[#allocation3 + $0xec0] sm:$0xff]
    %v850 = vld [vmem:[#allocation3 + $0xec8] sm:$0xff]
    %v851 = vld [vmem:[#allocation3 + $0xed0] sm:$0xff]
    %v852 = vld [vmem:[#allocation3 + $0xed8] sm:$0xff]
    %v853 = vld [vmem:[#allocation3 + $0xee0] sm:$0xff]
    %v854 = vld [vmem:[#allocation3 + $0xee8] sm:$0xff]
    %v855 = vld [vmem:[#allocation3 + $0xef0] sm:$0xff]
    %v856 = vld [vmem:[#allocation3 + $0xef8] sm:$0xff]
    %v857 = vld [vmem:[#allocation3 + $0xf00] sm:$0xff]
    %v858 = vld [vmem:[#allocation3 + $0xf08] sm:$0xff]
    %v859 = vld [vmem:[#allocation3 + $0xf10] sm:$0xff]
    %v860 = vld [vmem:[#allocation3 + $0xf18] sm:$0xff]
    %v861 = vld [vmem:[#allocation3 + $0xf20] sm:$0xff]
    %v862 = vld [vmem:[#allocation3 + $0xf28] sm:$0xff]
    %v863 = vld [vmem:[#allocation3 + $0xf30] sm:$0xff]
    %v864 = vld [vmem:[#allocation3 + $0xf38] sm:$0xff]
    %v865 = vld [vmem:[#allocation3 + $0xf40] sm:$0xff]
    %v866 = vld [vmem:[#allocation3 + $0xf48] sm:$0xff]
    %v867 = vld [vmem:[#allocation3 + $0xf50] sm:$0xff]
    %v868 = vld [vmem:[#allocation3 + $0xf58] sm:$0xff]
    %v869 = vld [vmem:[#allocation3 + $0xf60] sm:$0xff]
    %v870 = vld [vmem:[#allocation3 + $0xf68] sm:$0xff]
    %v871 = vld [vmem:[#allocation3 + $0xf70] sm:$0xff]
    %v872 = vld [vmem:[#allocation3 + $0xf78] sm:$0xff]
    %v873 = vld [vmem:[#allocation3 + $0xf80] sm:$0xff]
    %v874 = vld [vmem:[#allocation3 + $0xf88] sm:$0xff]
    %v875 = vld [vmem:[#allocation3 + $0xf90] sm:$0xff]
    %v876 = vld [vmem:[#allocation3 + $0xf98] sm:$0xff]
    %v877 = vld [vmem:[#allocation3 + $0xfa0] sm:$0xff]
    %v878 = vld [vmem:[#allocation3 + $0xfa8] sm:$0xff]
    %v879 = vld [vmem:[#allocation3 + $0xfb0] sm:$0xff]
    %v880 = vld [vmem:[#allocation3 + $0xfb8] sm:$0xff]
    %v881 = vld [vmem:[#allocation3 + $0xfc0] sm:$0xff]
    %v882 = vld [vmem:[#allocation3 + $0xfc8] sm:$0xff]
    %v883 = vld [vmem:[#allocation3 + $0xfd0] sm:$0xff]
    %v884 = vld [vmem:[#allocation3 + $0xfd8] sm:$0xff]
    %v885 = vld [vmem:[#allocation3 + $0xfe0] sm:$0xff]
    %v886 = vld [vmem:[#allocation3 + $0xfe8] sm:$0xff]
    %v887 = vld [vmem:[#allocation3 + $0xff0] sm:$0xff]
    %v888 = vld [vmem:[#allocation3 + $0xff8] sm:$0xff]
    %v889 = vld [vmem:[#allocation3 + $0x1000] sm:$0xff]
    %v890 = vld [vmem:[#allocation3 + $0x1008] sm:$0xff]
    %v891 = vld [vmem:[#allocation3 + $0x1010] sm:$0xff]
    %v892 = vld [vmem:[#allocation3 + $0x1018] sm:$0xff]
    %v893 = vld [vmem:[#allocation3 + $0x1020] sm:$0xff]
    %v894 = vld [vmem:[#allocation3 + $0x1028] sm:$0xff]
    %v895 = vld [vmem:[#allocation3 + $0x1030] sm:$0xff]
    %v896 = vld [vmem:[#allocation3 + $0x1038] sm:$0xff]
    %v897 = vld [vmem:[#allocation3 + $0x1040] sm:$0xff]
    %v898 = vld [vmem:[#allocation3 + $0x1048] sm:$0xff]
    %v899 = vld [vmem:[#allocation3 + $0x1050] sm:$0xff]
    %v900 = vld [vmem:[#allocation3 + $0x1058] sm:$0xff]
    %v901 = vld [vmem:[#allocation3 + $0x1060] sm:$0xff]
    %v902 = vld [vmem:[#allocation3 + $0x1068] sm:$0xff]
    %v903 = vld [vmem:[#allocation3 + $0x1070] sm:$0xff]
    %v904 = vld [vmem:[#allocation3 + $0x1078] sm:$0xff]
    %v905 = vld [vmem:[#allocation3 + $0x1080] sm:$0xff]
    %v906 = vld [vmem:[#allocation3 + $0x1088] sm:$0xff]
    %v907 = vld [vmem:[#allocation3 + $0x1090] sm:$0xff]
    %v908 = vld [vmem:[#allocation3 + $0x1098] sm:$0xff]
    %v909 = vld [vmem:[#allocation3 + $0x10a0] sm:$0xff]
    %v910 = vld [vmem:[#allocation3 + $0x10a8] sm:$0xff]
    %v911 = vld [vmem:[#allocation3 + $0x10b0] sm:$0xff]
    %v912 = vld [vmem:[#allocation3 + $0x10b8] sm:$0xff]
    %v913 = vld [vmem:[#allocation3 + $0x10c0] sm:$0xff]
    %v914 = vld [vmem:[#allocation3 + $0x10c8] sm:$0xff]
    %v915 = vld [vmem:[#allocation3 + $0x10d0] sm:$0xff]
    %v916 = vld [vmem:[#allocation3 + $0x10d8] sm:$0xff]
    %v917 = vld [vmem:[#allocation3 + $0x10e0] sm:$0xff]
    %v918 = vld [vmem:[#allocation3 + $0x10e8] sm:$0xff]
    %v919 = vld [vmem:[#allocation3 + $0x10f0] sm:$0xff]
    %v920 = vld [vmem:[#allocation3 + $0x10f8] sm:$0xff]
    %v921 = vld [vmem:[#allocation3 + $0x1100] sm:$0xff]
    %v922 = vld [vmem:[#allocation3 + $0x1108] sm:$0xff]
    %v923 = vld [vmem:[#allocation3 + $0x1110] sm:$0xff]
    %v924 = vld [vmem:[#allocation3 + $0x1118] sm:$0xff]
    %v925 = vld [vmem:[#allocation3 + $0x1120] sm:$0xff]
    %v926 = vld [vmem:[#allocation3 + $0x1128] sm:$0xff]
    %v927 = vld [vmem:[#allocation3 + $0x1130] sm:$0xff]
    %v928 = vld [vmem:[#allocation3 + $0x1138] sm:$0xff]
    %v929 = vld [vmem:[#allocation3 + $0x1140] sm:$0xff]
    %v930 = vld [vmem:[#allocation3 + $0x1148] sm:$0xff]
    %v931 = vld [vmem:[#allocation3 + $0x1150] sm:$0xff]
    %v932 = vld [vmem:[#allocation3 + $0x1158] sm:$0xff]
    %v933 = vld [vmem:[#allocation3 + $0x1160] sm:$0xff]
    %v934 = vld [vmem:[#allocation3 + $0x1168] sm:$0xff]
    %v935 = vld [vmem:[#allocation3 + $0x1170] sm:$0xff]
    %v936 = vld [vmem:[#allocation3 + $0x1178] sm:$0xff]
    %v937 = vld [vmem:[#allocation3 + $0x1180] sm:$0xff]
    %v938 = vld [vmem:[#allocation3 + $0x1188] sm:$0xff]
    %v939 = vld [vmem:[#allocation3 + $0x1190] sm:$0xff]
    %v940 = vld [vmem:[#allocation3 + $0x1198] sm:$0xff]
    %v941 = vld [vmem:[#allocation3 + $0x11a0] sm:$0xff]
    %v942 = vld [vmem:[#allocation3 + $0x11a8] sm:$0xff]
    %v943 = vld [vmem:[#allocation3 + $0x11b0] sm:$0xff]
    %v944 = vld [vmem:[#allocation3 + $0x11b8] sm:$0xff]
    %v945 = vld [vmem:[#allocation3 + $0x11c0] sm:$0xff]
    %v946 = vld [vmem:[#allocation3 + $0x11c8] sm:$0xff]
    %v947 = vld [vmem:[#allocation3 + $0x11d0] sm:$0xff]
    %v948 = vld [vmem:[#allocation3 + $0x11d8] sm:$0xff]
    %v949 = vld [vmem:[#allocation3 + $0x11e0] sm:$0xff]
    %v950 = vld [vmem:[#allocation3 + $0x11e8] sm:$0xff]
    %v951 = vld [vmem:[#allocation3 + $0x11f0] sm:$0xff]
    %v952 = vld [vmem:[#allocation3 + $0x11f8] sm:$0xff]
    %v953 = vld [vmem:[#allocation3 + $0x1200] sm:$0xff]
    %v954 = vld [vmem:[#allocation3 + $0x1208] sm:$0xff]
    %v955 = vld [vmem:[#allocation3 + $0x1210] sm:$0xff]
    %v956 = vld [vmem:[#allocation3 + $0x1218] sm:$0xff]
    %v957 = vld [vmem:[#allocation3 + $0x1220] sm:$0xff]
    %v958 = vld [vmem:[#allocation3 + $0x1228] sm:$0xff]
    %v959 = vld [vmem:[#allocation3 + $0x1230] sm:$0xff]
    %v960 = vld [vmem:[#allocation3 + $0x1238] sm:$0xff]
    %v961 = vld [vmem:[#allocation3 + $0x1240] sm:$0xff]
    %v962 = vld [vmem:[#allocation3 + $0x1248] sm:$0xff]
    %v963 = vld [vmem:[#allocation3 + $0x1250] sm:$0xff]
    %v964 = vld [vmem:[#allocation3 + $0x1258] sm:$0xff]
    %v965 = vld [vmem:[#allocation3 + $0x1260] sm:$0xff]
    %v966 = vld [vmem:[#allocation3 + $0x1268] sm:$0xff]
    %v967 = vld [vmem:[#allocation3 + $0x1270] sm:$0xff]
    %v968 = vld [vmem:[#allocation3 + $0x1278] sm:$0xff]
    %v969 = vld [vmem:[#allocation3 + $0x1280] sm:$0xff]
    %v970 = vld [vmem:[#allocation3 + $0x1288] sm:$0xff]
    %v971 = vld [vmem:[#allocation3 + $0x1290] sm:$0xff]
    %v972 = vld [vmem:[#allocation3 + $0x1298] sm:$0xff]
    %v973 = vld [vmem:[#allocation3 + $0x12a0] sm:$0xff]
    %v974 = vld [vmem:[#allocation3 + $0x12a8] sm:$0xff]
    %v975 = vld [vmem:[#allocation3 + $0x12b0] sm:$0xff]
    %v976 = vld [vmem:[#allocation3 + $0x12b8] sm:$0xff]
    %v977 = vld [vmem:[#allocation3 + $0x12c0] sm:$0xff]
    %v978 = vld [vmem:[#allocation3 + $0x12c8] sm:$0xff]
    %v979 = vld [vmem:[#allocation3 + $0x12d0] sm:$0xff]
    %v980 = vld [vmem:[#allocation3 + $0x12d8] sm:$0xff]
    %v981 = vld [vmem:[#allocation3 + $0x12e0] sm:$0xff]
    %v982 = vld [vmem:[#allocation3 + $0x12e8] sm:$0xff]
    %v983 = vld [vmem:[#allocation3 + $0x12f0] sm:$0xff]
    %v984 = vld [vmem:[#allocation3 + $0x12f8] sm:$0xff]
    %v985 = vld [vmem:[#allocation3 + $0x1300] sm:$0xff]
    %v986 = vld [vmem:[#allocation3 + $0x1308] sm:$0xff]
    %v987 = vld [vmem:[#allocation3 + $0x1310] sm:$0xff]
    %v988 = vld [vmem:[#allocation3 + $0x1318] sm:$0xff]
    %v989 = vld [vmem:[#allocation3 + $0x1320] sm:$0xff]
    %v990 = vld [vmem:[#allocation3 + $0x1328] sm:$0xff]
    %v991 = vld [vmem:[#allocation3 + $0x1330] sm:$0xff]
    %v992 = vld [vmem:[#allocation3 + $0x1338] sm:$0xff]
    %v993 = vld [vmem:[#allocation3 + $0x1340] sm:$0xff]
    %v994 = vld [vmem:[#allocation3 + $0x1348] sm:$0xff]
    %v995 = vld [vmem:[#allocation3 + $0x1350] sm:$0xff]
    %v996 = vld [vmem:[#allocation3 + $0x1358] sm:$0xff]
    %v997 = vld [vmem:[#allocation3 + $0x1360] sm:$0xff]
    %v998 = vld [vmem:[#allocation3 + $0x1368] sm:$0xff]
    %v999 = vld [vmem:[#allocation3 + $0x1370] sm:$0xff]
    %v1000 = vld [vmem:[#allocation3 + $0x1378] sm:$0xff]
    %v1001 = vld [vmem:[#allocation3 + $0x1380] sm:$0xff]
    %v1002 = vld [vmem:[#allocation3 + $0x1388] sm:$0xff]
    %v1003 = vld [vmem:[#allocation3 + $0x1390] sm:$0xff]
    %v1004 = vld [vmem:[#allocation3 + $0x1398] sm:$0xff]
    %v1005 = vld [vmem:[#allocation3 + $0x13a0] sm:$0xff]
    %v1006 = vld [vmem:[#allocation3 + $0x13a8] sm:$0xff]
    %v1007 = vld [vmem:[#allocation3 + $0x13b0] sm:$0xff]
    %v1008 = vld [vmem:[#allocation3 + $0x13b8] sm:$0xff]
    %v1009 = vld [vmem:[#allocation3 + $0x13c0] sm:$0xff]
    %v1010 = vld [vmem:[#allocation3 + $0x13c8] sm:$0xff]
    %v1011 = vld [vmem:[#allocation3 + $0x13d0] sm:$0xff]
    %v1012 = vld [vmem:[#allocation3 + $0x13d8] sm:$0xff]
    %v1013 = vld [vmem:[#allocation3 + $0x13e0] sm:$0xff]
    %v1014 = vld [vmem:[#allocation3 + $0x13e8] sm:$0xff]
    %v1015 = vld [vmem:[#allocation3 + $0x13f0] sm:$0xff]
    %v1016 = vld [vmem:[#allocation3 + $0x13f8] sm:$0xff]
    %v1017 = vld [vmem:[#allocation3 + $0x1400] sm:$0xff]
    %v1018 = vld [vmem:[#allocation3 + $0x1408] sm:$0xff]
    %v1019 = vld [vmem:[#allocation3 + $0x1410] sm:$0xff]
    %v1020 = vld [vmem:[#allocation3 + $0x1418] sm:$0xff]
    %v1021 = vld [vmem:[#allocation3 + $0x1420] sm:$0xff]
    %v1022 = vld [vmem:[#allocation3 + $0x1428] sm:$0xff]
    %v1023 = vld [vmem:[#allocation3 + $0x1430] sm:$0xff]
    %v1024 = vld [vmem:[#allocation3 + $0x1438] sm:$0xff]
    %v1025 = vld [vmem:[#allocation3 + $0x1440] sm:$0xff]
    %v1026 = vld [vmem:[#allocation3 + $0x1448] sm:$0xff]
    %v1027 = vld [vmem:[#allocation3 + $0x1450] sm:$0xff]
    %v1028 = vld [vmem:[#allocation3 + $0x1458] sm:$0xff]
    %v1029 = vld [vmem:[#allocation3 + $0x1460] sm:$0xff]
    %v1030 = vld [vmem:[#allocation3 + $0x1468] sm:$0xff]
    %v1031 = vld [vmem:[#allocation3 + $0x1470] sm:$0xff]
    %v1032 = vld [vmem:[#allocation3 + $0x1478] sm:$0xff]
    %v1033 = vld [vmem:[#allocation3 + $0x1480] sm:$0xff]
    %v1034 = vld [vmem:[#allocation3 + $0x1488] sm:$0xff]
    %v1035 = vld [vmem:[#allocation3 + $0x1490] sm:$0xff]
    %v1036 = vld [vmem:[#allocation3 + $0x1498] sm:$0xff]
    %v1037 = vld [vmem:[#allocation3 + $0x14a0] sm:$0xff]
    %v1038 = vld [vmem:[#allocation3 + $0x14a8] sm:$0xff]
    %v1039 = vld [vmem:[#allocation3 + $0x14b0] sm:$0xff]
    %v1040 = vld [vmem:[#allocation3 + $0x14b8] sm:$0xff]
    %v1041 = vld [vmem:[#allocation3 + $0x14c0] sm:$0xff]
    %v1042 = vld [vmem:[#allocation3 + $0x14c8] sm:$0xff]
    %v1043 = vld [vmem:[#allocation3 + $0x14d0] sm:$0xff]
    %v1044 = vld [vmem:[#allocation3 + $0x14d8] sm:$0xff]
    %v1045 = vld [vmem:[#allocation3 + $0x14e0] sm:$0xff]
    %v1046 = vld [vmem:[#allocation3 + $0x14e8] sm:$0xff]
    %v1047 = vld [vmem:[#allocation3 + $0x14f0] sm:$0xff]
    %v1048 = vld [vmem:[#allocation3 + $0x14f8] sm:$0xff]
    %v1049 = vld [vmem:[#allocation3 + $0x1500] sm:$0xff]
    %v1050 = vld [vmem:[#allocation3 + $0x1508] sm:$0xff]
    %v1051 = vld [vmem:[#allocation3 + $0x1510] sm:$0xff]
    %v1052 = vld [vmem:[#allocation3 + $0x1518] sm:$0xff]
    %v1053 = vld [vmem:[#allocation3 + $0x1520] sm:$0xff]
    %v1054 = vld [vmem:[#allocation3 + $0x1528] sm:$0xff]
    %v1055 = vld [vmem:[#allocation3 + $0x1530] sm:$0xff]
    %v1056 = vld [vmem:[#allocation3 + $0x1538] sm:$0xff]
    %v1057 = vld [vmem:[#allocation3 + $0x1540] sm:$0xff]
    %v1058 = vld [vmem:[#allocation3 + $0x1548] sm:$0xff]
    %v1059 = vld [vmem:[#allocation3 + $0x1550] sm:$0xff]
    %v1060 = vld [vmem:[#allocation3 + $0x1558] sm:$0xff]
    %v1061 = vld [vmem:[#allocation3 + $0x1560] sm:$0xff]
    %v1062 = vld [vmem:[#allocation3 + $0x1568] sm:$0xff]
    %v1063 = vld [vmem:[#allocation3 + $0x1570] sm:$0xff]
    %v1064 = vld [vmem:[#allocation3 + $0x1578] sm:$0xff]
    %v1065 = vld [vmem:[#allocation3 + $0x1580] sm:$0xff]
    %v1066 = vld [vmem:[#allocation3 + $0x1588] sm:$0xff]
    %v1067 = vld [vmem:[#allocation3 + $0x1590] sm:$0xff]
    %v1068 = vld [vmem:[#allocation3 + $0x1598] sm:$0xff]
    %v1069 = vld [vmem:[#allocation3 + $0x15a0] sm:$0xff]
    %v1070 = vld [vmem:[#allocation3 + $0x15a8] sm:$0xff]
    %v1071 = vld [vmem:[#allocation3 + $0x15b0] sm:$0xff]
    %v1072 = vld [vmem:[#allocation3 + $0x15b8] sm:$0xff]
    %v1073 = vld [vmem:[#allocation3 + $0x15c0] sm:$0xff]
    %v1074 = vld [vmem:[#allocation3 + $0x15c8] sm:$0xff]
    %v1075 = vld [vmem:[#allocation3 + $0x15d0] sm:$0xff]
    %v1076 = vld [vmem:[#allocation3 + $0x15d8] sm:$0xff]
    %v1077 = vld [vmem:[#allocation3 + $0x15e0] sm:$0xff]
    %v1078 = vld [vmem:[#allocation3 + $0x15e8] sm:$0xff]
    %v1079 = vld [vmem:[#allocation3 + $0x15f0] sm:$0xff]
    %v1080 = vld [vmem:[#allocation3 + $0x15f8] sm:$0xff]
    %v1081 = vld [vmem:[#allocation3 + $0x1600] sm:$0xff]
    %v1082 = vld [vmem:[#allocation3 + $0x1608] sm:$0xff]
    %v1083 = vld [vmem:[#allocation3 + $0x1610] sm:$0xff]
    %v1084 = vld [vmem:[#allocation3 + $0x1618] sm:$0xff]
    %v1085 = vld [vmem:[#allocation3 + $0x1620] sm:$0xff]
    %v1086 = vld [vmem:[#allocation3 + $0x1628] sm:$0xff]
    %v1087 = vld [vmem:[#allocation3 + $0x1630] sm:$0xff]
    %v1088 = vld [vmem:[#allocation3 + $0x1638] sm:$0xff]
    %v1089 = vld [vmem:[#allocation3 + $0x1640] sm:$0xff]
    %v1090 = vld [vmem:[#allocation3 + $0x1648] sm:$0xff]
    %v1091 = vld [vmem:[#allocation3 + $0x1650] sm:$0xff]
    %v1092 = vld [vmem:[#allocation3 + $0x1658] sm:$0xff]
    %v1093 = vld [vmem:[#allocation3 + $0x1660] sm:$0xff]
    %v1094 = vld [vmem:[#allocation3 + $0x1668] sm:$0xff]
    %v1095 = vld [vmem:[#allocation3 + $0x1670] sm:$0xff]
    %v1096 = vld [vmem:[#allocation3 + $0x1678] sm:$0xff]
    %v1097 = vld [vmem:[#allocation3 + $0x1680] sm:$0xff]
    %v1098 = vld [vmem:[#allocation3 + $0x1688] sm:$0xff]
    %v1099 = vld [vmem:[#allocation3 + $0x1690] sm:$0xff]
    %v1100 = vld [vmem:[#allocation3 + $0x1698] sm:$0xff]
    %v1101 = vld [vmem:[#allocation3 + $0x16a0] sm:$0xff]
    %v1102 = vld [vmem:[#allocation3 + $0x16a8] sm:$0xff]
    %v1103 = vld [vmem:[#allocation3 + $0x16b0] sm:$0xff]
    %v1104 = vld [vmem:[#allocation3 + $0x16b8] sm:$0xff]
    %v1105 = vld [vmem:[#allocation3 + $0x16c0] sm:$0xff]
    %v1106 = vld [vmem:[#allocation3 + $0x16c8] sm:$0xff]
    %v1107 = vld [vmem:[#allocation3 + $0x16d0] sm:$0xff]
    %v1108 = vld [vmem:[#allocation3 + $0x16d8] sm:$0xff]
    %v1109 = vld [vmem:[#allocation3 + $0x16e0] sm:$0xff]
    %v1110 = vld [vmem:[#allocation3 + $0x16e8] sm:$0xff]
    %v1111 = vld [vmem:[#allocation3 + $0x16f0] sm:$0xff]
    %v1112 = vld [vmem:[#allocation3 + $0x16f8] sm:$0xff]
    %v1113 = vld [vmem:[#allocation3 + $0x1700] sm:$0xff]
    %v1114 = vld [vmem:[#allocation3 + $0x1708] sm:$0xff]
    %v1115 = vld [vmem:[#allocation3 + $0x1710] sm:$0xff]
    %v1116 = vld [vmem:[#allocation3 + $0x1718] sm:$0xff]
    %v1117 = vld [vmem:[#allocation3 + $0x1720] sm:$0xff]
    %v1118 = vld [vmem:[#allocation3 + $0x1728] sm:$0xff]
    %v1119 = vld [vmem:[#allocation3 + $0x1730] sm:$0xff]
    %v1120 = vld [vmem:[#allocation3 + $0x1738] sm:$0xff]
    %v1121 = vld [vmem:[#allocation3 + $0x1740] sm:$0xff]
    %v1122 = vld [vmem:[#allocation3 + $0x1748] sm:$0xff]
    %v1123 = vld [vmem:[#allocation3 + $0x1750] sm:$0xff]
    %v1124 = vld [vmem:[#allocation3 + $0x1758] sm:$0xff]
    %v1125 = vld [vmem:[#allocation3 + $0x1760] sm:$0xff]
    %v1126 = vld [vmem:[#allocation3 + $0x1768] sm:$0xff]
    %v1127 = vld [vmem:[#allocation3 + $0x1770] sm:$0xff]
    %v1128 = vld [vmem:[#allocation3 + $0x1778] sm:$0xff]
    %v1129 = vld [vmem:[#allocation3 + $0x1780] sm:$0xff]
    %v1130 = vld [vmem:[#allocation3 + $0x1788] sm:$0xff]
    %v1131 = vld [vmem:[#allocation3 + $0x1790] sm:$0xff]
    %v1132 = vld [vmem:[#allocation3 + $0x1798] sm:$0xff]
    %v1133 = vld [vmem:[#allocation3 + $0x17a0] sm:$0xff]
    %v1134 = vld [vmem:[#allocation3 + $0x17a8] sm:$0xff]
    %v1135 = vld [vmem:[#allocation3 + $0x17b0] sm:$0xff]
    %v1136 = vld [vmem:[#allocation3 + $0x17b8] sm:$0xff]
    %v1137 = vld [vmem:[#allocation3 + $0x17c0] sm:$0xff]
    %v1138 = vld [vmem:[#allocation3 + $0x17c8] sm:$0xff]
    %v1139 = vld [vmem:[#allocation3 + $0x17d0] sm:$0xff]
    %v1140 = vld [vmem:[#allocation3 + $0x17d8] sm:$0xff]
    %v1141 = vld [vmem:[#allocation3 + $0x17e0] sm:$0xff]
    %v1142 = vld [vmem:[#allocation3 + $0x17e8] sm:$0xff]
    %v1143 = vld [vmem:[#allocation3 + $0x17f0] sm:$0xff]
    %v1144 = vld [vmem:[#allocation3 + $0x17f8] sm:$0xff]
    %v1145 = vld [vmem:[#allocation3 + $0x1800] sm:$0xff]
    %v1146 = vld [vmem:[#allocation3 + $0x1808] sm:$0xff]
    %v1147 = vld [vmem:[#allocation3 + $0x1810] sm:$0xff]
    %v1148 = vld [vmem:[#allocation3 + $0x1818] sm:$0xff]
    %v1149 = vld [vmem:[#allocation3 + $0x1820] sm:$0xff]
    %v1150 = vld [vmem:[#allocation3 + $0x1828] sm:$0xff]
    %v1151 = vld [vmem:[#allocation3 + $0x1830] sm:$0xff]
    %v1152 = vld [vmem:[#allocation3 + $0x1838] sm:$0xff]
    %v1153 = vld [vmem:[#allocation3 + $0x1840] sm:$0xff]
    %v1154 = vld [vmem:[#allocation3 + $0x1848] sm:$0xff]
    %v1155 = vld [vmem:[#allocation3 + $0x1850] sm:$0xff]
    %v1156 = vld [vmem:[#allocation3 + $0x1858] sm:$0xff]
    %v1157 = vld [vmem:[#allocation3 + $0x1860] sm:$0xff]
    %v1158 = vld [vmem:[#allocation3 + $0x1868] sm:$0xff]
    %v1159 = vld [vmem:[#allocation3 + $0x1870] sm:$0xff]
    %v1160 = vld [vmem:[#allocation3 + $0x1878] sm:$0xff]
    %v1161 = vld [vmem:[#allocation3 + $0x1880] sm:$0xff]
    %v1162 = vld [vmem:[#allocation3 + $0x1888] sm:$0xff]
    %v1163 = vld [vmem:[#allocation3 + $0x1890] sm:$0xff]
    %v1164 = vld [vmem:[#allocation3 + $0x1898] sm:$0xff]
    %v1165 = vld [vmem:[#allocation3 + $0x18a0] sm:$0xff]
    %v1166 = vld [vmem:[#allocation3 + $0x18a8] sm:$0xff]
    %v1167 = vld [vmem:[#allocation3 + $0x18b0] sm:$0xff]
    %v1168 = vld [vmem:[#allocation3 + $0x18b8] sm:$0xff]
    %v1169 = vld [vmem:[#allocation3 + $0x18c0] sm:$0xff]
    %v1170 = vld [vmem:[#allocation3 + $0x18c8] sm:$0xff]
    %v1171 = vld [vmem:[#allocation3 + $0x18d0] sm:$0xff]
    %v1172 = vld [vmem:[#allocation3 + $0x18d8] sm:$0xff]
    %v1173 = vld [vmem:[#allocation3 + $0x18e0] sm:$0xff]
    %v1174 = vld [vmem:[#allocation3 + $0x18e8] sm:$0xff]
    %v1175 = vld [vmem:[#allocation3 + $0x18f0] sm:$0xff]
    %v1176 = vld [vmem:[#allocation3 + $0x18f8] sm:$0xff]
    %v1177 = vld [vmem:[#allocation3 + $0x1900] sm:$0xff]
    %v1178 = vld [vmem:[#allocation3 + $0x1908] sm:$0xff]
    %v1179 = vld [vmem:[#allocation3 + $0x1910] sm:$0xff]
    %v1180 = vld [vmem:[#allocation3 + $0x1918] sm:$0xff]
    %v1181 = vld [vmem:[#allocation3 + $0x1920] sm:$0xff]
    %v1182 = vld [vmem:[#allocation3 + $0x1928] sm:$0xff]
    %v1183 = vld [vmem:[#allocation3 + $0x1930] sm:$0xff]
    %v1184 = vld [vmem:[#allocation3 + $0x1938] sm:$0xff]
    %v1185 = vld [vmem:[#allocation3 + $0x1940] sm:$0xff]
    %v1186 = vld [vmem:[#allocation3 + $0x1948] sm:$0xff]
    %v1187 = vld [vmem:[#allocation3 + $0x1950] sm:$0xff]
    %v1188 = vld [vmem:[#allocation3 + $0x1958] sm:$0xff]
    %v1189 = vld [vmem:[#allocation3 + $0x1960] sm:$0xff]
    %v1190 = vld [vmem:[#allocation3 + $0x1968] sm:$0xff]
    %v1191 = vld [vmem:[#allocation3 + $0x1970] sm:$0xff]
    %v1192 = vld [vmem:[#allocation3 + $0x1978] sm:$0xff]
    %v1193 = vld [vmem:[#allocation3 + $0x1980] sm:$0xff]
    %v1194 = vld [vmem:[#allocation3 + $0x1988] sm:$0xff]
    %v1195 = vld [vmem:[#allocation3 + $0x1990] sm:$0xff]
    %v1196 = vld [vmem:[#allocation3 + $0x1998] sm:$0xff]
    %v1197 = vld [vmem:[#allocation3 + $0x19a0] sm:$0xff]
    %v1198 = vld [vmem:[#allocation3 + $0x19a8] sm:$0xff]
    %v1199 = vld [vmem:[#allocation3 + $0x19b0] sm:$0xff]
    %v1200 = vld [vmem:[#allocation3 + $0x19b8] sm:$0xff]
    %v1201 = vld [vmem:[#allocation3 + $0x19c0] sm:$0xff]
    %v1202 = vld [vmem:[#allocation3 + $0x19c8] sm:$0xff]
    %v1203 = vld [vmem:[#allocation3 + $0x19d0] sm:$0xff]
    %v1204 = vld [vmem:[#allocation3 + $0x19d8] sm:$0xff]
    %v1205 = vld [vmem:[#allocation3 + $0x19e0] sm:$0xff]
    %v1206 = vld [vmem:[#allocation3 + $0x19e8] sm:$0xff]
    %v1207 = vld [vmem:[#allocation3 + $0x19f0] sm:$0xff]
    %v1208 = vld [vmem:[#allocation3 + $0x19f8] sm:$0xff]
    %v1209 = vld [vmem:[#allocation3 + $0x1a00] sm:$0xff]
    %v1210 = vld [vmem:[#allocation3 + $0x1a08] sm:$0xff]
    %v1211 = vld [vmem:[#allocation3 + $0x1a10] sm:$0xff]
    %v1212 = vld [vmem:[#allocation3 + $0x1a18] sm:$0xff]
    %v1213 = vld [vmem:[#allocation3 + $0x1a20] sm:$0xff]
    %v1214 = vld [vmem:[#allocation3 + $0x1a28] sm:$0xff]
    %v1215 = vld [vmem:[#allocation3 + $0x1a30] sm:$0xff]
    %v1216 = vld [vmem:[#allocation3 + $0x1a38] sm:$0xff]
    %v1217 = vld [vmem:[#allocation3 + $0x1a40] sm:$0xff]
    %v1218 = vld [vmem:[#allocation3 + $0x1a48] sm:$0xff]
    %v1219 = vld [vmem:[#allocation3 + $0x1a50] sm:$0xff]
    %v1220 = vld [vmem:[#allocation3 + $0x1a58] sm:$0xff]
    %v1221 = vld [vmem:[#allocation3 + $0x1a60] sm:$0xff]
    %v1222 = vld [vmem:[#allocation3 + $0x1a68] sm:$0xff]
    %v1223 = vld [vmem:[#allocation3 + $0x1a70] sm:$0xff]
    %v1224 = vld [vmem:[#allocation3 + $0x1a78] sm:$0xff]
    %v1225 = vld [vmem:[#allocation3 + $0x1a80] sm:$0xff]
    %v1226 = vld [vmem:[#allocation3 + $0x1a88] sm:$0xff]
    %v1227 = vld [vmem:[#allocation3 + $0x1a90] sm:$0xff]
    %v1228 = vld [vmem:[#allocation3 + $0x1a98] sm:$0xff]
    %v1229 = vld [vmem:[#allocation3 + $0x1aa0] sm:$0xff]
    %v1230 = vld [vmem:[#allocation3 + $0x1aa8] sm:$0xff]
    %v1231 = vld [vmem:[#allocation3 + $0x1ab0] sm:$0xff]
    %v1232 = vld [vmem:[#allocation3 + $0x1ab8] sm:$0xff]
    %v1233 = vld [vmem:[#allocation3 + $0x1ac0] sm:$0xff]
    %v1234 = vld [vmem:[#allocation3 + $0x1ac8] sm:$0xff]
    %v1235 = vld [vmem:[#allocation3 + $0x1ad0] sm:$0xff]
    %v1236 = vld [vmem:[#allocation3 + $0x1ad8] sm:$0xff]
    %v1237 = vld [vmem:[#allocation3 + $0x1ae0] sm:$0xff]
    %v1238 = vld [vmem:[#allocation3 + $0x1ae8] sm:$0xff]
    %v1239 = vld [vmem:[#allocation3 + $0x1af0] sm:$0xff]
    %v1240 = vld [vmem:[#allocation3 + $0x1af8] sm:$0xff]
    %v1241 = vld [vmem:[#allocation3 + $0x1b00] sm:$0xff]
    %v1242 = vld [vmem:[#allocation3 + $0x1b08] sm:$0xff]
    %v1243 = vld [vmem:[#allocation3 + $0x1b10] sm:$0xff]
    %v1244 = vld [vmem:[#allocation3 + $0x1b18] sm:$0xff]
    %v1245 = vld [vmem:[#allocation3 + $0x1b20] sm:$0xff]
    %v1246 = vld [vmem:[#allocation3 + $0x1b28] sm:$0xff]
    %v1247 = vld [vmem:[#allocation3 + $0x1b30] sm:$0xff]
    %v1248 = vld [vmem:[#allocation3 + $0x1b38] sm:$0xff]
    %v1249 = vld [vmem:[#allocation3 + $0x1b40] sm:$0xff]
    %v1250 = vld [vmem:[#allocation3 + $0x1b48] sm:$0xff]
    %v1251 = vld [vmem:[#allocation3 + $0x1b50] sm:$0xff]
    %v1252 = vld [vmem:[#allocation3 + $0x1b58] sm:$0xff]
    %v1253 = vld [vmem:[#allocation3 + $0x1b60] sm:$0xff]
    %v1254 = vld [vmem:[#allocation3 + $0x1b68] sm:$0xff]
    %v1255 = vld [vmem:[#allocation3 + $0x1b70] sm:$0xff]
    %v1256 = vld [vmem:[#allocation3 + $0x1b78] sm:$0xff]
    %v1257 = vld [vmem:[#allocation3 + $0x1b80] sm:$0xff]
    %v1258 = vld [vmem:[#allocation3 + $0x1b88] sm:$0xff]
    %v1259 = vld [vmem:[#allocation3 + $0x1b90] sm:$0xff]
    %v1260 = vld [vmem:[#allocation3 + $0x1b98] sm:$0xff]
    %v1261 = vld [vmem:[#allocation3 + $0x1ba0] sm:$0xff]
    %v1262 = vld [vmem:[#allocation3 + $0x1ba8] sm:$0xff]
    %v1263 = vld [vmem:[#allocation3 + $0x1bb0] sm:$0xff]
    %v1264 = vld [vmem:[#allocation3 + $0x1bb8] sm:$0xff]
    %v1265 = vld [vmem:[#allocation3 + $0x1bc0] sm:$0xff]
    %v1266 = vld [vmem:[#allocation3 + $0x1bc8] sm:$0xff]
    %v1267 = vld [vmem:[#allocation3 + $0x1bd0] sm:$0xff]
    %v1268 = vld [vmem:[#allocation3 + $0x1bd8] sm:$0xff]
    %v1269 = vld [vmem:[#allocation3 + $0x1be0] sm:$0xff]
    %v1270 = vld [vmem:[#allocation3 + $0x1be8] sm:$0xff]
    %v1271 = vld [vmem:[#allocation3 + $0x1bf0] sm:$0xff]
    %v1272 = vld [vmem:[#allocation3 + $0x1bf8] sm:$0xff]
    %v1273 = vld [vmem:[#allocation3 + $0x1c00] sm:$0xff]
    %v1274 = vld [vmem:[#allocation3 + $0x1c08] sm:$0xff]
    %v1275 = vld [vmem:[#allocation3 + $0x1c10] sm:$0xff]
    %v1276 = vld [vmem:[#allocation3 + $0x1c18] sm:$0xff]
    %v1277 = vld [vmem:[#allocation3 + $0x1c20] sm:$0xff]
    %v1278 = vld [vmem:[#allocation3 + $0x1c28] sm:$0xff]
    %v1279 = vld [vmem:[#allocation3 + $0x1c30] sm:$0xff]
    %v1280 = vld [vmem:[#allocation3 + $0x1c38] sm:$0xff]
    %v1281 = vld [vmem:[#allocation3 + $0x1c40] sm:$0xff]
    %v1282 = vld [vmem:[#allocation3 + $0x1c48] sm:$0xff]
    %v1283 = vld [vmem:[#allocation3 + $0x1c50] sm:$0xff]
    %v1284 = vld [vmem:[#allocation3 + $0x1c58] sm:$0xff]
    %v1285 = vld [vmem:[#allocation3 + $0x1c60] sm:$0xff]
    %v1286 = vld [vmem:[#allocation3 + $0x1c68] sm:$0xff]
    %v1287 = vld [vmem:[#allocation3 + $0x1c70] sm:$0xff]
    %v1288 = vld [vmem:[#allocation3 + $0x1c78] sm:$0xff]
    %v1289 = vld [vmem:[#allocation3 + $0x1c80] sm:$0xff]
    %v1290 = vld [vmem:[#allocation3 + $0x1c88] sm:$0xff]
    %v1291 = vld [vmem:[#allocation3 + $0x1c90] sm:$0xff]
    %v1292 = vld [vmem:[#allocation3 + $0x1c98] sm:$0xff]
    %v1293 = vld [vmem:[#allocation3 + $0x1ca0] sm:$0xff]
    %v1294 = vld [vmem:[#allocation3 + $0x1ca8] sm:$0xff]
    %v1295 = vld [vmem:[#allocation3 + $0x1cb0] sm:$0xff]
    %v1296 = vld [vmem:[#allocation3 + $0x1cb8] sm:$0xff]
    %v1297 = vld [vmem:[#allocation3 + $0x1cc0] sm:$0xff]
    %v1298 = vld [vmem:[#allocation3 + $0x1cc8] sm:$0xff]
    %v1299 = vld [vmem:[#allocation3 + $0x1cd0] sm:$0xff]
    %v1300 = vld [vmem:[#allocation3 + $0x1cd8] sm:$0xff]
    %v1301 = vld [vmem:[#allocation3 + $0x1ce0] sm:$0xff]
    %v1302 = vld [vmem:[#allocation3 + $0x1ce8] sm:$0xff]
    %v1303 = vld [vmem:[#allocation3 + $0x1cf0] sm:$0xff]
    %v1304 = vld [vmem:[#allocation3 + $0x1cf8] sm:$0xff]
    %v1305 = vld [vmem:[#allocation3 + $0x1d00] sm:$0xff]
    %v1306 = vld [vmem:[#allocation3 + $0x1d08] sm:$0xff]
    %v1307 = vld [vmem:[#allocation3 + $0x1d10] sm:$0xff]
    %v1308 = vld [vmem:[#allocation3 + $0x1d18] sm:$0xff]
    %v1309 = vld [vmem:[#allocation3 + $0x1d20] sm:$0xff]
    %v1310 = vld [vmem:[#allocation3 + $0x1d28] sm:$0xff]
    %v1311 = vld [vmem:[#allocation3 + $0x1d30] sm:$0xff]
    %v1312 = vld [vmem:[#allocation3 + $0x1d38] sm:$0xff]
    %v1313 = vld [vmem:[#allocation3 + $0x1d40] sm:$0xff]
    %v1314 = vld [vmem:[#allocation3 + $0x1d48] sm:$0xff]
    %v1315 = vld [vmem:[#allocation3 + $0x1d50] sm:$0xff]
    %v1316 = vld [vmem:[#allocation3 + $0x1d58] sm:$0xff]
    %v1317 = vld [vmem:[#allocation3 + $0x1d60] sm:$0xff]
    %v1318 = vld [vmem:[#allocation3 + $0x1d68] sm:$0xff]
    %v1319 = vld [vmem:[#allocation3 + $0x1d70] sm:$0xff]
    %v1320 = vld [vmem:[#allocation3 + $0x1d78] sm:$0xff]
    %v1321 = vld [vmem:[#allocation3 + $0x1d80] sm:$0xff]
    %v1322 = vld [vmem:[#allocation3 + $0x1d88] sm:$0xff]
    %v1323 = vld [vmem:[#allocation3 + $0x1d90] sm:$0xff]
    %v1324 = vld [vmem:[#allocation3 + $0x1d98] sm:$0xff]
    %v1325 = vld [vmem:[#allocation3 + $0x1da0] sm:$0xff]
    %v1326 = vld [vmem:[#allocation3 + $0x1da8] sm:$0xff]
    %v1327 = vld [vmem:[#allocation3 + $0x1db0] sm:$0xff]
    %v1328 = vld [vmem:[#allocation3 + $0x1db8] sm:$0xff]
    %v1329 = vld [vmem:[#allocation3 + $0x1dc0] sm:$0xff]
    %v1330 = vld [vmem:[#allocation3 + $0x1dc8] sm:$0xff]
    %v1331 = vld [vmem:[#allocation3 + $0x1dd0] sm:$0xff]
    %v1332 = vld [vmem:[#allocation3 + $0x1dd8] sm:$0xff]
    %v1333 = vld [vmem:[#allocation3 + $0x1de0] sm:$0xff]
    %v1334 = vld [vmem:[#allocation3 + $0x1de8] sm:$0xff]
    %v1335 = vld [vmem:[#allocation3 + $0x1df0] sm:$0xff]
    %v1336 = vld [vmem:[#allocation3 + $0x1df8] sm:$0xff]
    %v1337 = vld [vmem:[#allocation3 + $0x1e00] sm:$0xff]
    %v1338 = vld [vmem:[#allocation3 + $0x1e08] sm:$0xff]
    %v1339 = vld [vmem:[#allocation3 + $0x1e10] sm:$0xff]
    %v1340 = vld [vmem:[#allocation3 + $0x1e18] sm:$0xff]
    %v1341 = vld [vmem:[#allocation3 + $0x1e20] sm:$0xff]
    %v1342 = vld [vmem:[#allocation3 + $0x1e28] sm:$0xff]
    %v1343 = vld [vmem:[#allocation3 + $0x1e30] sm:$0xff]
    %v1344 = vld [vmem:[#allocation3 + $0x1e38] sm:$0xff]
    %v1345 = vld [vmem:[#allocation3 + $0x1e40] sm:$0xff]
    %v1346 = vld [vmem:[#allocation3 + $0x1e48] sm:$0xff]
    %v1347 = vld [vmem:[#allocation3 + $0x1e50] sm:$0xff]
    %v1348 = vld [vmem:[#allocation3 + $0x1e58] sm:$0xff]
    %v1349 = vld [vmem:[#allocation3 + $0x1e60] sm:$0xff]
    %v1350 = vld [vmem:[#allocation3 + $0x1e68] sm:$0xff]
    %v1351 = vld [vmem:[#allocation3 + $0x1e70] sm:$0xff]
    %v1352 = vld [vmem:[#allocation3 + $0x1e78] sm:$0xff]
    %v1353 = vld [vmem:[#allocation3 + $0x1e80] sm:$0xff]
    %v1354 = vld [vmem:[#allocation3 + $0x1e88] sm:$0xff]
    %v1355 = vld [vmem:[#allocation3 + $0x1e90] sm:$0xff]
    %v1356 = vld [vmem:[#allocation3 + $0x1e98] sm:$0xff]
    %v1357 = vld [vmem:[#allocation3 + $0x1ea0] sm:$0xff]
    %v1358 = vld [vmem:[#allocation3 + $0x1ea8] sm:$0xff]
    %v1359 = vld [vmem:[#allocation3 + $0x1eb0] sm:$0xff]
    %v1360 = vld [vmem:[#allocation3 + $0x1eb8] sm:$0xff]
    %v1361 = vld [vmem:[#allocation3 + $0x1ec0] sm:$0xff]
    %v1362 = vld [vmem:[#allocation3 + $0x1ec8] sm:$0xff]
    %v1363 = vld [vmem:[#allocation3 + $0x1ed0] sm:$0xff]
    %v1364 = vld [vmem:[#allocation3 + $0x1ed8] sm:$0xff]
    %v1365 = vld [vmem:[#allocation3 + $0x1ee0] sm:$0xff]
    %v1366 = vld [vmem:[#allocation3 + $0x1ee8] sm:$0xff]
    %v1367 = vld [vmem:[#allocation3 + $0x1ef0] sm:$0xff]
    %v1368 = vld [vmem:[#allocation3 + $0x1ef8] sm:$0xff]
    %v1369 = vld [vmem:[#allocation3 + $0x1f00] sm:$0xff]
    %v1370 = vld [vmem:[#allocation3 + $0x1f08] sm:$0xff]
    %v1371 = vld [vmem:[#allocation3 + $0x1f10] sm:$0xff]
    %v1372 = vld [vmem:[#allocation3 + $0x1f18] sm:$0xff]
    %v1373 = vld [vmem:[#allocation3 + $0x1f20] sm:$0xff]
    %v1374 = vld [vmem:[#allocation3 + $0x1f28] sm:$0xff]
    %v1375 = vld [vmem:[#allocation3 + $0x1f30] sm:$0xff]
    %v1376 = vld [vmem:[#allocation3 + $0x1f38] sm:$0xff]
    %v1377 = vld [vmem:[#allocation3 + $0x1f40] sm:$0xff]
    %v1378 = vld [vmem:[#allocation3 + $0x1f48] sm:$0xff]
    %v1379 = vld [vmem:[#allocation3 + $0x1f50] sm:$0xff]
    %v1380 = vld [vmem:[#allocation3 + $0x1f58] sm:$0xff]
    %v1381 = vld [vmem:[#allocation3 + $0x1f60] sm:$0xff]
    %v1382 = vld [vmem:[#allocation3 + $0x1f68] sm:$0xff]
    %v1383 = vld [vmem:[#allocation3 + $0x1f70] sm:$0xff]
    %v1384 = vld [vmem:[#allocation3 + $0x1f78] sm:$0xff]
    %v1385 = vld [vmem:[#allocation3 + $0x1f80] sm:$0xff]
    %v1386 = vld [vmem:[#allocation3 + $0x1f88] sm:$0xff]
    %v1387 = vld [vmem:[#allocation3 + $0x1f90] sm:$0xff]
    %v1388 = vld [vmem:[#allocation3 + $0x1f98] sm:$0xff]
    %v1389 = vld [vmem:[#allocation3 + $0x1fa0] sm:$0xff]
    %v1390 = vld [vmem:[#allocation3 + $0x1fa8] sm:$0xff]
    %v1391 = vld [vmem:[#allocation3 + $0x1fb0] sm:$0xff]
    %v1392 = vld [vmem:[#allocation3 + $0x1fb8] sm:$0xff]
    %v1393 = vld [vmem:[#allocation3 + $0x1fc0] sm:$0xff]
    %v1394 = vld [vmem:[#allocation3 + $0x1fc8] sm:$0xff]
    %v1395 = vld [vmem:[#allocation3 + $0x1fd0] sm:$0xff]
    %v1396 = vld [vmem:[#allocation3 + $0x1fd8] sm:$0xff]
    %v1397 = vld [vmem:[#allocation3 + $0x1fe0] sm:$0xff]
    %v1398 = vld [vmem:[#allocation3 + $0x1fe8] sm:$0xff]
    %v1399 = vld [vmem:[#allocation3 + $0x1ff0] sm:$0xff]
    %v1400 = vld [vmem:[#allocation3 + $0x1ff8] sm:$0xff]
    %v1401 = vld [vmem:[#allocation5] sm:$0xf]
    %v1403 = vlaneseq
    %v1404 = vshrl.u32 %v1403, 7
    %v1405 = vsub.s32 0, %v1404
    %v1406 = vrot.slane %v1401, %v1405
    %v1407 = vlaneseq
    %v1408 = vshrl.u32 %v1407, 7
    %v1409 = vsub.s32 1, %v1408
    %v1410 = vrot.slane %v1401, %v1409
    %v1411 = vlaneseq
    %v1412 = vshrl.u32 %v1411, 7
    %v1413 = vsub.s32 2, %v1412
    %v1414 = vrot.slane %v1401, %v1413
    %v1415 = vlaneseq
    %v1416 = vshrl.u32 %v1415, 7
    %v1417 = vsub.s32 3, %v1416
    %v1418 = vrot.slane %v1401, %v1417
    %1423 = vmatprep.subr.mxu0 %v438
    %1424 = vmatpush1.msra.mxu0 %v437
    %1425 = vmatprep.subr.mxu0 %v434
    %1426 = vmatpush1.msra.mxu0 %v433
    %1427 = vmatprep.subr.mxu0 %v430
    %1428 = vmatpush1.msra.mxu0 %v429
    %1429 = vmatprep.subr.mxu0 %v426
    %1430 = vmatpush1.msra.mxu0 %v425
    %1431 = vmatprep.subr.mxu0 %v422
    %1432 = vmatpush1.msra.mxu0 %v421
    %1433 = vmatprep.subr.mxu0 %v418
    %1434 = vmatpush1.msra.mxu0 %v417
    %1435 = vmatprep.subr.mxu0 %v414
    %1436 = vmatpush1.msra.mxu0 %v413
    %1437 = vmatprep.subr.mxu0 %v410
    %1438 = vmatpush1.msra.mxu0 %v409
    %1439 = vmatprep.subr.mxu0 %v406
    %1440 = vmatpush1.msra.mxu0 %v405
    %1441 = vmatprep.subr.mxu0 %v402
    %1442 = vmatpush1.msra.mxu0 %v401
    %1443 = vmatprep.subr.mxu0 %v398
    %1444 = vmatpush1.msra.mxu0 %v397
    %1445 = vmatprep.subr.mxu0 %v394
    %1446 = vmatpush1.msra.mxu0 %v393
    %1447 = vmatprep.subr.mxu0 %v390
    %1448 = vmatpush1.msra.mxu0 %v389
    %1449 = vmatprep.subr.mxu0 %v386
    %1450 = vmatpush1.msra.mxu0 %v385
    %1451 = vmatprep.subr.mxu0 %v382
    %1452 = vmatpush1.msra.mxu0 %v381
    %1453 = vmatprep.subr.mxu0 %v378
    %1454 = vmatpush1.msra.mxu0 %v377
    %1455 = vmatprep.subr.mxu0 %v502
    %1456 = vmatpush2.msra.mxu0 %v501
    %1457 = vmatprep.subr.mxu0 %v498
    %1458 = vmatpush2.msra.mxu0 %v497
    %1459 = vmatprep.subr.mxu0 %v494
    %1460 = vmatpush2.msra.mxu0 %v493
    %1461 = vmatprep.subr.mxu0 %v490
    %1462 = vmatpush2.msra.mxu0 %v489
    %1463 = vmatprep.subr.mxu0 %v486
    %1464 = vmatpush2.msra.mxu0 %v485
    %1465 = vmatprep.subr.mxu0 %v482
    %1466 = vmatpush2.msra.mxu0 %v481
    %1467 = vmatprep.subr.mxu0 %v478
    %1468 = vmatpush2.msra.mxu0 %v477
    %1469 = vmatprep.subr.mxu0 %v474
    %1470 = vmatpush2.msra.mxu0 %v473
    %1471 = vmatprep.subr.mxu0 %v470
    %1472 = vmatpush2.msra.mxu0 %v469
    %1473 = vmatprep.subr.mxu0 %v466
    %1474 = vmatpush2.msra.mxu0 %v465
    %1475 = vmatprep.subr.mxu0 %v462
    %1476 = vmatpush2.msra.mxu0 %v461
    %1477 = vmatprep.subr.mxu0 %v458
    %1478 = vmatpush2.msra.mxu0 %v457
    %1479 = vmatprep.subr.mxu0 %v454
    %1480 = vmatpush2.msra.mxu0 %v453
    %1481 = vmatprep.subr.mxu0 %v450
    %1482 = vmatpush2.msra.mxu0 %v449
    %1483 = vmatprep.subr.mxu0 %v446
    %1484 = vmatpush2.msra.mxu0 %v445
    %1485 = vmatprep.subr.mxu0 %v442
    %1486 = vmatpush2.msra.mxu0 %v441
    %1487 = vmatprep.mubr.f32.mxu0 %v122
    %1488 = vmatmul.mubr.f32.gmra.mxu0 %v121
    %v1489 = vpop.f32.mrf.mxu0
    %v1490 = vadd.f32 %v1406, %v1489
    %v1491 = vpop.f32.mrf.mxu0
    %v1492 = vadd.f32 %v1410, %v1491
    %1493 = vmatprep.mubr.f32.mxu0 %v138
    %1494 = vmatmul.mubr.f32.gmra.mxu0 %v137
    %v1495 = vpop.f32.mrf.mxu0
    %v1496 = vadd.f32 %v1406, %v1495
    %v1497 = vpop.f32.mrf.mxu0
    %v1498 = vadd.f32 %v1410, %v1497
    %1499 = vmatprep.mubr.f32.mxu0 %v154
    %1500 = vmatmul.mubr.f32.gmra.mxu0 %v153
    %v1501 = vpop.f32.mrf.mxu0
    %v1502 = vadd.f32 %v1406, %v1501
    %v1503 = vpop.f32.mrf.mxu0
    %v1504 = vadd.f32 %v1410, %v1503
    %1505 = vmatprep.mubr.f32.mxu0 %v170
    %1506 = vmatmul.mubr.f32.gmra.mxu0 %v169
    %v1507 = vpop.f32.mrf.mxu0
    %v1508 = vadd.f32 %v1406, %v1507
    %v1509 = vpop.f32.mrf.mxu0
    %v1510 = vadd.f32 %v1410, %v1509
    %1511 = vmatprep.mubr.f32.mxu0 %v186
    %1512 = vmatmul.mubr.f32.gmra.mxu0 %v185
    %v1513 = vpop.f32.mrf.mxu0
    %v1514 = vadd.f32 %v1406, %v1513
    %v1515 = vpop.f32.mrf.mxu0
    %v1516 = vadd.f32 %v1410, %v1515
    %1517 = vmatprep.mubr.f32.mxu0 %v202
    %1518 = vmatmul.mubr.f32.gmra.mxu0 %v201
    %v1519 = vpop.f32.mrf.mxu0
    %v1520 = vadd.f32 %v1406, %v1519
    %v1521 = vpop.f32.mrf.mxu0
    %v1522 = vadd.f32 %v1410, %v1521
    %1523 = vmatprep.mubr.f32.mxu0 %v218
    %1524 = vmatmul.mubr.f32.gmra.mxu0 %v217
    %v1525 = vpop.f32.mrf.mxu0
    %v1526 = vadd.f32 %v1406, %v1525
    %v1527 = vpop.f32.mrf.mxu0
    %v1528 = vadd.f32 %v1410, %v1527
    %1529 = vmatprep.mubr.f32.mxu0 %v234
    %1530 = vmatmul.mubr.f32.gmra.mxu0 %v233
    %v1531 = vpop.f32.mrf.mxu0
    %v1532 = vadd.f32 %v1406, %v1531
    %v1533 = vpop.f32.mrf.mxu0
    %v1534 = vadd.f32 %v1410, %v1533
    %1535 = vmatprep.mubr.f32.mxu0 %v250
    %1536 = vmatmul.mubr.f32.gmra.mxu0 %v249
    %v1537 = vpop.f32.mrf.mxu0
    %v1538 = vadd.f32 %v1406, %v1537
    %v1539 = vpop.f32.mrf.mxu0
    %v1540 = vadd.f32 %v1410, %v1539
    %1541 = vmatprep.mubr.f32.mxu0 %v266
    %1542 = vmatmul.mubr.f32.gmra.mxu0 %v265
    %v1543 = vpop.f32.mrf.mxu0
    %v1544 = vadd.f32 %v1406, %v1543
    %v1545 = vpop.f32.mrf.mxu0
    %v1546 = vadd.f32 %v1410, %v1545
    %1547 = vmatprep.mubr.f32.mxu0 %v282
    %1548 = vmatmul.mubr.f32.gmra.mxu0 %v281
    %v1549 = vpop.f32.mrf.mxu0
    %v1550 = vadd.f32 %v1406, %v1549
    %v1551 = vpop.f32.mrf.mxu0
    %v1552 = vadd.f32 %v1410, %v1551
    %1553 = vmatprep.mubr.f32.mxu0 %v298
    %1554 = vmatmul.mubr.f32.gmra.mxu0 %v297
    %v1555 = vpop.f32.mrf.mxu0
    %v1556 = vadd.f32 %v1406, %v1555
    %v1557 = vpop.f32.mrf.mxu0
    %v1558 = vadd.f32 %v1410, %v1557
    %1559 = vmatprep.mubr.f32.mxu0 %v314
    %1560 = vmatmul.mubr.f32.gmra.mxu0 %v313
    %v1561 = vpop.f32.mrf.mxu0
    %v1562 = vadd.f32 %v1406, %v1561
    %v1563 = vpop.f32.mrf.mxu0
    %v1564 = vadd.f32 %v1410, %v1563
    %1565 = vmatprep.mubr.f32.mxu0 %v330
    %1566 = vmatmul.mubr.f32.gmra.mxu0 %v329
    %v1567 = vpop.f32.mrf.mxu0
    %v1568 = vadd.f32 %v1406, %v1567
    %v1569 = vpop.f32.mrf.mxu0
    %v1570 = vadd.f32 %v1410, %v1569
    %1571 = vmatprep.mubr.f32.mxu0 %v346
    %1572 = vmatmul.mubr.f32.gmra.mxu0 %v345
    %v1573 = vpop.f32.mrf.mxu0
    %v1574 = vadd.f32 %v1406, %v1573
    %v1575 = vpop.f32.mrf.mxu0
    %v1576 = vadd.f32 %v1410, %v1575
    %1577 = vmatprep.mubr.f32.mxu0 %v362
    %1578 = vmatmul.mubr.f32.gmra.mxu0 %v361
    %v1579 = vpop.f32.mrf.mxu0
    %v1580 = vadd.f32 %v1406, %v1579
    %v1581 = vpop.f32.mrf.mxu0
    %v1582 = vadd.f32 %v1410, %v1581
    %1583 = vdwg.mxu0
    %1584 = vmatprep.subr.mxu0 %v566
    %1585 = vmatpush1.msra.mxu0 %v565
    %1586 = vmatprep.subr.mxu0 %v562
    %1587 = vmatpush1.msra.mxu0 %v561
    %1588 = vmatprep.subr.mxu0 %v558
    %1589 = vmatpush1.msra.mxu0 %v557
    %1590 = vmatprep.subr.mxu0 %v554
    %1591 = vmatpush1.msra.mxu0 %v553
    %1592 = vmatprep.subr.mxu0 %v550
    %1593 = vmatpush1.msra.mxu0 %v549
    %1594 = vmatprep.subr.mxu0 %v546
    %1595 = vmatpush1.msra.mxu0 %v545
    %1596 = vmatprep.subr.mxu0 %v542
    %1597 = vmatpush1.msra.mxu0 %v541
    %1598 = vmatprep.subr.mxu0 %v538
    %1599 = vmatpush1.msra.mxu0 %v537
    %1600 = vmatprep.subr.mxu0 %v534
    %1601 = vmatpush1.msra.mxu0 %v533
    %1602 = vmatprep.subr.mxu0 %v530
    %1603 = vmatpush1.msra.mxu0 %v529
    %1604 = vmatprep.subr.mxu0 %v526
    %1605 = vmatpush1.msra.mxu0 %v525
    %1606 = vmatprep.subr.mxu0 %v522
    %1607 = vmatpush1.msra.mxu0 %v521
    %1608 = vmatprep.subr.mxu0 %v518
    %1609 = vmatpush1.msra.mxu0 %v517
    %1610 = vmatprep.subr.mxu0 %v514
    %1611 = vmatpush1.msra.mxu0 %v513
    %1612 = vmatprep.subr.mxu0 %v510
    %1613 = vmatpush1.msra.mxu0 %v509
    %1614 = vmatprep.subr.mxu0 %v506
    %1615 = vmatpush1.msra.mxu0 %v505
    %1616 = vmatprep.subr.mxu0 %v630
    %1617 = vmatpush2.msra.mxu0 %v629
    %1618 = vmatprep.subr.mxu0 %v626
    %1619 = vmatpush2.msra.mxu0 %v625
    %1620 = vmatprep.subr.mxu0 %v622
    %1621 = vmatpush2.msra.mxu0 %v621
    %1622 = vmatprep.subr.mxu0 %v618
    %1623 = vmatpush2.msra.mxu0 %v617
    %1624 = vmatprep.subr.mxu0 %v614
    %1625 = vmatpush2.msra.mxu0 %v613
    %1626 = vmatprep.subr.mxu0 %v610
    %1627 = vmatpush2.msra.mxu0 %v609
    %1628 = vmatprep.subr.mxu0 %v606
    %1629 = vmatpush2.msra.mxu0 %v605
    %1630 = vmatprep.subr.mxu0 %v602
    %1631 = vmatpush2.msra.mxu0 %v601
    %1632 = vmatprep.subr.mxu0 %v598
    %1633 = vmatpush2.msra.mxu0 %v597
    %1634 = vmatprep.subr.mxu0 %v594
    %1635 = vmatpush2.msra.mxu0 %v593
    %1636 = vmatprep.subr.mxu0 %v590
    %1637 = vmatpush2.msra.mxu0 %v589
    %1638 = vmatprep.subr.mxu0 %v586
    %1639 = vmatpush2.msra.mxu0 %v585
    %1640 = vmatprep.subr.mxu0 %v582
    %1641 = vmatpush2.msra.mxu0 %v581
    %1642 = vmatprep.subr.mxu0 %v578
    %1643 = vmatpush2.msra.mxu0 %v577
    %1644 = vmatprep.subr.mxu0 %v574
    %1645 = vmatpush2.msra.mxu0 %v573
    %1646 = vmatprep.subr.mxu0 %v570
    %1647 = vmatpush2.msra.mxu0 %v569
    %1648 = vmatprep.mubr.f32.mxu0 %v124
    %1649 = vmatmul.mubr.f32.gmra.mxu0 %v123
    %v1650 = vpop.f32.mrf.mxu0
    %v1651 = vadd.f32 %v1490, %v1650
    %v1652 = vpop.f32.mrf.mxu0
    %v1653 = vadd.f32 %v1492, %v1652
    %1654 = vmatprep.mubr.f32.mxu0 %v140
    %1655 = vmatmul.mubr.f32.gmra.mxu0 %v139
    %v1656 = vpop.f32.mrf.mxu0
    %v1657 = vadd.f32 %v1496, %v1656
    %v1658 = vpop.f32.mrf.mxu0
    %v1659 = vadd.f32 %v1498, %v1658
    %1660 = vmatprep.mubr.f32.mxu0 %v156
    %1661 = vmatmul.mubr.f32.gmra.mxu0 %v155
    %v1662 = vpop.f32.mrf.mxu0
    %v1663 = vadd.f32 %v1502, %v1662
    %v1664 = vpop.f32.mrf.mxu0
    %v1665 = vadd.f32 %v1504, %v1664
    %1666 = vmatprep.mubr.f32.mxu0 %v172
    %1667 = vmatmul.mubr.f32.gmra.mxu0 %v171
    %v1668 = vpop.f32.mrf.mxu0
    %v1669 = vadd.f32 %v1508, %v1668
    %v1670 = vpop.f32.mrf.mxu0
    %v1671 = vadd.f32 %v1510, %v1670
    %1672 = vmatprep.mubr.f32.mxu0 %v188
    %1673 = vmatmul.mubr.f32.gmra.mxu0 %v187
    %v1674 = vpop.f32.mrf.mxu0
    %v1675 = vadd.f32 %v1514, %v1674
    %v1676 = vpop.f32.mrf.mxu0
    %v1677 = vadd.f32 %v1516, %v1676
    %1678 = vmatprep.mubr.f32.mxu0 %v204
    %1679 = vmatmul.mubr.f32.gmra.mxu0 %v203
    %v1680 = vpop.f32.mrf.mxu0
    %v1681 = vadd.f32 %v1520, %v1680
    %v1682 = vpop.f32.mrf.mxu0
    %v1683 = vadd.f32 %v1522, %v1682
    %1684 = vmatprep.mubr.f32.mxu0 %v220
    %1685 = vmatmul.mubr.f32.gmra.mxu0 %v219
    %v1686 = vpop.f32.mrf.mxu0
    %v1687 = vadd.f32 %v1526, %v1686
    %v1688 = vpop.f32.mrf.mxu0
    %v1689 = vadd.f32 %v1528, %v1688
    %1690 = vmatprep.mubr.f32.mxu0 %v236
    %1691 = vmatmul.mubr.f32.gmra.mxu0 %v235
    %v1692 = vpop.f32.mrf.mxu0
    %v1693 = vadd.f32 %v1532, %v1692
    %v1694 = vpop.f32.mrf.mxu0
    %v1695 = vadd.f32 %v1534, %v1694
    %1696 = vmatprep.mubr.f32.mxu0 %v252
    %1697 = vmatmul.mubr.f32.gmra.mxu0 %v251
    %v1698 = vpop.f32.mrf.mxu0
    %v1699 = vadd.f32 %v1538, %v1698
    %v1700 = vpop.f32.mrf.mxu0
    %v1701 = vadd.f32 %v1540, %v1700
    %1702 = vmatprep.mubr.f32.mxu0 %v268
    %1703 = vmatmul.mubr.f32.gmra.mxu0 %v267
    %v1704 = vpop.f32.mrf.mxu0
    %v1705 = vadd.f32 %v1544, %v1704
    %v1706 = vpop.f32.mrf.mxu0
    %v1707 = vadd.f32 %v1546, %v1706
    %1708 = vmatprep.mubr.f32.mxu0 %v284
    %1709 = vmatmul.mubr.f32.gmra.mxu0 %v283
    %v1710 = vpop.f32.mrf.mxu0
    %v1711 = vadd.f32 %v1550, %v1710
    %v1712 = vpop.f32.mrf.mxu0
    %v1713 = vadd.f32 %v1552, %v1712
    %1714 = vmatprep.mubr.f32.mxu0 %v300
    %1715 = vmatmul.mubr.f32.gmra.mxu0 %v299
    %v1716 = vpop.f32.mrf.mxu0
    %v1717 = vadd.f32 %v1556, %v1716
    %v1718 = vpop.f32.mrf.mxu0
    %v1719 = vadd.f32 %v1558, %v1718
    %1720 = vmatprep.mubr.f32.mxu0 %v316
    %1721 = vmatmul.mubr.f32.gmra.mxu0 %v315
    %v1722 = vpop.f32.mrf.mxu0
    %v1723 = vadd.f32 %v1562, %v1722
    %v1724 = vpop.f32.mrf.mxu0
    %v1725 = vadd.f32 %v1564, %v1724
    %1726 = vmatprep.mubr.f32.mxu0 %v332
    %1727 = vmatmul.mubr.f32.gmra.mxu0 %v331
    %v1728 = vpop.f32.mrf.mxu0
    %v1729 = vadd.f32 %v1568, %v1728
    %v1730 = vpop.f32.mrf.mxu0
    %v1731 = vadd.f32 %v1570, %v1730
    %1732 = vmatprep.mubr.f32.mxu0 %v348
    %1733 = vmatmul.mubr.f32.gmra.mxu0 %v347
    %v1734 = vpop.f32.mrf.mxu0
    %v1735 = vadd.f32 %v1574, %v1734
    %v1736 = vpop.f32.mrf.mxu0
    %v1737 = vadd.f32 %v1576, %v1736
    %1738 = vmatprep.mubr.f32.mxu0 %v364
    %1739 = vmatmul.mubr.f32.gmra.mxu0 %v363
    %v1740 = vpop.f32.mrf.mxu0
    %v1741 = vadd.f32 %v1580, %v1740
    %v1742 = vpop.f32.mrf.mxu0
    %v1743 = vadd.f32 %v1582, %v1742
    %1744 = vdwg.mxu0
    %1745 = vmatprep.subr.mxu0 %v694
    %1746 = vmatpush1.msra.mxu0 %v693
    %1747 = vmatprep.subr.mxu0 %v690
    %1748 = vmatpush1.msra.mxu0 %v689
    %1749 = vmatprep.subr.mxu0 %v686
    %1750 = vmatpush1.msra.mxu0 %v685
    %1751 = vmatprep.subr.mxu0 %v682
    %1752 = vmatpush1.msra.mxu0 %v681
    %1753 = vmatprep.subr.mxu0 %v678
    %1754 = vmatpush1.msra.mxu0 %v677
    %1755 = vmatprep.subr.mxu0 %v674
    %1756 = vmatpush1.msra.mxu0 %v673
    %1757 = vmatprep.subr.mxu0 %v670
    %1758 = vmatpush1.msra.mxu0 %v669
    %1759 = vmatprep.subr.mxu0 %v666
    %1760 = vmatpush1.msra.mxu0 %v665
    %1761 = vmatprep.subr.mxu0 %v662
    %1762 = vmatpush1.msra.mxu0 %v661
    %1763 = vmatprep.subr.mxu0 %v658
    %1764 = vmatpush1.msra.mxu0 %v657
    %1765 = vmatprep.subr.mxu0 %v654
    %1766 = vmatpush1.msra.mxu0 %v653
    %1767 = vmatprep.subr.mxu0 %v650
    %1768 = vmatpush1.msra.mxu0 %v649
    %1769 = vmatprep.subr.mxu0 %v646
    %1770 = vmatpush1.msra.mxu0 %v645
    %1771 = vmatprep.subr.mxu0 %v642
    %1772 = vmatpush1.msra.mxu0 %v641
    %1773 = vmatprep.subr.mxu0 %v638
    %1774 = vmatpush1.msra.mxu0 %v637
    %1775 = vmatprep.subr.mxu0 %v634
    %1776 = vmatpush1.msra.mxu0 %v633
    %1777 = vmatprep.subr.mxu0 %v758
    %1778 = vmatpush2.msra.mxu0 %v757
    %1779 = vmatprep.subr.mxu0 %v754
    %1780 = vmatpush2.msra.mxu0 %v753
    %1781 = vmatprep.subr.mxu0 %v750
    %1782 = vmatpush2.msra.mxu0 %v749
    %1783 = vmatprep.subr.mxu0 %v746
    %1784 = vmatpush2.msra.mxu0 %v745
    %1785 = vmatprep.subr.mxu0 %v742
    %1786 = vmatpush2.msra.mxu0 %v741
    %1787 = vmatprep.subr.mxu0 %v738
    %1788 = vmatpush2.msra.mxu0 %v737
    %1789 = vmatprep.subr.mxu0 %v734
    %1790 = vmatpush2.msra.mxu0 %v733
    %1791 = vmatprep.subr.mxu0 %v730
    %1792 = vmatpush2.msra.mxu0 %v729
    %1793 = vmatprep.subr.mxu0 %v726
    %1794 = vmatpush2.msra.mxu0 %v725
    %1795 = vmatprep.subr.mxu0 %v722
    %1796 = vmatpush2.msra.mxu0 %v721
    %1797 = vmatprep.subr.mxu0 %v718
    %1798 = vmatpush2.msra.mxu0 %v717
    %1799 = vmatprep.subr.mxu0 %v714
    %1800 = vmatpush2.msra.mxu0 %v713
    %1801 = vmatprep.subr.mxu0 %v710
    %1802 = vmatpush2.msra.mxu0 %v709
    %1803 = vmatprep.subr.mxu0 %v706
    %1804 = vmatpush2.msra.mxu0 %v705
    %1805 = vmatprep.subr.mxu0 %v702
    %1806 = vmatpush2.msra.mxu0 %v701
    %1807 = vmatprep.subr.mxu0 %v698
    %1808 = vmatpush2.msra.mxu0 %v697
    %1809 = vmatprep.mubr.f32.mxu0 %v126
    %1810 = vmatmul.mubr.f32.gmra.mxu0 %v125
    %v1811 = vpop.f32.mrf.mxu0
    %v1812 = vadd.f32 %v1651, %v1811
    %v1813 = vpop.f32.mrf.mxu0
    %v1814 = vadd.f32 %v1653, %v1813
    %1815 = vmatprep.mubr.f32.mxu0 %v142
    %1816 = vmatmul.mubr.f32.gmra.mxu0 %v141
    %v1817 = vpop.f32.mrf.mxu0
    %v1818 = vadd.f32 %v1657, %v1817
    %v1819 = vpop.f32.mrf.mxu0
    %v1820 = vadd.f32 %v1659, %v1819
    %1821 = vmatprep.mubr.f32.mxu0 %v158
    %1822 = vmatmul.mubr.f32.gmra.mxu0 %v157
    %v1823 = vpop.f32.mrf.mxu0
    %v1824 = vadd.f32 %v1663, %v1823
    %v1825 = vpop.f32.mrf.mxu0
    %v1826 = vadd.f32 %v1665, %v1825
    %1827 = vmatprep.mubr.f32.mxu0 %v174
    %1828 = vmatmul.mubr.f32.gmra.mxu0 %v173
    %v1829 = vpop.f32.mrf.mxu0
    %v1830 = vadd.f32 %v1669, %v1829
    %v1831 = vpop.f32.mrf.mxu0
    %v1832 = vadd.f32 %v1671, %v1831
    %1833 = vmatprep.mubr.f32.mxu0 %v190
    %1834 = vmatmul.mubr.f32.gmra.mxu0 %v189
    %v1835 = vpop.f32.mrf.mxu0
    %v1836 = vadd.f32 %v1675, %v1835
    %v1837 = vpop.f32.mrf.mxu0
    %v1838 = vadd.f32 %v1677, %v1837
    %1839 = vmatprep.mubr.f32.mxu0 %v206
    %1840 = vmatmul.mubr.f32.gmra.mxu0 %v205
    %v1841 = vpop.f32.mrf.mxu0
    %v1842 = vadd.f32 %v1681, %v1841
    %v1843 = vpop.f32.mrf.mxu0
    %v1844 = vadd.f32 %v1683, %v1843
    %1845 = vmatprep.mubr.f32.mxu0 %v222
    %1846 = vmatmul.mubr.f32.gmra.mxu0 %v221
    %v1847 = vpop.f32.mrf.mxu0
    %v1848 = vadd.f32 %v1687, %v1847
    %v1849 = vpop.f32.mrf.mxu0
    %v1850 = vadd.f32 %v1689, %v1849
    %1851 = vmatprep.mubr.f32.mxu0 %v238
    %1852 = vmatmul.mubr.f32.gmra.mxu0 %v237
    %v1853 = vpop.f32.mrf.mxu0
    %v1854 = vadd.f32 %v1693, %v1853
    %v1855 = vpop.f32.mrf.mxu0
    %v1856 = vadd.f32 %v1695, %v1855
    %1857 = vmatprep.mubr.f32.mxu0 %v254
    %1858 = vmatmul.mubr.f32.gmra.mxu0 %v253
    %v1859 = vpop.f32.mrf.mxu0
    %v1860 = vadd.f32 %v1699, %v1859
    %v1861 = vpop.f32.mrf.mxu0
    %v1862 = vadd.f32 %v1701, %v1861
    %1863 = vmatprep.mubr.f32.mxu0 %v270
    %1864 = vmatmul.mubr.f32.gmra.mxu0 %v269
    %v1865 = vpop.f32.mrf.mxu0
    %v1866 = vadd.f32 %v1705, %v1865
    %v1867 = vpop.f32.mrf.mxu0
    %v1868 = vadd.f32 %v1707, %v1867
    %1869 = vmatprep.mubr.f32.mxu0 %v286
    %1870 = vmatmul.mubr.f32.gmra.mxu0 %v285
    %v1871 = vpop.f32.mrf.mxu0
    %v1872 = vadd.f32 %v1711, %v1871
    %v1873 = vpop.f32.mrf.mxu0
    %v1874 = vadd.f32 %v1713, %v1873
    %1875 = vmatprep.mubr.f32.mxu0 %v302
    %1876 = vmatmul.mubr.f32.gmra.mxu0 %v301
    %v1877 = vpop.f32.mrf.mxu0
    %v1878 = vadd.f32 %v1717, %v1877
    %v1879 = vpop.f32.mrf.mxu0
    %v1880 = vadd.f32 %v1719, %v1879
    %1881 = vmatprep.mubr.f32.mxu0 %v318
    %1882 = vmatmul.mubr.f32.gmra.mxu0 %v317
    %v1883 = vpop.f32.mrf.mxu0
    %v1884 = vadd.f32 %v1723, %v1883
    %v1885 = vpop.f32.mrf.mxu0
    %v1886 = vadd.f32 %v1725, %v1885
    %1887 = vmatprep.mubr.f32.mxu0 %v334
    %1888 = vmatmul.mubr.f32.gmra.mxu0 %v333
    %v1889 = vpop.f32.mrf.mxu0
    %v1890 = vadd.f32 %v1729, %v1889
    %v1891 = vpop.f32.mrf.mxu0
    %v1892 = vadd.f32 %v1731, %v1891
    %1893 = vmatprep.mubr.f32.mxu0 %v350
    %1894 = vmatmul.mubr.f32.gmra.mxu0 %v349
    %v1895 = vpop.f32.mrf.mxu0
    %v1896 = vadd.f32 %v1735, %v1895
    %v1897 = vpop.f32.mrf.mxu0
    %v1898 = vadd.f32 %v1737, %v1897
    %1899 = vmatprep.mubr.f32.mxu0 %v366
    %1900 = vmatmul.mubr.f32.gmra.mxu0 %v365
    %v1901 = vpop.f32.mrf.mxu0
    %v1902 = vadd.f32 %v1741, %v1901
    %v1903 = vpop.f32.mrf.mxu0
    %v1904 = vadd.f32 %v1743, %v1903
    %1905 = vdwg.mxu0
    %1906 = vmatprep.subr.mxu0 %v822
    %1907 = vmatpush1.msra.mxu0 %v821
    %1908 = vmatprep.subr.mxu0 %v818
    %1909 = vmatpush1.msra.mxu0 %v817
    %1910 = vmatprep.subr.mxu0 %v814
    %1911 = vmatpush1.msra.mxu0 %v813
    %1912 = vmatprep.subr.mxu0 %v810
    %1913 = vmatpush1.msra.mxu0 %v809
    %1914 = vmatprep.subr.mxu0 %v806
    %1915 = vmatpush1.msra.mxu0 %v805
    %1916 = vmatprep.subr.mxu0 %v802
    %1917 = vmatpush1.msra.mxu0 %v801
    %1918 = vmatprep.subr.mxu0 %v798
    %1919 = vmatpush1.msra.mxu0 %v797
    %1920 = vmatprep.subr.mxu0 %v794
    %1921 = vmatpush1.msra.mxu0 %v793
    %1922 = vmatprep.subr.mxu0 %v790
    %1923 = vmatpush1.msra.mxu0 %v789
    %1924 = vmatprep.subr.mxu0 %v786
    %1925 = vmatpush1.msra.mxu0 %v785
    %1926 = vmatprep.subr.mxu0 %v782
    %1927 = vmatpush1.msra.mxu0 %v781
    %1928 = vmatprep.subr.mxu0 %v778
    %1929 = vmatpush1.msra.mxu0 %v777
    %1930 = vmatprep.subr.mxu0 %v774
    %1931 = vmatpush1.msra.mxu0 %v773
    %1932 = vmatprep.subr.mxu0 %v770
    %1933 = vmatpush1.msra.mxu0 %v769
    %1934 = vmatprep.subr.mxu0 %v766
    %1935 = vmatpush1.msra.mxu0 %v765
    %1936 = vmatprep.subr.mxu0 %v762
    %1937 = vmatpush1.msra.mxu0 %v761
    %1938 = vmatprep.subr.mxu0 %v886
    %1939 = vmatpush2.msra.mxu0 %v885
    %1940 = vmatprep.subr.mxu0 %v882
    %1941 = vmatpush2.msra.mxu0 %v881
    %1942 = vmatprep.subr.mxu0 %v878
    %1943 = vmatpush2.msra.mxu0 %v877
    %1944 = vmatprep.subr.mxu0 %v874
    %1945 = vmatpush2.msra.mxu0 %v873
    %1946 = vmatprep.subr.mxu0 %v870
    %1947 = vmatpush2.msra.mxu0 %v869
    %1948 = vmatprep.subr.mxu0 %v866
    %1949 = vmatpush2.msra.mxu0 %v865
    %1950 = vmatprep.subr.mxu0 %v862
    %1951 = vmatpush2.msra.mxu0 %v861
    %1952 = vmatprep.subr.mxu0 %v858
    %1953 = vmatpush2.msra.mxu0 %v857
    %1954 = vmatprep.subr.mxu0 %v854
    %1955 = vmatpush2.msra.mxu0 %v853
    %1956 = vmatprep.subr.mxu0 %v850
    %1957 = vmatpush2.msra.mxu0 %v849
    %1958 = vmatprep.subr.mxu0 %v846
    %1959 = vmatpush2.msra.mxu0 %v845
    %1960 = vmatprep.subr.mxu0 %v842
    %1961 = vmatpush2.msra.mxu0 %v841
    %1962 = vmatprep.subr.mxu0 %v838
    %1963 = vmatpush2.msra.mxu0 %v837
    %1964 = vmatprep.subr.mxu0 %v834
    %1965 = vmatpush2.msra.mxu0 %v833
    %1966 = vmatprep.subr.mxu0 %v830
    %1967 = vmatpush2.msra.mxu0 %v829
    %1968 = vmatprep.subr.mxu0 %v826
    %1969 = vmatpush2.msra.mxu0 %v825
    %1970 = vmatprep.mubr.f32.mxu0 %v128
    %1971 = vmatmul.mubr.f32.gmra.mxu0 %v127
    %v1972 = vpop.f32.mrf.mxu0
    %v1973 = vadd.f32 %v1812, %v1972
    %v1974 = vpop.f32.mrf.mxu0
    %v1975 = vadd.f32 %v1814, %v1974
    %1976 = vmatprep.mubr.f32.mxu0 %v144
    %1977 = vmatmul.mubr.f32.gmra.mxu0 %v143
    %v1978 = vpop.f32.mrf.mxu0
    %v1979 = vadd.f32 %v1818, %v1978
    %v1980 = vpop.f32.mrf.mxu0
    %v1981 = vadd.f32 %v1820, %v1980
    %1982 = vmatprep.mubr.f32.mxu0 %v160
    %1983 = vmatmul.mubr.f32.gmra.mxu0 %v159
    %v1984 = vpop.f32.mrf.mxu0
    %v1985 = vadd.f32 %v1824, %v1984
    %v1986 = vpop.f32.mrf.mxu0
    %v1987 = vadd.f32 %v1826, %v1986
    %1988 = vmatprep.mubr.f32.mxu0 %v176
    %1989 = vmatmul.mubr.f32.gmra.mxu0 %v175
    %v1990 = vpop.f32.mrf.mxu0
    %v1991 = vadd.f32 %v1830, %v1990
    %v1992 = vpop.f32.mrf.mxu0
    %v1993 = vadd.f32 %v1832, %v1992
    %1994 = vmatprep.mubr.f32.mxu0 %v192
    %1995 = vmatmul.mubr.f32.gmra.mxu0 %v191
    %v1996 = vpop.f32.mrf.mxu0
    %v1997 = vadd.f32 %v1836, %v1996
    %v1998 = vpop.f32.mrf.mxu0
    %v1999 = vadd.f32 %v1838, %v1998
    %2000 = vmatprep.mubr.f32.mxu0 %v208
    %2001 = vmatmul.mubr.f32.gmra.mxu0 %v207
    %v2002 = vpop.f32.mrf.mxu0
    %v2003 = vadd.f32 %v1842, %v2002
    %v2004 = vpop.f32.mrf.mxu0
    %v2005 = vadd.f32 %v1844, %v2004
    %2006 = vmatprep.mubr.f32.mxu0 %v224
    %2007 = vmatmul.mubr.f32.gmra.mxu0 %v223
    %v2008 = vpop.f32.mrf.mxu0
    %v2009 = vadd.f32 %v1848, %v2008
    %v2010 = vpop.f32.mrf.mxu0
    %v2011 = vadd.f32 %v1850, %v2010
    %2012 = vmatprep.mubr.f32.mxu0 %v240
    %2013 = vmatmul.mubr.f32.gmra.mxu0 %v239
    %v2014 = vpop.f32.mrf.mxu0
    %v2015 = vadd.f32 %v1854, %v2014
    %v2016 = vpop.f32.mrf.mxu0
    %v2017 = vadd.f32 %v1856, %v2016
    %2018 = vmatprep.mubr.f32.mxu0 %v256
    %2019 = vmatmul.mubr.f32.gmra.mxu0 %v255
    %v2020 = vpop.f32.mrf.mxu0
    %v2021 = vadd.f32 %v1860, %v2020
    %v2022 = vpop.f32.mrf.mxu0
    %v2023 = vadd.f32 %v1862, %v2022
    %2024 = vmatprep.mubr.f32.mxu0 %v272
    %2025 = vmatmul.mubr.f32.gmra.mxu0 %v271
    %v2026 = vpop.f32.mrf.mxu0
    %v2027 = vadd.f32 %v1866, %v2026
    %v2028 = vpop.f32.mrf.mxu0
    %v2029 = vadd.f32 %v1868, %v2028
    %2030 = vmatprep.mubr.f32.mxu0 %v288
    %2031 = vmatmul.mubr.f32.gmra.mxu0 %v287
    %v2032 = vpop.f32.mrf.mxu0
    %v2033 = vadd.f32 %v1872, %v2032
    %v2034 = vpop.f32.mrf.mxu0
    %v2035 = vadd.f32 %v1874, %v2034
    %2036 = vmatprep.mubr.f32.mxu0 %v304
    %2037 = vmatmul.mubr.f32.gmra.mxu0 %v303
    %v2038 = vpop.f32.mrf.mxu0
    %v2039 = vadd.f32 %v1878, %v2038
    %v2040 = vpop.f32.mrf.mxu0
    %v2041 = vadd.f32 %v1880, %v2040
    %2042 = vmatprep.mubr.f32.mxu0 %v320
    %2043 = vmatmul.mubr.f32.gmra.mxu0 %v319
    %v2044 = vpop.f32.mrf.mxu0
    %v2045 = vadd.f32 %v1884, %v2044
    %v2046 = vpop.f32.mrf.mxu0
    %v2047 = vadd.f32 %v1886, %v2046
    %2048 = vmatprep.mubr.f32.mxu0 %v336
    %2049 = vmatmul.mubr.f32.gmra.mxu0 %v335
    %v2050 = vpop.f32.mrf.mxu0
    %v2051 = vadd.f32 %v1890, %v2050
    %v2052 = vpop.f32.mrf.mxu0
    %v2053 = vadd.f32 %v1892, %v2052
    %2054 = vmatprep.mubr.f32.mxu0 %v352
    %2055 = vmatmul.mubr.f32.gmra.mxu0 %v351
    %v2056 = vpop.f32.mrf.mxu0
    %v2057 = vadd.f32 %v1896, %v2056
    %v2058 = vpop.f32.mrf.mxu0
    %v2059 = vadd.f32 %v1898, %v2058
    %2060 = vmatprep.mubr.f32.mxu0 %v368
    %2061 = vmatmul.mubr.f32.gmra.mxu0 %v367
    %v2062 = vpop.f32.mrf.mxu0
    %v2063 = vadd.f32 %v1902, %v2062
    %v2064 = vpop.f32.mrf.mxu0
    %v2065 = vadd.f32 %v1904, %v2064
    %2066 = vdwg.mxu0
    %2067 = vmatprep.subr.mxu0 %v950
    %2068 = vmatpush1.msra.mxu0 %v949
    %2069 = vmatprep.subr.mxu0 %v946
    %2070 = vmatpush1.msra.mxu0 %v945
    %2071 = vmatprep.subr.mxu0 %v942
    %2072 = vmatpush1.msra.mxu0 %v941
    %2073 = vmatprep.subr.mxu0 %v938
    %2074 = vmatpush1.msra.mxu0 %v937
    %2075 = vmatprep.subr.mxu0 %v934
    %2076 = vmatpush1.msra.mxu0 %v933
    %2077 = vmatprep.subr.mxu0 %v930
    %2078 = vmatpush1.msra.mxu0 %v929
    %2079 = vmatprep.subr.mxu0 %v926
    %2080 = vmatpush1.msra.mxu0 %v925
    %2081 = vmatprep.subr.mxu0 %v922
    %2082 = vmatpush1.msra.mxu0 %v921
    %2083 = vmatprep.subr.mxu0 %v918
    %2084 = vmatpush1.msra.mxu0 %v917
    %2085 = vmatprep.subr.mxu0 %v914
    %2086 = vmatpush1.msra.mxu0 %v913
    %2087 = vmatprep.subr.mxu0 %v910
    %2088 = vmatpush1.msra.mxu0 %v909
    %2089 = vmatprep.subr.mxu0 %v906
    %2090 = vmatpush1.msra.mxu0 %v905
    %2091 = vmatprep.subr.mxu0 %v902
    %2092 = vmatpush1.msra.mxu0 %v901
    %2093 = vmatprep.subr.mxu0 %v898
    %2094 = vmatpush1.msra.mxu0 %v897
    %2095 = vmatprep.subr.mxu0 %v894
    %2096 = vmatpush1.msra.mxu0 %v893
    %2097 = vmatprep.subr.mxu0 %v890
    %2098 = vmatpush1.msra.mxu0 %v889
    %2099 = vmatprep.subr.mxu0 %v1014
    %2100 = vmatpush2.msra.mxu0 %v1013
    %2101 = vmatprep.subr.mxu0 %v1010
    %2102 = vmatpush2.msra.mxu0 %v1009
    %2103 = vmatprep.subr.mxu0 %v1006
    %2104 = vmatpush2.msra.mxu0 %v1005
    %2105 = vmatprep.subr.mxu0 %v1002
    %2106 = vmatpush2.msra.mxu0 %v1001
    %2107 = vmatprep.subr.mxu0 %v998
    %2108 = vmatpush2.msra.mxu0 %v997
    %2109 = vmatprep.subr.mxu0 %v994
    %2110 = vmatpush2.msra.mxu0 %v993
    %2111 = vmatprep.subr.mxu0 %v990
    %2112 = vmatpush2.msra.mxu0 %v989
    %2113 = vmatprep.subr.mxu0 %v986
    %2114 = vmatpush2.msra.mxu0 %v985
    %2115 = vmatprep.subr.mxu0 %v982
    %2116 = vmatpush2.msra.mxu0 %v981
    %2117 = vmatprep.subr.mxu0 %v978
    %2118 = vmatpush2.msra.mxu0 %v977
    %2119 = vmatprep.subr.mxu0 %v974
    %2120 = vmatpush2.msra.mxu0 %v973
    %2121 = vmatprep.subr.mxu0 %v970
    %2122 = vmatpush2.msra.mxu0 %v969
    %2123 = vmatprep.subr.mxu0 %v966
    %2124 = vmatpush2.msra.mxu0 %v965
    %2125 = vmatprep.subr.mxu0 %v962
    %2126 = vmatpush2.msra.mxu0 %v961
    %2127 = vmatprep.subr.mxu0 %v958
    %2128 = vmatpush2.msra.mxu0 %v957
    %2129 = vmatprep.subr.mxu0 %v954
    %2130 = vmatpush2.msra.mxu0 %v953
    %2131 = vmatprep.mubr.f32.mxu0 %v130
    %2132 = vmatmul.mubr.f32.gmra.mxu0 %v129
    %v2133 = vpop.f32.mrf.mxu0
    %v2134 = vadd.f32 %v1973, %v2133
    %v2135 = vpop.f32.mrf.mxu0
    %v2136 = vadd.f32 %v1975, %v2135
    %2137 = vmatprep.mubr.f32.mxu0 %v146
    %2138 = vmatmul.mubr.f32.gmra.mxu0 %v145
    %v2139 = vpop.f32.mrf.mxu0
    %v2140 = vadd.f32 %v1979, %v2139
    %v2141 = vpop.f32.mrf.mxu0
    %v2142 = vadd.f32 %v1981, %v2141
    %2143 = vmatprep.mubr.f32.mxu0 %v162
    %2144 = vmatmul.mubr.f32.gmra.mxu0 %v161
    %v2145 = vpop.f32.mrf.mxu0
    %v2146 = vadd.f32 %v1985, %v2145
    %v2147 = vpop.f32.mrf.mxu0
    %v2148 = vadd.f32 %v1987, %v2147
    %2149 = vmatprep.mubr.f32.mxu0 %v178
    %2150 = vmatmul.mubr.f32.gmra.mxu0 %v177
    %v2151 = vpop.f32.mrf.mxu0
    %v2152 = vadd.f32 %v1991, %v2151
    %v2153 = vpop.f32.mrf.mxu0
    %v2154 = vadd.f32 %v1993, %v2153
    %2155 = vmatprep.mubr.f32.mxu0 %v194
    %2156 = vmatmul.mubr.f32.gmra.mxu0 %v193
    %v2157 = vpop.f32.mrf.mxu0
    %v2158 = vadd.f32 %v1997, %v2157
    %v2159 = vpop.f32.mrf.mxu0
    %v2160 = vadd.f32 %v1999, %v2159
    %2161 = vmatprep.mubr.f32.mxu0 %v210
    %2162 = vmatmul.mubr.f32.gmra.mxu0 %v209
    %v2163 = vpop.f32.mrf.mxu0
    %v2164 = vadd.f32 %v2003, %v2163
    %v2165 = vpop.f32.mrf.mxu0
    %v2166 = vadd.f32 %v2005, %v2165
    %2167 = vmatprep.mubr.f32.mxu0 %v226
    %2168 = vmatmul.mubr.f32.gmra.mxu0 %v225
    %v2169 = vpop.f32.mrf.mxu0
    %v2170 = vadd.f32 %v2009, %v2169
    %v2171 = vpop.f32.mrf.mxu0
    %v2172 = vadd.f32 %v2011, %v2171
    %2173 = vmatprep.mubr.f32.mxu0 %v242
    %2174 = vmatmul.mubr.f32.gmra.mxu0 %v241
    %v2175 = vpop.f32.mrf.mxu0
    %v2176 = vadd.f32 %v2015, %v2175
    %v2177 = vpop.f32.mrf.mxu0
    %v2178 = vadd.f32 %v2017, %v2177
    %2179 = vmatprep.mubr.f32.mxu0 %v258
    %2180 = vmatmul.mubr.f32.gmra.mxu0 %v257
    %v2181 = vpop.f32.mrf.mxu0
    %v2182 = vadd.f32 %v2021, %v2181
    %v2183 = vpop.f32.mrf.mxu0
    %v2184 = vadd.f32 %v2023, %v2183
    %2185 = vmatprep.mubr.f32.mxu0 %v274
    %2186 = vmatmul.mubr.f32.gmra.mxu0 %v273
    %v2187 = vpop.f32.mrf.mxu0
    %v2188 = vadd.f32 %v2027, %v2187
    %v2189 = vpop.f32.mrf.mxu0
    %v2190 = vadd.f32 %v2029, %v2189
    %2191 = vmatprep.mubr.f32.mxu0 %v290
    %2192 = vmatmul.mubr.f32.gmra.mxu0 %v289
    %v2193 = vpop.f32.mrf.mxu0
    %v2194 = vadd.f32 %v2033, %v2193
    %v2195 = vpop.f32.mrf.mxu0
    %v2196 = vadd.f32 %v2035, %v2195
    %2197 = vmatprep.mubr.f32.mxu0 %v306
    %2198 = vmatmul.mubr.f32.gmra.mxu0 %v305
    %v2199 = vpop.f32.mrf.mxu0
    %v2200 = vadd.f32 %v2039, %v2199
    %v2201 = vpop.f32.mrf.mxu0
    %v2202 = vadd.f32 %v2041, %v2201
    %2203 = vmatprep.mubr.f32.mxu0 %v322
    %2204 = vmatmul.mubr.f32.gmra.mxu0 %v321
    %v2205 = vpop.f32.mrf.mxu0
    %v2206 = vadd.f32 %v2045, %v2205
    %v2207 = vpop.f32.mrf.mxu0
    %v2208 = vadd.f32 %v2047, %v2207
    %2209 = vmatprep.mubr.f32.mxu0 %v338
    %2210 = vmatmul.mubr.f32.gmra.mxu0 %v337
    %v2211 = vpop.f32.mrf.mxu0
    %v2212 = vadd.f32 %v2051, %v2211
    %v2213 = vpop.f32.mrf.mxu0
    %v2214 = vadd.f32 %v2053, %v2213
    %2215 = vmatprep.mubr.f32.mxu0 %v354
    %2216 = vmatmul.mubr.f32.gmra.mxu0 %v353
    %v2217 = vpop.f32.mrf.mxu0
    %v2218 = vadd.f32 %v2057, %v2217
    %v2219 = vpop.f32.mrf.mxu0
    %v2220 = vadd.f32 %v2059, %v2219
    %2221 = vmatprep.mubr.f32.mxu0 %v370
    %2222 = vmatmul.mubr.f32.gmra.mxu0 %v369
    %v2223 = vpop.f32.mrf.mxu0
    %v2224 = vadd.f32 %v2063, %v2223
    %v2225 = vpop.f32.mrf.mxu0
    %v2226 = vadd.f32 %v2065, %v2225
    %2227 = vdwg.mxu0
    %2228 = vmatprep.subr.mxu0 %v1078
    %2229 = vmatpush1.msra.mxu0 %v1077
    %2230 = vmatprep.subr.mxu0 %v1074
    %2231 = vmatpush1.msra.mxu0 %v1073
    %2232 = vmatprep.subr.mxu0 %v1070
    %2233 = vmatpush1.msra.mxu0 %v1069
    %2234 = vmatprep.subr.mxu0 %v1066
    %2235 = vmatpush1.msra.mxu0 %v1065
    %2236 = vmatprep.subr.mxu0 %v1062
    %2237 = vmatpush1.msra.mxu0 %v1061
    %2238 = vmatprep.subr.mxu0 %v1058
    %2239 = vmatpush1.msra.mxu0 %v1057
    %2240 = vmatprep.subr.mxu0 %v1054
    %2241 = vmatpush1.msra.mxu0 %v1053
    %2242 = vmatprep.subr.mxu0 %v1050
    %2243 = vmatpush1.msra.mxu0 %v1049
    %2244 = vmatprep.subr.mxu0 %v1046
    %2245 = vmatpush1.msra.mxu0 %v1045
    %2246 = vmatprep.subr.mxu0 %v1042
    %2247 = vmatpush1.msra.mxu0 %v1041
    %2248 = vmatprep.subr.mxu0 %v1038
    %2249 = vmatpush1.msra.mxu0 %v1037
    %2250 = vmatprep.subr.mxu0 %v1034
    %2251 = vmatpush1.msra.mxu0 %v1033
    %2252 = vmatprep.subr.mxu0 %v1030
    %2253 = vmatpush1.msra.mxu0 %v1029
    %2254 = vmatprep.subr.mxu0 %v1026
    %2255 = vmatpush1.msra.mxu0 %v1025
    %2256 = vmatprep.subr.mxu0 %v1022
    %2257 = vmatpush1.msra.mxu0 %v1021
    %2258 = vmatprep.subr.mxu0 %v1018
    %2259 = vmatpush1.msra.mxu0 %v1017
    %2260 = vmatprep.subr.mxu0 %v1142
    %2261 = vmatpush2.msra.mxu0 %v1141
    %2262 = vmatprep.subr.mxu0 %v1138
    %2263 = vmatpush2.msra.mxu0 %v1137
    %2264 = vmatprep.subr.mxu0 %v1134
    %2265 = vmatpush2.msra.mxu0 %v1133
    %2266 = vmatprep.subr.mxu0 %v1130
    %2267 = vmatpush2.msra.mxu0 %v1129
    %2268 = vmatprep.subr.mxu0 %v1126
    %2269 = vmatpush2.msra.mxu0 %v1125
    %2270 = vmatprep.subr.mxu0 %v1122
    %2271 = vmatpush2.msra.mxu0 %v1121
    %2272 = vmatprep.subr.mxu0 %v1118
    %2273 = vmatpush2.msra.mxu0 %v1117
    %2274 = vmatprep.subr.mxu0 %v1114
    %2275 = vmatpush2.msra.mxu0 %v1113
    %2276 = vmatprep.subr.mxu0 %v1110
    %2277 = vmatpush2.msra.mxu0 %v1109
    %2278 = vmatprep.subr.mxu0 %v1106
    %2279 = vmatpush2.msra.mxu0 %v1105
    %2280 = vmatprep.subr.mxu0 %v1102
    %2281 = vmatpush2.msra.mxu0 %v1101
    %2282 = vmatprep.subr.mxu0 %v1098
    %2283 = vmatpush2.msra.mxu0 %v1097
    %2284 = vmatprep.subr.mxu0 %v1094
    %2285 = vmatpush2.msra.mxu0 %v1093
    %2286 = vmatprep.subr.mxu0 %v1090
    %2287 = vmatpush2.msra.mxu0 %v1089
    %2288 = vmatprep.subr.mxu0 %v1086
    %2289 = vmatpush2.msra.mxu0 %v1085
    %2290 = vmatprep.subr.mxu0 %v1082
    %2291 = vmatpush2.msra.mxu0 %v1081
    %2292 = vmatprep.mubr.f32.mxu0 %v132
    %2293 = vmatmul.mubr.f32.gmra.mxu0 %v131
    %v2294 = vpop.f32.mrf.mxu0
    %v2295 = vadd.f32 %v2134, %v2294
    %v2296 = vpop.f32.mrf.mxu0
    %v2297 = vadd.f32 %v2136, %v2296
    %2298 = vmatprep.mubr.f32.mxu0 %v148
    %2299 = vmatmul.mubr.f32.gmra.mxu0 %v147
    %v2300 = vpop.f32.mrf.mxu0
    %v2301 = vadd.f32 %v2140, %v2300
    %v2302 = vpop.f32.mrf.mxu0
    %v2303 = vadd.f32 %v2142, %v2302
    %2304 = vmatprep.mubr.f32.mxu0 %v164
    %2305 = vmatmul.mubr.f32.gmra.mxu0 %v163
    %v2306 = vpop.f32.mrf.mxu0
    %v2307 = vadd.f32 %v2146, %v2306
    %v2308 = vpop.f32.mrf.mxu0
    %v2309 = vadd.f32 %v2148, %v2308
    %2310 = vmatprep.mubr.f32.mxu0 %v180
    %2311 = vmatmul.mubr.f32.gmra.mxu0 %v179
    %v2312 = vpop.f32.mrf.mxu0
    %v2313 = vadd.f32 %v2152, %v2312
    %v2314 = vpop.f32.mrf.mxu0
    %v2315 = vadd.f32 %v2154, %v2314
    %2316 = vmatprep.mubr.f32.mxu0 %v196
    %2317 = vmatmul.mubr.f32.gmra.mxu0 %v195
    %v2318 = vpop.f32.mrf.mxu0
    %v2319 = vadd.f32 %v2158, %v2318
    %v2320 = vpop.f32.mrf.mxu0
    %v2321 = vadd.f32 %v2160, %v2320
    %2322 = vmatprep.mubr.f32.mxu0 %v212
    %2323 = vmatmul.mubr.f32.gmra.mxu0 %v211
    %v2324 = vpop.f32.mrf.mxu0
    %v2325 = vadd.f32 %v2164, %v2324
    %v2326 = vpop.f32.mrf.mxu0
    %v2327 = vadd.f32 %v2166, %v2326
    %2328 = vmatprep.mubr.f32.mxu0 %v228
    %2329 = vmatmul.mubr.f32.gmra.mxu0 %v227
    %v2330 = vpop.f32.mrf.mxu0
    %v2331 = vadd.f32 %v2170, %v2330
    %v2332 = vpop.f32.mrf.mxu0
    %v2333 = vadd.f32 %v2172, %v2332
    %2334 = vmatprep.mubr.f32.mxu0 %v244
    %2335 = vmatmul.mubr.f32.gmra.mxu0 %v243
    %v2336 = vpop.f32.mrf.mxu0
    %v2337 = vadd.f32 %v2176, %v2336
    %v2338 = vpop.f32.mrf.mxu0
    %v2339 = vadd.f32 %v2178, %v2338
    %2340 = vmatprep.mubr.f32.mxu0 %v260
    %2341 = vmatmul.mubr.f32.gmra.mxu0 %v259
    %v2342 = vpop.f32.mrf.mxu0
    %v2343 = vadd.f32 %v2182, %v2342
    %v2344 = vpop.f32.mrf.mxu0
    %v2345 = vadd.f32 %v2184, %v2344
    %2346 = vmatprep.mubr.f32.mxu0 %v276
    %2347 = vmatmul.mubr.f32.gmra.mxu0 %v275
    %v2348 = vpop.f32.mrf.mxu0
    %v2349 = vadd.f32 %v2188, %v2348
    %v2350 = vpop.f32.mrf.mxu0
    %v2351 = vadd.f32 %v2190, %v2350
    %2352 = vmatprep.mubr.f32.mxu0 %v292
    %2353 = vmatmul.mubr.f32.gmra.mxu0 %v291
    %v2354 = vpop.f32.mrf.mxu0
    %v2355 = vadd.f32 %v2194, %v2354
    %v2356 = vpop.f32.mrf.mxu0
    %v2357 = vadd.f32 %v2196, %v2356
    %2358 = vmatprep.mubr.f32.mxu0 %v308
    %2359 = vmatmul.mubr.f32.gmra.mxu0 %v307
    %v2360 = vpop.f32.mrf.mxu0
    %v2361 = vadd.f32 %v2200, %v2360
    %v2362 = vpop.f32.mrf.mxu0
    %v2363 = vadd.f32 %v2202, %v2362
    %2364 = vmatprep.mubr.f32.mxu0 %v324
    %2365 = vmatmul.mubr.f32.gmra.mxu0 %v323
    %v2366 = vpop.f32.mrf.mxu0
    %v2367 = vadd.f32 %v2206, %v2366
    %v2368 = vpop.f32.mrf.mxu0
    %v2369 = vadd.f32 %v2208, %v2368
    %2370 = vmatprep.mubr.f32.mxu0 %v340
    %2371 = vmatmul.mubr.f32.gmra.mxu0 %v339
    %v2372 = vpop.f32.mrf.mxu0
    %v2373 = vadd.f32 %v2212, %v2372
    %v2374 = vpop.f32.mrf.mxu0
    %v2375 = vadd.f32 %v2214, %v2374
    %2376 = vmatprep.mubr.f32.mxu0 %v356
    %2377 = vmatmul.mubr.f32.gmra.mxu0 %v355
    %v2378 = vpop.f32.mrf.mxu0
    %v2379 = vadd.f32 %v2218, %v2378
    %v2380 = vpop.f32.mrf.mxu0
    %v2381 = vadd.f32 %v2220, %v2380
    %2382 = vmatprep.mubr.f32.mxu0 %v372
    %2383 = vmatmul.mubr.f32.gmra.mxu0 %v371
    %v2384 = vpop.f32.mrf.mxu0
    %v2385 = vadd.f32 %v2224, %v2384
    %v2386 = vpop.f32.mrf.mxu0
    %v2387 = vadd.f32 %v2226, %v2386
    %2388 = vdwg.mxu0
    %2389 = vmatprep.subr.mxu0 %v1206
    %2390 = vmatpush1.msra.mxu0 %v1205
    %2391 = vmatprep.subr.mxu0 %v1202
    %2392 = vmatpush1.msra.mxu0 %v1201
    %2393 = vmatprep.subr.mxu0 %v1198
    %2394 = vmatpush1.msra.mxu0 %v1197
    %2395 = vmatprep.subr.mxu0 %v1194
    %2396 = vmatpush1.msra.mxu0 %v1193
    %2397 = vmatprep.subr.mxu0 %v1190
    %2398 = vmatpush1.msra.mxu0 %v1189
    %2399 = vmatprep.subr.mxu0 %v1186
    %2400 = vmatpush1.msra.mxu0 %v1185
    %2401 = vmatprep.subr.mxu0 %v1182
    %2402 = vmatpush1.msra.mxu0 %v1181
    %2403 = vmatprep.subr.mxu0 %v1178
    %2404 = vmatpush1.msra.mxu0 %v1177
    %2405 = vmatprep.subr.mxu0 %v1174
    %2406 = vmatpush1.msra.mxu0 %v1173
    %2407 = vmatprep.subr.mxu0 %v1170
    %2408 = vmatpush1.msra.mxu0 %v1169
    %2409 = vmatprep.subr.mxu0 %v1166
    %2410 = vmatpush1.msra.mxu0 %v1165
    %2411 = vmatprep.subr.mxu0 %v1162
    %2412 = vmatpush1.msra.mxu0 %v1161
    %2413 = vmatprep.subr.mxu0 %v1158
    %2414 = vmatpush1.msra.mxu0 %v1157
    %2415 = vmatprep.subr.mxu0 %v1154
    %2416 = vmatpush1.msra.mxu0 %v1153
    %2417 = vmatprep.subr.mxu0 %v1150
    %2418 = vmatpush1.msra.mxu0 %v1149
    %2419 = vmatprep.subr.mxu0 %v1146
    %2420 = vmatpush1.msra.mxu0 %v1145
    %2421 = vmatprep.subr.mxu0 %v1270
    %2422 = vmatpush2.msra.mxu0 %v1269
    %2423 = vmatprep.subr.mxu0 %v1266
    %2424 = vmatpush2.msra.mxu0 %v1265
    %2425 = vmatprep.subr.mxu0 %v1262
    %2426 = vmatpush2.msra.mxu0 %v1261
    %2427 = vmatprep.subr.mxu0 %v1258
    %2428 = vmatpush2.msra.mxu0 %v1257
    %2429 = vmatprep.subr.mxu0 %v1254
    %2430 = vmatpush2.msra.mxu0 %v1253
    %2431 = vmatprep.subr.mxu0 %v1250
    %2432 = vmatpush2.msra.mxu0 %v1249
    %2433 = vmatprep.subr.mxu0 %v1246
    %2434 = vmatpush2.msra.mxu0 %v1245
    %2435 = vmatprep.subr.mxu0 %v1242
    %2436 = vmatpush2.msra.mxu0 %v1241
    %2437 = vmatprep.subr.mxu0 %v1238
    %2438 = vmatpush2.msra.mxu0 %v1237
    %2439 = vmatprep.subr.mxu0 %v1234
    %2440 = vmatpush2.msra.mxu0 %v1233
    %2441 = vmatprep.subr.mxu0 %v1230
    %2442 = vmatpush2.msra.mxu0 %v1229
    %2443 = vmatprep.subr.mxu0 %v1226
    %2444 = vmatpush2.msra.mxu0 %v1225
    %2445 = vmatprep.subr.mxu0 %v1222
    %2446 = vmatpush2.msra.mxu0 %v1221
    %2447 = vmatprep.subr.mxu0 %v1218
    %2448 = vmatpush2.msra.mxu0 %v1217
    %2449 = vmatprep.subr.mxu0 %v1214
    %2450 = vmatpush2.msra.mxu0 %v1213
    %2451 = vmatprep.subr.mxu0 %v1210
    %2452 = vmatpush2.msra.mxu0 %v1209
    %2453 = vmatprep.mubr.f32.mxu0 %v134
    %2454 = vmatmul.mubr.f32.gmra.mxu0 %v133
    %v2455 = vpop.f32.mrf.mxu0
    %v2456 = vadd.f32 %v2295, %v2455
    %v2457 = vpop.f32.mrf.mxu0
    %v2458 = vadd.f32 %v2297, %v2457
    %2459 = vmatprep.mubr.f32.mxu0 %v150
    %2460 = vmatmul.mubr.f32.gmra.mxu0 %v149
    %v2461 = vpop.f32.mrf.mxu0
    %v2462 = vadd.f32 %v2301, %v2461
    %v2463 = vpop.f32.mrf.mxu0
    %v2464 = vadd.f32 %v2303, %v2463
    %2465 = vmatprep.mubr.f32.mxu0 %v166
    %2466 = vmatmul.mubr.f32.gmra.mxu0 %v165
    %v2467 = vpop.f32.mrf.mxu0
    %v2468 = vadd.f32 %v2307, %v2467
    %v2469 = vpop.f32.mrf.mxu0
    %v2470 = vadd.f32 %v2309, %v2469
    %2471 = vmatprep.mubr.f32.mxu0 %v182
    %2472 = vmatmul.mubr.f32.gmra.mxu0 %v181
    %v2473 = vpop.f32.mrf.mxu0
    %v2474 = vadd.f32 %v2313, %v2473
    %v2475 = vpop.f32.mrf.mxu0
    %v2476 = vadd.f32 %v2315, %v2475
    %2477 = vmatprep.mubr.f32.mxu0 %v198
    %2478 = vmatmul.mubr.f32.gmra.mxu0 %v197
    %v2479 = vpop.f32.mrf.mxu0
    %v2480 = vadd.f32 %v2319, %v2479
    %v2481 = vpop.f32.mrf.mxu0
    %v2482 = vadd.f32 %v2321, %v2481
    %2483 = vmatprep.mubr.f32.mxu0 %v214
    %2484 = vmatmul.mubr.f32.gmra.mxu0 %v213
    %v2485 = vpop.f32.mrf.mxu0
    %v2486 = vadd.f32 %v2325, %v2485
    %v2487 = vpop.f32.mrf.mxu0
    %v2488 = vadd.f32 %v2327, %v2487
    %2489 = vmatprep.mubr.f32.mxu0 %v230
    %2490 = vmatmul.mubr.f32.gmra.mxu0 %v229
    %v2491 = vpop.f32.mrf.mxu0
    %v2492 = vadd.f32 %v2331, %v2491
    %v2493 = vpop.f32.mrf.mxu0
    %v2494 = vadd.f32 %v2333, %v2493
    %2495 = vmatprep.mubr.f32.mxu0 %v246
    %2496 = vmatmul.mubr.f32.gmra.mxu0 %v245
    %v2497 = vpop.f32.mrf.mxu0
    %v2498 = vadd.f32 %v2337, %v2497
    %v2499 = vpop.f32.mrf.mxu0
    %v2500 = vadd.f32 %v2339, %v2499
    %2501 = vmatprep.mubr.f32.mxu0 %v262
    %2502 = vmatmul.mubr.f32.gmra.mxu0 %v261
    %v2503 = vpop.f32.mrf.mxu0
    %v2504 = vadd.f32 %v2343, %v2503
    %v2505 = vpop.f32.mrf.mxu0
    %v2506 = vadd.f32 %v2345, %v2505
    %2507 = vmatprep.mubr.f32.mxu0 %v278
    %2508 = vmatmul.mubr.f32.gmra.mxu0 %v277
    %v2509 = vpop.f32.mrf.mxu0
    %v2510 = vadd.f32 %v2349, %v2509
    %v2511 = vpop.f32.mrf.mxu0
    %v2512 = vadd.f32 %v2351, %v2511
    %2513 = vmatprep.mubr.f32.mxu0 %v294
    %2514 = vmatmul.mubr.f32.gmra.mxu0 %v293
    %v2515 = vpop.f32.mrf.mxu0
    %v2516 = vadd.f32 %v2355, %v2515
    %v2517 = vpop.f32.mrf.mxu0
    %v2518 = vadd.f32 %v2357, %v2517
    %2519 = vmatprep.mubr.f32.mxu0 %v310
    %2520 = vmatmul.mubr.f32.gmra.mxu0 %v309
    %v2521 = vpop.f32.mrf.mxu0
    %v2522 = vadd.f32 %v2361, %v2521
    %v2523 = vpop.f32.mrf.mxu0
    %v2524 = vadd.f32 %v2363, %v2523
    %2525 = vmatprep.mubr.f32.mxu0 %v326
    %2526 = vmatmul.mubr.f32.gmra.mxu0 %v325
    %v2527 = vpop.f32.mrf.mxu0
    %v2528 = vadd.f32 %v2367, %v2527
    %v2529 = vpop.f32.mrf.mxu0
    %v2530 = vadd.f32 %v2369, %v2529
    %2531 = vmatprep.mubr.f32.mxu0 %v342
    %2532 = vmatmul.mubr.f32.gmra.mxu0 %v341
    %v2533 = vpop.f32.mrf.mxu0
    %v2534 = vadd.f32 %v2373, %v2533
    %v2535 = vpop.f32.mrf.mxu0
    %v2536 = vadd.f32 %v2375, %v2535
    %2537 = vmatprep.mubr.f32.mxu0 %v358
    %2538 = vmatmul.mubr.f32.gmra.mxu0 %v357
    %v2539 = vpop.f32.mrf.mxu0
    %v2540 = vadd.f32 %v2379, %v2539
    %v2541 = vpop.f32.mrf.mxu0
    %v2542 = vadd.f32 %v2381, %v2541
    %2543 = vmatprep.mubr.f32.mxu0 %v374
    %2544 = vmatmul.mubr.f32.gmra.mxu0 %v373
    %v2545 = vpop.f32.mrf.mxu0
    %v2546 = vadd.f32 %v2385, %v2545
    %v2547 = vpop.f32.mrf.mxu0
    %v2548 = vadd.f32 %v2387, %v2547
    %2549 = vdwg.mxu0
    %2550 = vmatprep.subr.mxu0 %v1334
    %2551 = vmatpush1.msra.mxu0 %v1333
    %2552 = vmatprep.subr.mxu0 %v1330
    %2553 = vmatpush1.msra.mxu0 %v1329
    %2554 = vmatprep.subr.mxu0 %v1326
    %2555 = vmatpush1.msra.mxu0 %v1325
    %2556 = vmatprep.subr.mxu0 %v1322
    %2557 = vmatpush1.msra.mxu0 %v1321
    %2558 = vmatprep.subr.mxu0 %v1318
    %2559 = vmatpush1.msra.mxu0 %v1317
    %2560 = vmatprep.subr.mxu0 %v1314
    %2561 = vmatpush1.msra.mxu0 %v1313
    %2562 = vmatprep.subr.mxu0 %v1310
    %2563 = vmatpush1.msra.mxu0 %v1309
    %2564 = vmatprep.subr.mxu0 %v1306
    %2565 = vmatpush1.msra.mxu0 %v1305
    %2566 = vmatprep.subr.mxu0 %v1302
    %2567 = vmatpush1.msra.mxu0 %v1301
    %2568 = vmatprep.subr.mxu0 %v1298
    %2569 = vmatpush1.msra.mxu0 %v1297
    %2570 = vmatprep.subr.mxu0 %v1294
    %2571 = vmatpush1.msra.mxu0 %v1293
    %2572 = vmatprep.subr.mxu0 %v1290
    %2573 = vmatpush1.msra.mxu0 %v1289
    %2574 = vmatprep.subr.mxu0 %v1286
    %2575 = vmatpush1.msra.mxu0 %v1285
    %2576 = vmatprep.subr.mxu0 %v1282
    %2577 = vmatpush1.msra.mxu0 %v1281
    %2578 = vmatprep.subr.mxu0 %v1278
    %2579 = vmatpush1.msra.mxu0 %v1277
    %2580 = vmatprep.subr.mxu0 %v1274
    %2581 = vmatpush1.msra.mxu0 %v1273
    %2582 = vmatprep.subr.mxu0 %v1398
    %2583 = vmatpush2.msra.mxu0 %v1397
    %2584 = vmatprep.subr.mxu0 %v1394
    %2585 = vmatpush2.msra.mxu0 %v1393
    %2586 = vmatprep.subr.mxu0 %v1390
    %2587 = vmatpush2.msra.mxu0 %v1389
    %2588 = vmatprep.subr.mxu0 %v1386
    %2589 = vmatpush2.msra.mxu0 %v1385
    %2590 = vmatprep.subr.mxu0 %v1382
    %2591 = vmatpush2.msra.mxu0 %v1381
    %2592 = vmatprep.subr.mxu0 %v1378
    %2593 = vmatpush2.msra.mxu0 %v1377
    %2594 = vmatprep.subr.mxu0 %v1374
    %2595 = vmatpush2.msra.mxu0 %v1373
    %2596 = vmatprep.subr.mxu0 %v1370
    %2597 = vmatpush2.msra.mxu0 %v1369
    %2598 = vmatprep.subr.mxu0 %v1366
    %2599 = vmatpush2.msra.mxu0 %v1365
    %2600 = vmatprep.subr.mxu0 %v1362
    %2601 = vmatpush2.msra.mxu0 %v1361
    %2602 = vmatprep.subr.mxu0 %v1358
    %2603 = vmatpush2.msra.mxu0 %v1357
    %2604 = vmatprep.subr.mxu0 %v1354
    %2605 = vmatpush2.msra.mxu0 %v1353
    %2606 = vmatprep.subr.mxu0 %v1350
    %2607 = vmatpush2.msra.mxu0 %v1349
    %2608 = vmatprep.subr.mxu0 %v1346
    %2609 = vmatpush2.msra.mxu0 %v1345
    %2610 = vmatprep.subr.mxu0 %v1342
    %2611 = vmatpush2.msra.mxu0 %v1341
    %2612 = vmatprep.subr.mxu0 %v1338
    %2613 = vmatpush2.msra.mxu0 %v1337
    %2614 = vmatprep.mubr.f32.mxu0 %v136
    %2615 = vmatmul.mubr.f32.gmra.mxu0 %v135
    %v2616 = vpop.f32.mrf.mxu0
    %v2617 = vadd.f32 %v2456, %v2616
    %v2618 = vpop.f32.mrf.mxu0
    %v2619 = vadd.f32 %v2458, %v2618
    %2620 = vmatprep.mubr.f32.mxu0 %v152
    %2621 = vmatmul.mubr.f32.gmra.mxu0 %v151
    %v2622 = vpop.f32.mrf.mxu0
    %v2623 = vadd.f32 %v2462, %v2622
    %v2624 = vpop.f32.mrf.mxu0
    %v2625 = vadd.f32 %v2464, %v2624
    %2626 = vmatprep.mubr.f32.mxu0 %v168
    %2627 = vmatmul.mubr.f32.gmra.mxu0 %v167
    %v2628 = vpop.f32.mrf.mxu0
    %v2629 = vadd.f32 %v2468, %v2628
    %v2630 = vpop.f32.mrf.mxu0
    %v2631 = vadd.f32 %v2470, %v2630
    %2632 = vmatprep.mubr.f32.mxu0 %v184
    %2633 = vmatmul.mubr.f32.gmra.mxu0 %v183
    %v2634 = vpop.f32.mrf.mxu0
    %v2635 = vadd.f32 %v2474, %v2634
    %v2636 = vpop.f32.mrf.mxu0
    %v2637 = vadd.f32 %v2476, %v2636
    %2638 = vmatprep.mubr.f32.mxu0 %v200
    %2639 = vmatmul.mubr.f32.gmra.mxu0 %v199
    %v2640 = vpop.f32.mrf.mxu0
    %v2641 = vadd.f32 %v2480, %v2640
    %v2642 = vpop.f32.mrf.mxu0
    %v2643 = vadd.f32 %v2482, %v2642
    %2644 = vmatprep.mubr.f32.mxu0 %v216
    %2645 = vmatmul.mubr.f32.gmra.mxu0 %v215
    %v2646 = vpop.f32.mrf.mxu0
    %v2647 = vadd.f32 %v2486, %v2646
    %v2648 = vpop.f32.mrf.mxu0
    %v2649 = vadd.f32 %v2488, %v2648
    %2650 = vmatprep.mubr.f32.mxu0 %v232
    %2651 = vmatmul.mubr.f32.gmra.mxu0 %v231
    %v2652 = vpop.f32.mrf.mxu0
    %v2653 = vadd.f32 %v2492, %v2652
    %v2654 = vpop.f32.mrf.mxu0
    %v2655 = vadd.f32 %v2494, %v2654
    %2656 = vmatprep.mubr.f32.mxu0 %v248
    %2657 = vmatmul.mubr.f32.gmra.mxu0 %v247
    %v2658 = vpop.f32.mrf.mxu0
    %v2659 = vadd.f32 %v2498, %v2658
    %v2660 = vpop.f32.mrf.mxu0
    %v2661 = vadd.f32 %v2500, %v2660
    %2662 = vmatprep.mubr.f32.mxu0 %v264
    %2663 = vmatmul.mubr.f32.gmra.mxu0 %v263
    %v2664 = vpop.f32.mrf.mxu0
    %v2665 = vadd.f32 %v2504, %v2664
    %v2666 = vpop.f32.mrf.mxu0
    %v2667 = vadd.f32 %v2506, %v2666
    %2668 = vmatprep.mubr.f32.mxu0 %v280
    %2669 = vmatmul.mubr.f32.gmra.mxu0 %v279
    %v2670 = vpop.f32.mrf.mxu0
    %v2671 = vadd.f32 %v2510, %v2670
    %v2672 = vpop.f32.mrf.mxu0
    %v2673 = vadd.f32 %v2512, %v2672
    %2674 = vmatprep.mubr.f32.mxu0 %v296
    %2675 = vmatmul.mubr.f32.gmra.mxu0 %v295
    %v2676 = vpop.f32.mrf.mxu0
    %v2677 = vadd.f32 %v2516, %v2676
    %v2678 = vpop.f32.mrf.mxu0
    %v2679 = vadd.f32 %v2518, %v2678
    %2680 = vmatprep.mubr.f32.mxu0 %v312
    %2681 = vmatmul.mubr.f32.gmra.mxu0 %v311
    %v2682 = vpop.f32.mrf.mxu0
    %v2683 = vadd.f32 %v2522, %v2682
    %v2684 = vpop.f32.mrf.mxu0
    %v2685 = vadd.f32 %v2524, %v2684
    %2686 = vmatprep.mubr.f32.mxu0 %v328
    %2687 = vmatmul.mubr.f32.gmra.mxu0 %v327
    %v2688 = vpop.f32.mrf.mxu0
    %v2689 = vadd.f32 %v2528, %v2688
    %v2690 = vpop.f32.mrf.mxu0
    %v2691 = vadd.f32 %v2530, %v2690
    %2692 = vmatprep.mubr.f32.mxu0 %v344
    %2693 = vmatmul.mubr.f32.gmra.mxu0 %v343
    %v2694 = vpop.f32.mrf.mxu0
    %v2695 = vadd.f32 %v2534, %v2694
    %v2696 = vpop.f32.mrf.mxu0
    %v2697 = vadd.f32 %v2536, %v2696
    %2698 = vmatprep.mubr.f32.mxu0 %v360
    %2699 = vmatmul.mubr.f32.gmra.mxu0 %v359
    %v2700 = vpop.f32.mrf.mxu0
    %v2701 = vadd.f32 %v2540, %v2700
    %v2702 = vpop.f32.mrf.mxu0
    %v2703 = vadd.f32 %v2542, %v2702
    %2704 = vmatprep.mubr.f32.mxu0 %v376
    %2705 = vmatmul.mubr.f32.gmra.mxu0 %v375
    %v2706 = vpop.f32.mrf.mxu0
    %v2707 = vadd.f32 %v2546, %v2706
    %v2708 = vpop.f32.mrf.mxu0
    %v2709 = vadd.f32 %v2548, %v2708
    %2710 = vdwg.mxu0
    %2711 = vmatprep.subr.mxu0 %v440
    %2712 = vmatpush1.msra.mxu0 %v439
    %2713 = vmatprep.subr.mxu0 %v436
    %2714 = vmatpush1.msra.mxu0 %v435
    %2715 = vmatprep.subr.mxu0 %v432
    %2716 = vmatpush1.msra.mxu0 %v431
    %2717 = vmatprep.subr.mxu0 %v428
    %2718 = vmatpush1.msra.mxu0 %v427
    %2719 = vmatprep.subr.mxu0 %v424
    %2720 = vmatpush1.msra.mxu0 %v423
    %2721 = vmatprep.subr.mxu0 %v420
    %2722 = vmatpush1.msra.mxu0 %v419
    %2723 = vmatprep.subr.mxu0 %v416
    %2724 = vmatpush1.msra.mxu0 %v415
    %2725 = vmatprep.subr.mxu0 %v412
    %2726 = vmatpush1.msra.mxu0 %v411
    %2727 = vmatprep.subr.mxu0 %v408
    %2728 = vmatpush1.msra.mxu0 %v407
    %2729 = vmatprep.subr.mxu0 %v404
    %2730 = vmatpush1.msra.mxu0 %v403
    %2731 = vmatprep.subr.mxu0 %v400
    %2732 = vmatpush1.msra.mxu0 %v399
    %2733 = vmatprep.subr.mxu0 %v396
    %2734 = vmatpush1.msra.mxu0 %v395
    %2735 = vmatprep.subr.mxu0 %v392
    %2736 = vmatpush1.msra.mxu0 %v391
    %2737 = vmatprep.subr.mxu0 %v388
    %2738 = vmatpush1.msra.mxu0 %v387
    %2739 = vmatprep.subr.mxu0 %v384
    %2740 = vmatpush1.msra.mxu0 %v383
    %2741 = vmatprep.subr.mxu0 %v380
    %2742 = vmatpush1.msra.mxu0 %v379
    %2743 = vmatprep.subr.mxu0 %v504
    %2744 = vmatpush2.msra.mxu0 %v503
    %2745 = vmatprep.subr.mxu0 %v500
    %2746 = vmatpush2.msra.mxu0 %v499
    %2747 = vmatprep.subr.mxu0 %v496
    %2748 = vmatpush2.msra.mxu0 %v495
    %2749 = vmatprep.subr.mxu0 %v492
    %2750 = vmatpush2.msra.mxu0 %v491
    %2751 = vmatprep.subr.mxu0 %v488
    %2752 = vmatpush2.msra.mxu0 %v487
    %2753 = vmatprep.subr.mxu0 %v484
    %2754 = vmatpush2.msra.mxu0 %v483
    %2755 = vmatprep.subr.mxu0 %v480
    %2756 = vmatpush2.msra.mxu0 %v479
    %2757 = vmatprep.subr.mxu0 %v476
    %2758 = vmatpush2.msra.mxu0 %v475
    %2759 = vmatprep.subr.mxu0 %v472
    %2760 = vmatpush2.msra.mxu0 %v471
    %2761 = vmatprep.subr.mxu0 %v468
    %2762 = vmatpush2.msra.mxu0 %v467
    %2763 = vmatprep.subr.mxu0 %v464
    %2764 = vmatpush2.msra.mxu0 %v463
    %2765 = vmatprep.subr.mxu0 %v460
    %2766 = vmatpush2.msra.mxu0 %v459
    %2767 = vmatprep.subr.mxu0 %v456
    %2768 = vmatpush2.msra.mxu0 %v455
    %2769 = vmatprep.subr.mxu0 %v452
    %2770 = vmatpush2.msra.mxu0 %v451
    %2771 = vmatprep.subr.mxu0 %v448
    %2772 = vmatpush2.msra.mxu0 %v447
    %2773 = vmatprep.subr.mxu0 %v444
    %2774 = vmatpush2.msra.mxu0 %v443
    %2775 = vmatprep.mubr.f32.mxu0 %v122
    %2776 = vmatmul.mubr.f32.gmra.mxu0 %v121
    %v2777 = vpop.f32.mrf.mxu0
    %v2778 = vadd.f32 %v1414, %v2777
    %v2779 = vpop.f32.mrf.mxu0
    %v2780 = vadd.f32 %v1418, %v2779
    %2781 = vmatprep.mubr.f32.mxu0 %v138
    %2782 = vmatmul.mubr.f32.gmra.mxu0 %v137
    %v2783 = vpop.f32.mrf.mxu0
    %v2784 = vadd.f32 %v1414, %v2783
    %v2785 = vpop.f32.mrf.mxu0
    %v2786 = vadd.f32 %v1418, %v2785
    %2787 = vmatprep.mubr.f32.mxu0 %v154
    %2788 = vmatmul.mubr.f32.gmra.mxu0 %v153
    %v2789 = vpop.f32.mrf.mxu0
    %v2790 = vadd.f32 %v1414, %v2789
    %v2791 = vpop.f32.mrf.mxu0
    %v2792 = vadd.f32 %v1418, %v2791
    %2793 = vmatprep.mubr.f32.mxu0 %v170
    %2794 = vmatmul.mubr.f32.gmra.mxu0 %v169
    %v2795 = vpop.f32.mrf.mxu0
    %v2796 = vadd.f32 %v1414, %v2795
    %v2797 = vpop.f32.mrf.mxu0
    %v2798 = vadd.f32 %v1418, %v2797
    %2799 = vmatprep.mubr.f32.mxu0 %v186
    %2800 = vmatmul.mubr.f32.gmra.mxu0 %v185
    %v2801 = vpop.f32.mrf.mxu0
    %v2802 = vadd.f32 %v1414, %v2801
    %v2803 = vpop.f32.mrf.mxu0
    %v2804 = vadd.f32 %v1418, %v2803
    %2805 = vmatprep.mubr.f32.mxu0 %v202
    %2806 = vmatmul.mubr.f32.gmra.mxu0 %v201
    %v2807 = vpop.f32.mrf.mxu0
    %v2808 = vadd.f32 %v1414, %v2807
    %v2809 = vpop.f32.mrf.mxu0
    %v2810 = vadd.f32 %v1418, %v2809
    %2811 = vmatprep.mubr.f32.mxu0 %v218
    %2812 = vmatmul.mubr.f32.gmra.mxu0 %v217
    %v2813 = vpop.f32.mrf.mxu0
    %v2814 = vadd.f32 %v1414, %v2813
    %v2815 = vpop.f32.mrf.mxu0
    %v2816 = vadd.f32 %v1418, %v2815
    %2817 = vmatprep.mubr.f32.mxu0 %v234
    %2818 = vmatmul.mubr.f32.gmra.mxu0 %v233
    %v2819 = vpop.f32.mrf.mxu0
    %v2820 = vadd.f32 %v1414, %v2819
    %v2821 = vpop.f32.mrf.mxu0
    %v2822 = vadd.f32 %v1418, %v2821
    %2823 = vmatprep.mubr.f32.mxu0 %v250
    %2824 = vmatmul.mubr.f32.gmra.mxu0 %v249
    %v2825 = vpop.f32.mrf.mxu0
    %v2826 = vadd.f32 %v1414, %v2825
    %v2827 = vpop.f32.mrf.mxu0
    %v2828 = vadd.f32 %v1418, %v2827
    %2829 = vmatprep.mubr.f32.mxu0 %v266
    %2830 = vmatmul.mubr.f32.gmra.mxu0 %v265
    %v2831 = vpop.f32.mrf.mxu0
    %v2832 = vadd.f32 %v1414, %v2831
    %v2833 = vpop.f32.mrf.mxu0
    %v2834 = vadd.f32 %v1418, %v2833
    %2835 = vmatprep.mubr.f32.mxu0 %v282
    %2836 = vmatmul.mubr.f32.gmra.mxu0 %v281
    %v2837 = vpop.f32.mrf.mxu0
    %v2838 = vadd.f32 %v1414, %v2837
    %v2839 = vpop.f32.mrf.mxu0
    %v2840 = vadd.f32 %v1418, %v2839
    %2841 = vmatprep.mubr.f32.mxu0 %v298
    %2842 = vmatmul.mubr.f32.gmra.mxu0 %v297
    %v2843 = vpop.f32.mrf.mxu0
    %v2844 = vadd.f32 %v1414, %v2843
    %v2845 = vpop.f32.mrf.mxu0
    %v2846 = vadd.f32 %v1418, %v2845
    %2847 = vmatprep.mubr.f32.mxu0 %v314
    %2848 = vmatmul.mubr.f32.gmra.mxu0 %v313
    %v2849 = vpop.f32.mrf.mxu0
    %v2850 = vadd.f32 %v1414, %v2849
    %v2851 = vpop.f32.mrf.mxu0
    %v2852 = vadd.f32 %v1418, %v2851
    %2853 = vmatprep.mubr.f32.mxu0 %v330
    %2854 = vmatmul.mubr.f32.gmra.mxu0 %v329
    %v2855 = vpop.f32.mrf.mxu0
    %v2856 = vadd.f32 %v1414, %v2855
    %v2857 = vpop.f32.mrf.mxu0
    %v2858 = vadd.f32 %v1418, %v2857
    %2859 = vmatprep.mubr.f32.mxu0 %v346
    %2860 = vmatmul.mubr.f32.gmra.mxu0 %v345
    %v2861 = vpop.f32.mrf.mxu0
    %v2862 = vadd.f32 %v1414, %v2861
    %v2863 = vpop.f32.mrf.mxu0
    %v2864 = vadd.f32 %v1418, %v2863
    %2865 = vmatprep.mubr.f32.mxu0 %v362
    %2866 = vmatmul.mubr.f32.gmra.mxu0 %v361
    %v2867 = vpop.f32.mrf.mxu0
    %v2868 = vadd.f32 %v1414, %v2867
    %v2869 = vpop.f32.mrf.mxu0
    %v2870 = vadd.f32 %v1418, %v2869
    %2871 = vdwg.mxu0
    %2872 = vmatprep.subr.mxu0 %v568
    %2873 = vmatpush1.msra.mxu0 %v567
    %2874 = vmatprep.subr.mxu0 %v564
    %2875 = vmatpush1.msra.mxu0 %v563
    %2876 = vmatprep.subr.mxu0 %v560
    %2877 = vmatpush1.msra.mxu0 %v559
    %2878 = vmatprep.subr.mxu0 %v556
    %2879 = vmatpush1.msra.mxu0 %v555
    %2880 = vmatprep.subr.mxu0 %v552
    %2881 = vmatpush1.msra.mxu0 %v551
    %2882 = vmatprep.subr.mxu0 %v548
    %2883 = vmatpush1.msra.mxu0 %v547
    %2884 = vmatprep.subr.mxu0 %v544
    %2885 = vmatpush1.msra.mxu0 %v543
    %2886 = vmatprep.subr.mxu0 %v540
    %2887 = vmatpush1.msra.mxu0 %v539
    %2888 = vmatprep.subr.mxu0 %v536
    %2889 = vmatpush1.msra.mxu0 %v535
    %2890 = vmatprep.subr.mxu0 %v532
    %2891 = vmatpush1.msra.mxu0 %v531
    %2892 = vmatprep.subr.mxu0 %v528
    %2893 = vmatpush1.msra.mxu0 %v527
    %2894 = vmatprep.subr.mxu0 %v524
    %2895 = vmatpush1.msra.mxu0 %v523
    %2896 = vmatprep.subr.mxu0 %v520
    %2897 = vmatpush1.msra.mxu0 %v519
    %2898 = vmatprep.subr.mxu0 %v516
    %2899 = vmatpush1.msra.mxu0 %v515
    %2900 = vmatprep.subr.mxu0 %v512
    %2901 = vmatpush1.msra.mxu0 %v511
    %2902 = vmatprep.subr.mxu0 %v508
    %2903 = vmatpush1.msra.mxu0 %v507
    %2904 = vmatprep.subr.mxu0 %v632
    %2905 = vmatpush2.msra.mxu0 %v631
    %2906 = vmatprep.subr.mxu0 %v628
    %2907 = vmatpush2.msra.mxu0 %v627
    %2908 = vmatprep.subr.mxu0 %v624
    %2909 = vmatpush2.msra.mxu0 %v623
    %2910 = vmatprep.subr.mxu0 %v620
    %2911 = vmatpush2.msra.mxu0 %v619
    %2912 = vmatprep.subr.mxu0 %v616
    %2913 = vmatpush2.msra.mxu0 %v615
    %2914 = vmatprep.subr.mxu0 %v612
    %2915 = vmatpush2.msra.mxu0 %v611
    %2916 = vmatprep.subr.mxu0 %v608
    %2917 = vmatpush2.msra.mxu0 %v607
    %2918 = vmatprep.subr.mxu0 %v604
    %2919 = vmatpush2.msra.mxu0 %v603
    %2920 = vmatprep.subr.mxu0 %v600
    %2921 = vmatpush2.msra.mxu0 %v599
    %2922 = vmatprep.subr.mxu0 %v596
    %2923 = vmatpush2.msra.mxu0 %v595
    %2924 = vmatprep.subr.mxu0 %v592
    %2925 = vmatpush2.msra.mxu0 %v591
    %2926 = vmatprep.subr.mxu0 %v588
    %2927 = vmatpush2.msra.mxu0 %v587
    %2928 = vmatprep.subr.mxu0 %v584
    %2929 = vmatpush2.msra.mxu0 %v583
    %2930 = vmatprep.subr.mxu0 %v580
    %2931 = vmatpush2.msra.mxu0 %v579
    %2932 = vmatprep.subr.mxu0 %v576
    %2933 = vmatpush2.msra.mxu0 %v575
    %2934 = vmatprep.subr.mxu0 %v572
    %2935 = vmatpush2.msra.mxu0 %v571
    %2936 = vmatprep.mubr.f32.mxu0 %v124
    %2937 = vmatmul.mubr.f32.gmra.mxu0 %v123
    %v2938 = vpop.f32.mrf.mxu0
    %v2939 = vadd.f32 %v2778, %v2938
    %v2940 = vpop.f32.mrf.mxu0
    %v2941 = vadd.f32 %v2780, %v2940
    %2942 = vmatprep.mubr.f32.mxu0 %v140
    %2943 = vmatmul.mubr.f32.gmra.mxu0 %v139
    %v2944 = vpop.f32.mrf.mxu0
    %v2945 = vadd.f32 %v2784, %v2944
    %v2946 = vpop.f32.mrf.mxu0
    %v2947 = vadd.f32 %v2786, %v2946
    %2948 = vmatprep.mubr.f32.mxu0 %v156
    %2949 = vmatmul.mubr.f32.gmra.mxu0 %v155
    %v2950 = vpop.f32.mrf.mxu0
    %v2951 = vadd.f32 %v2790, %v2950
    %v2952 = vpop.f32.mrf.mxu0
    %v2953 = vadd.f32 %v2792, %v2952
    %2954 = vmatprep.mubr.f32.mxu0 %v172
    %2955 = vmatmul.mubr.f32.gmra.mxu0 %v171
    %v2956 = vpop.f32.mrf.mxu0
    %v2957 = vadd.f32 %v2796, %v2956
    %v2958 = vpop.f32.mrf.mxu0
    %v2959 = vadd.f32 %v2798, %v2958
    %2960 = vmatprep.mubr.f32.mxu0 %v188
    %2961 = vmatmul.mubr.f32.gmra.mxu0 %v187
    %v2962 = vpop.f32.mrf.mxu0
    %v2963 = vadd.f32 %v2802, %v2962
    %v2964 = vpop.f32.mrf.mxu0
    %v2965 = vadd.f32 %v2804, %v2964
    %2966 = vmatprep.mubr.f32.mxu0 %v204
    %2967 = vmatmul.mubr.f32.gmra.mxu0 %v203
    %v2968 = vpop.f32.mrf.mxu0
    %v2969 = vadd.f32 %v2808, %v2968
    %v2970 = vpop.f32.mrf.mxu0
    %v2971 = vadd.f32 %v2810, %v2970
    %2972 = vmatprep.mubr.f32.mxu0 %v220
    %2973 = vmatmul.mubr.f32.gmra.mxu0 %v219
    %v2974 = vpop.f32.mrf.mxu0
    %v2975 = vadd.f32 %v2814, %v2974
    %v2976 = vpop.f32.mrf.mxu0
    %v2977 = vadd.f32 %v2816, %v2976
    %2978 = vmatprep.mubr.f32.mxu0 %v236
    %2979 = vmatmul.mubr.f32.gmra.mxu0 %v235
    %v2980 = vpop.f32.mrf.mxu0
    %v2981 = vadd.f32 %v2820, %v2980
    %v2982 = vpop.f32.mrf.mxu0
    %v2983 = vadd.f32 %v2822, %v2982
    %2984 = vmatprep.mubr.f32.mxu0 %v252
    %2985 = vmatmul.mubr.f32.gmra.mxu0 %v251
    %v2986 = vpop.f32.mrf.mxu0
    %v2987 = vadd.f32 %v2826, %v2986
    %v2988 = vpop.f32.mrf.mxu0
    %v2989 = vadd.f32 %v2828, %v2988
    %2990 = vmatprep.mubr.f32.mxu0 %v268
    %2991 = vmatmul.mubr.f32.gmra.mxu0 %v267
    %v2992 = vpop.f32.mrf.mxu0
    %v2993 = vadd.f32 %v2832, %v2992
    %v2994 = vpop.f32.mrf.mxu0
    %v2995 = vadd.f32 %v2834, %v2994
    %2996 = vmatprep.mubr.f32.mxu0 %v284
    %2997 = vmatmul.mubr.f32.gmra.mxu0 %v283
    %v2998 = vpop.f32.mrf.mxu0
    %v2999 = vadd.f32 %v2838, %v2998
    %v3000 = vpop.f32.mrf.mxu0
    %v3001 = vadd.f32 %v2840, %v3000
    %3002 = vmatprep.mubr.f32.mxu0 %v300
    %3003 = vmatmul.mubr.f32.gmra.mxu0 %v299
    %v3004 = vpop.f32.mrf.mxu0
    %v3005 = vadd.f32 %v2844, %v3004
    %v3006 = vpop.f32.mrf.mxu0
    %v3007 = vadd.f32 %v2846, %v3006
    %3008 = vmatprep.mubr.f32.mxu0 %v316
    %3009 = vmatmul.mubr.f32.gmra.mxu0 %v315
    %v3010 = vpop.f32.mrf.mxu0
    %v3011 = vadd.f32 %v2850, %v3010
    %v3012 = vpop.f32.mrf.mxu0
    %v3013 = vadd.f32 %v2852, %v3012
    %3014 = vmatprep.mubr.f32.mxu0 %v332
    %3015 = vmatmul.mubr.f32.gmra.mxu0 %v331
    %v3016 = vpop.f32.mrf.mxu0
    %v3017 = vadd.f32 %v2856, %v3016
    %v3018 = vpop.f32.mrf.mxu0
    %v3019 = vadd.f32 %v2858, %v3018
    %3020 = vmatprep.mubr.f32.mxu0 %v348
    %3021 = vmatmul.mubr.f32.gmra.mxu0 %v347
    %v3022 = vpop.f32.mrf.mxu0
    %v3023 = vadd.f32 %v2862, %v3022
    %v3024 = vpop.f32.mrf.mxu0
    %v3025 = vadd.f32 %v2864, %v3024
    %3026 = vmatprep.mubr.f32.mxu0 %v364
    %3027 = vmatmul.mubr.f32.gmra.mxu0 %v363
    %v3028 = vpop.f32.mrf.mxu0
    %v3029 = vadd.f32 %v2868, %v3028
    %v3030 = vpop.f32.mrf.mxu0
    %v3031 = vadd.f32 %v2870, %v3030
    %3032 = vdwg.mxu0
    %3033 = vmatprep.subr.mxu0 %v696
    %3034 = vmatpush1.msra.mxu0 %v695
    %3035 = vmatprep.subr.mxu0 %v692
    %3036 = vmatpush1.msra.mxu0 %v691
    %3037 = vmatprep.subr.mxu0 %v688
    %3038 = vmatpush1.msra.mxu0 %v687
    %3039 = vmatprep.subr.mxu0 %v684
    %3040 = vmatpush1.msra.mxu0 %v683
    %3041 = vmatprep.subr.mxu0 %v680
    %3042 = vmatpush1.msra.mxu0 %v679
    %3043 = vmatprep.subr.mxu0 %v676
    %3044 = vmatpush1.msra.mxu0 %v675
    %3045 = vmatprep.subr.mxu0 %v672
    %3046 = vmatpush1.msra.mxu0 %v671
    %3047 = vmatprep.subr.mxu0 %v668
    %3048 = vmatpush1.msra.mxu0 %v667
    %3049 = vmatprep.subr.mxu0 %v664
    %3050 = vmatpush1.msra.mxu0 %v663
    %3051 = vmatprep.subr.mxu0 %v660
    %3052 = vmatpush1.msra.mxu0 %v659
    %3053 = vmatprep.subr.mxu0 %v656
    %3054 = vmatpush1.msra.mxu0 %v655
    %3055 = vmatprep.subr.mxu0 %v652
    %3056 = vmatpush1.msra.mxu0 %v651
    %3057 = vmatprep.subr.mxu0 %v648
    %3058 = vmatpush1.msra.mxu0 %v647
    %3059 = vmatprep.subr.mxu0 %v644
    %3060 = vmatpush1.msra.mxu0 %v643
    %3061 = vmatprep.subr.mxu0 %v640
    %3062 = vmatpush1.msra.mxu0 %v639
    %3063 = vmatprep.subr.mxu0 %v636
    %3064 = vmatpush1.msra.mxu0 %v635
    %3065 = vmatprep.subr.mxu0 %v760
    %3066 = vmatpush2.msra.mxu0 %v759
    %3067 = vmatprep.subr.mxu0 %v756
    %3068 = vmatpush2.msra.mxu0 %v755
    %3069 = vmatprep.subr.mxu0 %v752
    %3070 = vmatpush2.msra.mxu0 %v751
    %3071 = vmatprep.subr.mxu0 %v748
    %3072 = vmatpush2.msra.mxu0 %v747
    %3073 = vmatprep.subr.mxu0 %v744
    %3074 = vmatpush2.msra.mxu0 %v743
    %3075 = vmatprep.subr.mxu0 %v740
    %3076 = vmatpush2.msra.mxu0 %v739
    %3077 = vmatprep.subr.mxu0 %v736
    %3078 = vmatpush2.msra.mxu0 %v735
    %3079 = vmatprep.subr.mxu0 %v732
    %3080 = vmatpush2.msra.mxu0 %v731
    %3081 = vmatprep.subr.mxu0 %v728
    %3082 = vmatpush2.msra.mxu0 %v727
    %3083 = vmatprep.subr.mxu0 %v724
    %3084 = vmatpush2.msra.mxu0 %v723
    %3085 = vmatprep.subr.mxu0 %v720
    %3086 = vmatpush2.msra.mxu0 %v719
    %3087 = vmatprep.subr.mxu0 %v716
    %3088 = vmatpush2.msra.mxu0 %v715
    %3089 = vmatprep.subr.mxu0 %v712
    %3090 = vmatpush2.msra.mxu0 %v711
    %3091 = vmatprep.subr.mxu0 %v708
    %3092 = vmatpush2.msra.mxu0 %v707
    %3093 = vmatprep.subr.mxu0 %v704
    %3094 = vmatpush2.msra.mxu0 %v703
    %3095 = vmatprep.subr.mxu0 %v700
    %3096 = vmatpush2.msra.mxu0 %v699
    %3097 = vmatprep.mubr.f32.mxu0 %v126
    %3098 = vmatmul.mubr.f32.gmra.mxu0 %v125
    %v3099 = vpop.f32.mrf.mxu0
    %v3100 = vadd.f32 %v2939, %v3099
    %v3101 = vpop.f32.mrf.mxu0
    %v3102 = vadd.f32 %v2941, %v3101
    %3103 = vmatprep.mubr.f32.mxu0 %v142
    %3104 = vmatmul.mubr.f32.gmra.mxu0 %v141
    %v3105 = vpop.f32.mrf.mxu0
    %v3106 = vadd.f32 %v2945, %v3105
    %v3107 = vpop.f32.mrf.mxu0
    %v3108 = vadd.f32 %v2947, %v3107
    %3109 = vmatprep.mubr.f32.mxu0 %v158
    %3110 = vmatmul.mubr.f32.gmra.mxu0 %v157
    %v3111 = vpop.f32.mrf.mxu0
    %v3112 = vadd.f32 %v2951, %v3111
    %v3113 = vpop.f32.mrf.mxu0
    %v3114 = vadd.f32 %v2953, %v3113
    %3115 = vmatprep.mubr.f32.mxu0 %v174
    %3116 = vmatmul.mubr.f32.gmra.mxu0 %v173
    %v3117 = vpop.f32.mrf.mxu0
    %v3118 = vadd.f32 %v2957, %v3117
    %v3119 = vpop.f32.mrf.mxu0
    %v3120 = vadd.f32 %v2959, %v3119
    %3121 = vmatprep.mubr.f32.mxu0 %v190
    %3122 = vmatmul.mubr.f32.gmra.mxu0 %v189
    %v3123 = vpop.f32.mrf.mxu0
    %v3124 = vadd.f32 %v2963, %v3123
    %v3125 = vpop.f32.mrf.mxu0
    %v3126 = vadd.f32 %v2965, %v3125
    %3127 = vmatprep.mubr.f32.mxu0 %v206
    %3128 = vmatmul.mubr.f32.gmra.mxu0 %v205
    %v3129 = vpop.f32.mrf.mxu0
    %v3130 = vadd.f32 %v2969, %v3129
    %v3131 = vpop.f32.mrf.mxu0
    %v3132 = vadd.f32 %v2971, %v3131
    %3133 = vmatprep.mubr.f32.mxu0 %v222
    %3134 = vmatmul.mubr.f32.gmra.mxu0 %v221
    %v3135 = vpop.f32.mrf.mxu0
    %v3136 = vadd.f32 %v2975, %v3135
    %v3137 = vpop.f32.mrf.mxu0
    %v3138 = vadd.f32 %v2977, %v3137
    %3139 = vmatprep.mubr.f32.mxu0 %v238
    %3140 = vmatmul.mubr.f32.gmra.mxu0 %v237
    %v3141 = vpop.f32.mrf.mxu0
    %v3142 = vadd.f32 %v2981, %v3141
    %v3143 = vpop.f32.mrf.mxu0
    %v3144 = vadd.f32 %v2983, %v3143
    %3145 = vmatprep.mubr.f32.mxu0 %v254
    %3146 = vmatmul.mubr.f32.gmra.mxu0 %v253
    %v3147 = vpop.f32.mrf.mxu0
    %v3148 = vadd.f32 %v2987, %v3147
    %v3149 = vpop.f32.mrf.mxu0
    %v3150 = vadd.f32 %v2989, %v3149
    %3151 = vmatprep.mubr.f32.mxu0 %v270
    %3152 = vmatmul.mubr.f32.gmra.mxu0 %v269
    %v3153 = vpop.f32.mrf.mxu0
    %v3154 = vadd.f32 %v2993, %v3153
    %v3155 = vpop.f32.mrf.mxu0
    %v3156 = vadd.f32 %v2995, %v3155
    %3157 = vmatprep.mubr.f32.mxu0 %v286
    %3158 = vmatmul.mubr.f32.gmra.mxu0 %v285
    %v3159 = vpop.f32.mrf.mxu0
    %v3160 = vadd.f32 %v2999, %v3159
    %v3161 = vpop.f32.mrf.mxu0
    %v3162 = vadd.f32 %v3001, %v3161
    %3163 = vmatprep.mubr.f32.mxu0 %v302
    %3164 = vmatmul.mubr.f32.gmra.mxu0 %v301
    %v3165 = vpop.f32.mrf.mxu0
    %v3166 = vadd.f32 %v3005, %v3165
    %v3167 = vpop.f32.mrf.mxu0
    %v3168 = vadd.f32 %v3007, %v3167
    %3169 = vmatprep.mubr.f32.mxu0 %v318
    %3170 = vmatmul.mubr.f32.gmra.mxu0 %v317
    %v3171 = vpop.f32.mrf.mxu0
    %v3172 = vadd.f32 %v3011, %v3171
    %v3173 = vpop.f32.mrf.mxu0
    %v3174 = vadd.f32 %v3013, %v3173
    %3175 = vmatprep.mubr.f32.mxu0 %v334
    %3176 = vmatmul.mubr.f32.gmra.mxu0 %v333
    %v3177 = vpop.f32.mrf.mxu0
    %v3178 = vadd.f32 %v3017, %v3177
    %v3179 = vpop.f32.mrf.mxu0
    %v3180 = vadd.f32 %v3019, %v3179
    %3181 = vmatprep.mubr.f32.mxu0 %v350
    %3182 = vmatmul.mubr.f32.gmra.mxu0 %v349
    %v3183 = vpop.f32.mrf.mxu0
    %v3184 = vadd.f32 %v3023, %v3183
    %v3185 = vpop.f32.mrf.mxu0
    %v3186 = vadd.f32 %v3025, %v3185
    %3187 = vmatprep.mubr.f32.mxu0 %v366
    %3188 = vmatmul.mubr.f32.gmra.mxu0 %v365
    %v3189 = vpop.f32.mrf.mxu0
    %v3190 = vadd.f32 %v3029, %v3189
    %v3191 = vpop.f32.mrf.mxu0
    %v3192 = vadd.f32 %v3031, %v3191
    %3193 = vdwg.mxu0
    %3194 = vmatprep.subr.mxu0 %v824
    %3195 = vmatpush1.msra.mxu0 %v823
    %3196 = vmatprep.subr.mxu0 %v820
    %3197 = vmatpush1.msra.mxu0 %v819
    %3198 = vmatprep.subr.mxu0 %v816
    %3199 = vmatpush1.msra.mxu0 %v815
    %3200 = vmatprep.subr.mxu0 %v812
    %3201 = vmatpush1.msra.mxu0 %v811
    %3202 = vmatprep.subr.mxu0 %v808
    %3203 = vmatpush1.msra.mxu0 %v807
    %3204 = vmatprep.subr.mxu0 %v804
    %3205 = vmatpush1.msra.mxu0 %v803
    %3206 = vmatprep.subr.mxu0 %v800
    %3207 = vmatpush1.msra.mxu0 %v799
    %3208 = vmatprep.subr.mxu0 %v796
    %3209 = vmatpush1.msra.mxu0 %v795
    %3210 = vmatprep.subr.mxu0 %v792
    %3211 = vmatpush1.msra.mxu0 %v791
    %3212 = vmatprep.subr.mxu0 %v788
    %3213 = vmatpush1.msra.mxu0 %v787
    %3214 = vmatprep.subr.mxu0 %v784
    %3215 = vmatpush1.msra.mxu0 %v783
    %3216 = vmatprep.subr.mxu0 %v780
    %3217 = vmatpush1.msra.mxu0 %v779
    %3218 = vmatprep.subr.mxu0 %v776
    %3219 = vmatpush1.msra.mxu0 %v775
    %3220 = vmatprep.subr.mxu0 %v772
    %3221 = vmatpush1.msra.mxu0 %v771
    %3222 = vmatprep.subr.mxu0 %v768
    %3223 = vmatpush1.msra.mxu0 %v767
    %3224 = vmatprep.subr.mxu0 %v764
    %3225 = vmatpush1.msra.mxu0 %v763
    %3226 = vmatprep.subr.mxu0 %v888
    %3227 = vmatpush2.msra.mxu0 %v887
    %3228 = vmatprep.subr.mxu0 %v884
    %3229 = vmatpush2.msra.mxu0 %v883
    %3230 = vmatprep.subr.mxu0 %v880
    %3231 = vmatpush2.msra.mxu0 %v879
    %3232 = vmatprep.subr.mxu0 %v876
    %3233 = vmatpush2.msra.mxu0 %v875
    %3234 = vmatprep.subr.mxu0 %v872
    %3235 = vmatpush2.msra.mxu0 %v871
    %3236 = vmatprep.subr.mxu0 %v868
    %3237 = vmatpush2.msra.mxu0 %v867
    %3238 = vmatprep.subr.mxu0 %v864
    %3239 = vmatpush2.msra.mxu0 %v863
    %3240 = vmatprep.subr.mxu0 %v860
    %3241 = vmatpush2.msra.mxu0 %v859
    %3242 = vmatprep.subr.mxu0 %v856
    %3243 = vmatpush2.msra.mxu0 %v855
    %3244 = vmatprep.subr.mxu0 %v852
    %3245 = vmatpush2.msra.mxu0 %v851
    %3246 = vmatprep.subr.mxu0 %v848
    %3247 = vmatpush2.msra.mxu0 %v847
    %3248 = vmatprep.subr.mxu0 %v844
    %3249 = vmatpush2.msra.mxu0 %v843
    %3250 = vmatprep.subr.mxu0 %v840
    %3251 = vmatpush2.msra.mxu0 %v839
    %3252 = vmatprep.subr.mxu0 %v836
    %3253 = vmatpush2.msra.mxu0 %v835
    %3254 = vmatprep.subr.mxu0 %v832
    %3255 = vmatpush2.msra.mxu0 %v831
    %3256 = vmatprep.subr.mxu0 %v828
    %3257 = vmatpush2.msra.mxu0 %v827
    %3258 = vmatprep.mubr.f32.mxu0 %v128
    %3259 = vmatmul.mubr.f32.gmra.mxu0 %v127
    %v3260 = vpop.f32.mrf.mxu0
    %v3261 = vadd.f32 %v3100, %v3260
    %v3262 = vpop.f32.mrf.mxu0
    %v3263 = vadd.f32 %v3102, %v3262
    %3264 = vmatprep.mubr.f32.mxu0 %v144
    %3265 = vmatmul.mubr.f32.gmra.mxu0 %v143
    %v3266 = vpop.f32.mrf.mxu0
    %v3267 = vadd.f32 %v3106, %v3266
    %v3268 = vpop.f32.mrf.mxu0
    %v3269 = vadd.f32 %v3108, %v3268
    %3270 = vmatprep.mubr.f32.mxu0 %v160
    %3271 = vmatmul.mubr.f32.gmra.mxu0 %v159
    %v3272 = vpop.f32.mrf.mxu0
    %v3273 = vadd.f32 %v3112, %v3272
    %v3274 = vpop.f32.mrf.mxu0
    %v3275 = vadd.f32 %v3114, %v3274
    %3276 = vmatprep.mubr.f32.mxu0 %v176
    %3277 = vmatmul.mubr.f32.gmra.mxu0 %v175
    %v3278 = vpop.f32.mrf.mxu0
    %v3279 = vadd.f32 %v3118, %v3278
    %v3280 = vpop.f32.mrf.mxu0
    %v3281 = vadd.f32 %v3120, %v3280
    %3282 = vmatprep.mubr.f32.mxu0 %v192
    %3283 = vmatmul.mubr.f32.gmra.mxu0 %v191
    %v3284 = vpop.f32.mrf.mxu0
    %v3285 = vadd.f32 %v3124, %v3284
    %v3286 = vpop.f32.mrf.mxu0
    %v3287 = vadd.f32 %v3126, %v3286
    %3288 = vmatprep.mubr.f32.mxu0 %v208
    %3289 = vmatmul.mubr.f32.gmra.mxu0 %v207
    %v3290 = vpop.f32.mrf.mxu0
    %v3291 = vadd.f32 %v3130, %v3290
    %v3292 = vpop.f32.mrf.mxu0
    %v3293 = vadd.f32 %v3132, %v3292
    %3294 = vmatprep.mubr.f32.mxu0 %v224
    %3295 = vmatmul.mubr.f32.gmra.mxu0 %v223
    %v3296 = vpop.f32.mrf.mxu0
    %v3297 = vadd.f32 %v3136, %v3296
    %v3298 = vpop.f32.mrf.mxu0
    %v3299 = vadd.f32 %v3138, %v3298
    %3300 = vmatprep.mubr.f32.mxu0 %v240
    %3301 = vmatmul.mubr.f32.gmra.mxu0 %v239
    %v3302 = vpop.f32.mrf.mxu0
    %v3303 = vadd.f32 %v3142, %v3302
    %v3304 = vpop.f32.mrf.mxu0
    %v3305 = vadd.f32 %v3144, %v3304
    %3306 = vmatprep.mubr.f32.mxu0 %v256
    %3307 = vmatmul.mubr.f32.gmra.mxu0 %v255
    %v3308 = vpop.f32.mrf.mxu0
    %v3309 = vadd.f32 %v3148, %v3308
    %v3310 = vpop.f32.mrf.mxu0
    %v3311 = vadd.f32 %v3150, %v3310
    %3312 = vmatprep.mubr.f32.mxu0 %v272
    %3313 = vmatmul.mubr.f32.gmra.mxu0 %v271
    %v3314 = vpop.f32.mrf.mxu0
    %v3315 = vadd.f32 %v3154, %v3314
    %v3316 = vpop.f32.mrf.mxu0
    %v3317 = vadd.f32 %v3156, %v3316
    %3318 = vmatprep.mubr.f32.mxu0 %v288
    %3319 = vmatmul.mubr.f32.gmra.mxu0 %v287
    %v3320 = vpop.f32.mrf.mxu0
    %v3321 = vadd.f32 %v3160, %v3320
    %v3322 = vpop.f32.mrf.mxu0
    %v3323 = vadd.f32 %v3162, %v3322
    %3324 = vmatprep.mubr.f32.mxu0 %v304
    %3325 = vmatmul.mubr.f32.gmra.mxu0 %v303
    %v3326 = vpop.f32.mrf.mxu0
    %v3327 = vadd.f32 %v3166, %v3326
    %v3328 = vpop.f32.mrf.mxu0
    %v3329 = vadd.f32 %v3168, %v3328
    %3330 = vmatprep.mubr.f32.mxu0 %v320
    %3331 = vmatmul.mubr.f32.gmra.mxu0 %v319
    %v3332 = vpop.f32.mrf.mxu0
    %v3333 = vadd.f32 %v3172, %v3332
    %v3334 = vpop.f32.mrf.mxu0
    %v3335 = vadd.f32 %v3174, %v3334
    %3336 = vmatprep.mubr.f32.mxu0 %v336
    %3337 = vmatmul.mubr.f32.gmra.mxu0 %v335
    %v3338 = vpop.f32.mrf.mxu0
    %v3339 = vadd.f32 %v3178, %v3338
    %v3340 = vpop.f32.mrf.mxu0
    %v3341 = vadd.f32 %v3180, %v3340
    %3342 = vmatprep.mubr.f32.mxu0 %v352
    %3343 = vmatmul.mubr.f32.gmra.mxu0 %v351
    %v3344 = vpop.f32.mrf.mxu0
    %v3345 = vadd.f32 %v3184, %v3344
    %v3346 = vpop.f32.mrf.mxu0
    %v3347 = vadd.f32 %v3186, %v3346
    %3348 = vmatprep.mubr.f32.mxu0 %v368
    %3349 = vmatmul.mubr.f32.gmra.mxu0 %v367
    %v3350 = vpop.f32.mrf.mxu0
    %v3351 = vadd.f32 %v3190, %v3350
    %v3352 = vpop.f32.mrf.mxu0
    %v3353 = vadd.f32 %v3192, %v3352
    %3354 = vdwg.mxu0
    %3355 = vmatprep.subr.mxu0 %v952
    %3356 = vmatpush1.msra.mxu0 %v951
    %3357 = vmatprep.subr.mxu0 %v948
    %3358 = vmatpush1.msra.mxu0 %v947
    %3359 = vmatprep.subr.mxu0 %v944
    %3360 = vmatpush1.msra.mxu0 %v943
    %3361 = vmatprep.subr.mxu0 %v940
    %3362 = vmatpush1.msra.mxu0 %v939
    %3363 = vmatprep.subr.mxu0 %v936
    %3364 = vmatpush1.msra.mxu0 %v935
    %3365 = vmatprep.subr.mxu0 %v932
    %3366 = vmatpush1.msra.mxu0 %v931
    %3367 = vmatprep.subr.mxu0 %v928
    %3368 = vmatpush1.msra.mxu0 %v927
    %3369 = vmatprep.subr.mxu0 %v924
    %3370 = vmatpush1.msra.mxu0 %v923
    %3371 = vmatprep.subr.mxu0 %v920
    %3372 = vmatpush1.msra.mxu0 %v919
    %3373 = vmatprep.subr.mxu0 %v916
    %3374 = vmatpush1.msra.mxu0 %v915
    %3375 = vmatprep.subr.mxu0 %v912
    %3376 = vmatpush1.msra.mxu0 %v911
    %3377 = vmatprep.subr.mxu0 %v908
    %3378 = vmatpush1.msra.mxu0 %v907
    %3379 = vmatprep.subr.mxu0 %v904
    %3380 = vmatpush1.msra.mxu0 %v903
    %3381 = vmatprep.subr.mxu0 %v900
    %3382 = vmatpush1.msra.mxu0 %v899
    %3383 = vmatprep.subr.mxu0 %v896
    %3384 = vmatpush1.msra.mxu0 %v895
    %3385 = vmatprep.subr.mxu0 %v892
    %3386 = vmatpush1.msra.mxu0 %v891
    %3387 = vmatprep.subr.mxu0 %v1016
    %3388 = vmatpush2.msra.mxu0 %v1015
    %3389 = vmatprep.subr.mxu0 %v1012
    %3390 = vmatpush2.msra.mxu0 %v1011
    %3391 = vmatprep.subr.mxu0 %v1008
    %3392 = vmatpush2.msra.mxu0 %v1007
    %3393 = vmatprep.subr.mxu0 %v1004
    %3394 = vmatpush2.msra.mxu0 %v1003
    %3395 = vmatprep.subr.mxu0 %v1000
    %3396 = vmatpush2.msra.mxu0 %v999
    %3397 = vmatprep.subr.mxu0 %v996
    %3398 = vmatpush2.msra.mxu0 %v995
    %3399 = vmatprep.subr.mxu0 %v992
    %3400 = vmatpush2.msra.mxu0 %v991
    %3401 = vmatprep.subr.mxu0 %v988
    %3402 = vmatpush2.msra.mxu0 %v987
    %3403 = vmatprep.subr.mxu0 %v984
    %3404 = vmatpush2.msra.mxu0 %v983
    %3405 = vmatprep.subr.mxu0 %v980
    %3406 = vmatpush2.msra.mxu0 %v979
    %3407 = vmatprep.subr.mxu0 %v976
    %3408 = vmatpush2.msra.mxu0 %v975
    %3409 = vmatprep.subr.mxu0 %v972
    %3410 = vmatpush2.msra.mxu0 %v971
    %3411 = vmatprep.subr.mxu0 %v968
    %3412 = vmatpush2.msra.mxu0 %v967
    %3413 = vmatprep.subr.mxu0 %v964
    %3414 = vmatpush2.msra.mxu0 %v963
    %3415 = vmatprep.subr.mxu0 %v960
    %3416 = vmatpush2.msra.mxu0 %v959
    %3417 = vmatprep.subr.mxu0 %v956
    %3418 = vmatpush2.msra.mxu0 %v955
    %3419 = vmatprep.mubr.f32.mxu0 %v130
    %3420 = vmatmul.mubr.f32.gmra.mxu0 %v129
    %v3421 = vpop.f32.mrf.mxu0
    %v3422 = vadd.f32 %v3261, %v3421
    %v3423 = vpop.f32.mrf.mxu0
    %v3424 = vadd.f32 %v3263, %v3423
    %3425 = vmatprep.mubr.f32.mxu0 %v146
    %3426 = vmatmul.mubr.f32.gmra.mxu0 %v145
    %v3427 = vpop.f32.mrf.mxu0
    %v3428 = vadd.f32 %v3267, %v3427
    %v3429 = vpop.f32.mrf.mxu0
    %v3430 = vadd.f32 %v3269, %v3429
    %3431 = vmatprep.mubr.f32.mxu0 %v162
    %3432 = vmatmul.mubr.f32.gmra.mxu0 %v161
    %v3433 = vpop.f32.mrf.mxu0
    %v3434 = vadd.f32 %v3273, %v3433
    %v3435 = vpop.f32.mrf.mxu0
    %v3436 = vadd.f32 %v3275, %v3435
    %3437 = vmatprep.mubr.f32.mxu0 %v178
    %3438 = vmatmul.mubr.f32.gmra.mxu0 %v177
    %v3439 = vpop.f32.mrf.mxu0
    %v3440 = vadd.f32 %v3279, %v3439
    %v3441 = vpop.f32.mrf.mxu0
    %v3442 = vadd.f32 %v3281, %v3441
    %3443 = vmatprep.mubr.f32.mxu0 %v194
    %3444 = vmatmul.mubr.f32.gmra.mxu0 %v193
    %v3445 = vpop.f32.mrf.mxu0
    %v3446 = vadd.f32 %v3285, %v3445
    %v3447 = vpop.f32.mrf.mxu0
    %v3448 = vadd.f32 %v3287, %v3447
    %3449 = vmatprep.mubr.f32.mxu0 %v210
    %3450 = vmatmul.mubr.f32.gmra.mxu0 %v209
    %v3451 = vpop.f32.mrf.mxu0
    %v3452 = vadd.f32 %v3291, %v3451
    %v3453 = vpop.f32.mrf.mxu0
    %v3454 = vadd.f32 %v3293, %v3453
    %3455 = vmatprep.mubr.f32.mxu0 %v226
    %3456 = vmatmul.mubr.f32.gmra.mxu0 %v225
    %v3457 = vpop.f32.mrf.mxu0
    %v3458 = vadd.f32 %v3297, %v3457
    %v3459 = vpop.f32.mrf.mxu0
    %v3460 = vadd.f32 %v3299, %v3459
    %3461 = vmatprep.mubr.f32.mxu0 %v242
    %3462 = vmatmul.mubr.f32.gmra.mxu0 %v241
    %v3463 = vpop.f32.mrf.mxu0
    %v3464 = vadd.f32 %v3303, %v3463
    %v3465 = vpop.f32.mrf.mxu0
    %v3466 = vadd.f32 %v3305, %v3465
    %3467 = vmatprep.mubr.f32.mxu0 %v258
    %3468 = vmatmul.mubr.f32.gmra.mxu0 %v257
    %v3469 = vpop.f32.mrf.mxu0
    %v3470 = vadd.f32 %v3309, %v3469
    %v3471 = vpop.f32.mrf.mxu0
    %v3472 = vadd.f32 %v3311, %v3471
    %3473 = vmatprep.mubr.f32.mxu0 %v274
    %3474 = vmatmul.mubr.f32.gmra.mxu0 %v273
    %v3475 = vpop.f32.mrf.mxu0
    %v3476 = vadd.f32 %v3315, %v3475
    %v3477 = vpop.f32.mrf.mxu0
    %v3478 = vadd.f32 %v3317, %v3477
    %3479 = vmatprep.mubr.f32.mxu0 %v290
    %3480 = vmatmul.mubr.f32.gmra.mxu0 %v289
    %v3481 = vpop.f32.mrf.mxu0
    %v3482 = vadd.f32 %v3321, %v3481
    %v3483 = vpop.f32.mrf.mxu0
    %v3484 = vadd.f32 %v3323, %v3483
    %3485 = vmatprep.mubr.f32.mxu0 %v306
    %3486 = vmatmul.mubr.f32.gmra.mxu0 %v305
    %v3487 = vpop.f32.mrf.mxu0
    %v3488 = vadd.f32 %v3327, %v3487
    %v3489 = vpop.f32.mrf.mxu0
    %v3490 = vadd.f32 %v3329, %v3489
    %3491 = vmatprep.mubr.f32.mxu0 %v322
    %3492 = vmatmul.mubr.f32.gmra.mxu0 %v321
    %v3493 = vpop.f32.mrf.mxu0
    %v3494 = vadd.f32 %v3333, %v3493
    %v3495 = vpop.f32.mrf.mxu0
    %v3496 = vadd.f32 %v3335, %v3495
    %3497 = vmatprep.mubr.f32.mxu0 %v338
    %3498 = vmatmul.mubr.f32.gmra.mxu0 %v337
    %v3499 = vpop.f32.mrf.mxu0
    %v3500 = vadd.f32 %v3339, %v3499
    %v3501 = vpop.f32.mrf.mxu0
    %v3502 = vadd.f32 %v3341, %v3501
    %3503 = vmatprep.mubr.f32.mxu0 %v354
    %3504 = vmatmul.mubr.f32.gmra.mxu0 %v353
    %v3505 = vpop.f32.mrf.mxu0
    %v3506 = vadd.f32 %v3345, %v3505
    %v3507 = vpop.f32.mrf.mxu0
    %v3508 = vadd.f32 %v3347, %v3507
    %3509 = vmatprep.mubr.f32.mxu0 %v370
    %3510 = vmatmul.mubr.f32.gmra.mxu0 %v369
    %v3511 = vpop.f32.mrf.mxu0
    %v3512 = vadd.f32 %v3351, %v3511
    %v3513 = vpop.f32.mrf.mxu0
    %v3514 = vadd.f32 %v3353, %v3513
    %3515 = vdwg.mxu0
    %3516 = vmatprep.subr.mxu0 %v1080
    %3517 = vmatpush1.msra.mxu0 %v1079
    %3518 = vmatprep.subr.mxu0 %v1076
    %3519 = vmatpush1.msra.mxu0 %v1075
    %3520 = vmatprep.subr.mxu0 %v1072
    %3521 = vmatpush1.msra.mxu0 %v1071
    %3522 = vmatprep.subr.mxu0 %v1068
    %3523 = vmatpush1.msra.mxu0 %v1067
    %3524 = vmatprep.subr.mxu0 %v1064
    %3525 = vmatpush1.msra.mxu0 %v1063
    %3526 = vmatprep.subr.mxu0 %v1060
    %3527 = vmatpush1.msra.mxu0 %v1059
    %3528 = vmatprep.subr.mxu0 %v1056
    %3529 = vmatpush1.msra.mxu0 %v1055
    %3530 = vmatprep.subr.mxu0 %v1052
    %3531 = vmatpush1.msra.mxu0 %v1051
    %3532 = vmatprep.subr.mxu0 %v1048
    %3533 = vmatpush1.msra.mxu0 %v1047
    %3534 = vmatprep.subr.mxu0 %v1044
    %3535 = vmatpush1.msra.mxu0 %v1043
    %3536 = vmatprep.subr.mxu0 %v1040
    %3537 = vmatpush1.msra.mxu0 %v1039
    %3538 = vmatprep.subr.mxu0 %v1036
    %3539 = vmatpush1.msra.mxu0 %v1035
    %3540 = vmatprep.subr.mxu0 %v1032
    %3541 = vmatpush1.msra.mxu0 %v1031
    %3542 = vmatprep.subr.mxu0 %v1028
    %3543 = vmatpush1.msra.mxu0 %v1027
    %3544 = vmatprep.subr.mxu0 %v1024
    %3545 = vmatpush1.msra.mxu0 %v1023
    %3546 = vmatprep.subr.mxu0 %v1020
    %3547 = vmatpush1.msra.mxu0 %v1019
    %3548 = vmatprep.subr.mxu0 %v1144
    %3549 = vmatpush2.msra.mxu0 %v1143
    %3550 = vmatprep.subr.mxu0 %v1140
    %3551 = vmatpush2.msra.mxu0 %v1139
    %3552 = vmatprep.subr.mxu0 %v1136
    %3553 = vmatpush2.msra.mxu0 %v1135
    %3554 = vmatprep.subr.mxu0 %v1132
    %3555 = vmatpush2.msra.mxu0 %v1131
    %3556 = vmatprep.subr.mxu0 %v1128
    %3557 = vmatpush2.msra.mxu0 %v1127
    %3558 = vmatprep.subr.mxu0 %v1124
    %3559 = vmatpush2.msra.mxu0 %v1123
    %3560 = vmatprep.subr.mxu0 %v1120
    %3561 = vmatpush2.msra.mxu0 %v1119
    %3562 = vmatprep.subr.mxu0 %v1116
    %3563 = vmatpush2.msra.mxu0 %v1115
    %3564 = vmatprep.subr.mxu0 %v1112
    %3565 = vmatpush2.msra.mxu0 %v1111
    %3566 = vmatprep.subr.mxu0 %v1108
    %3567 = vmatpush2.msra.mxu0 %v1107
    %3568 = vmatprep.subr.mxu0 %v1104
    %3569 = vmatpush2.msra.mxu0 %v1103
    %3570 = vmatprep.subr.mxu0 %v1100
    %3571 = vmatpush2.msra.mxu0 %v1099
    %3572 = vmatprep.subr.mxu0 %v1096
    %3573 = vmatpush2.msra.mxu0 %v1095
    %3574 = vmatprep.subr.mxu0 %v1092
    %3575 = vmatpush2.msra.mxu0 %v1091
    %3576 = vmatprep.subr.mxu0 %v1088
    %3577 = vmatpush2.msra.mxu0 %v1087
    %3578 = vmatprep.subr.mxu0 %v1084
    %3579 = vmatpush2.msra.mxu0 %v1083
    %3580 = vmatprep.mubr.f32.mxu0 %v132
    %3581 = vmatmul.mubr.f32.gmra.mxu0 %v131
    %v3582 = vpop.f32.mrf.mxu0
    %v3583 = vadd.f32 %v3422, %v3582
    %v3584 = vpop.f32.mrf.mxu0
    %v3585 = vadd.f32 %v3424, %v3584
    %3586 = vmatprep.mubr.f32.mxu0 %v148
    %3587 = vmatmul.mubr.f32.gmra.mxu0 %v147
    %v3588 = vpop.f32.mrf.mxu0
    %v3589 = vadd.f32 %v3428, %v3588
    %v3590 = vpop.f32.mrf.mxu0
    %v3591 = vadd.f32 %v3430, %v3590
    %3592 = vmatprep.mubr.f32.mxu0 %v164
    %3593 = vmatmul.mubr.f32.gmra.mxu0 %v163
    %v3594 = vpop.f32.mrf.mxu0
    %v3595 = vadd.f32 %v3434, %v3594
    %v3596 = vpop.f32.mrf.mxu0
    %v3597 = vadd.f32 %v3436, %v3596
    %3598 = vmatprep.mubr.f32.mxu0 %v180
    %3599 = vmatmul.mubr.f32.gmra.mxu0 %v179
    %v3600 = vpop.f32.mrf.mxu0
    %v3601 = vadd.f32 %v3440, %v3600
    %v3602 = vpop.f32.mrf.mxu0
    %v3603 = vadd.f32 %v3442, %v3602
    %3604 = vmatprep.mubr.f32.mxu0 %v196
    %3605 = vmatmul.mubr.f32.gmra.mxu0 %v195
    %v3606 = vpop.f32.mrf.mxu0
    %v3607 = vadd.f32 %v3446, %v3606
    %v3608 = vpop.f32.mrf.mxu0
    %v3609 = vadd.f32 %v3448, %v3608
    %3610 = vmatprep.mubr.f32.mxu0 %v212
    %3611 = vmatmul.mubr.f32.gmra.mxu0 %v211
    %v3612 = vpop.f32.mrf.mxu0
    %v3613 = vadd.f32 %v3452, %v3612
    %v3614 = vpop.f32.mrf.mxu0
    %v3615 = vadd.f32 %v3454, %v3614
    %3616 = vmatprep.mubr.f32.mxu0 %v228
    %3617 = vmatmul.mubr.f32.gmra.mxu0 %v227
    %v3618 = vpop.f32.mrf.mxu0
    %v3619 = vadd.f32 %v3458, %v3618
    %v3620 = vpop.f32.mrf.mxu0
    %v3621 = vadd.f32 %v3460, %v3620
    %3622 = vmatprep.mubr.f32.mxu0 %v244
    %3623 = vmatmul.mubr.f32.gmra.mxu0 %v243
    %v3624 = vpop.f32.mrf.mxu0
    %v3625 = vadd.f32 %v3464, %v3624
    %v3626 = vpop.f32.mrf.mxu0
    %v3627 = vadd.f32 %v3466, %v3626
    %3628 = vmatprep.mubr.f32.mxu0 %v260
    %3629 = vmatmul.mubr.f32.gmra.mxu0 %v259
    %v3630 = vpop.f32.mrf.mxu0
    %v3631 = vadd.f32 %v3470, %v3630
    %v3632 = vpop.f32.mrf.mxu0
    %v3633 = vadd.f32 %v3472, %v3632
    %3634 = vmatprep.mubr.f32.mxu0 %v276
    %3635 = vmatmul.mubr.f32.gmra.mxu0 %v275
    %v3636 = vpop.f32.mrf.mxu0
    %v3637 = vadd.f32 %v3476, %v3636
    %v3638 = vpop.f32.mrf.mxu0
    %v3639 = vadd.f32 %v3478, %v3638
    %3640 = vmatprep.mubr.f32.mxu0 %v292
    %3641 = vmatmul.mubr.f32.gmra.mxu0 %v291
    %v3642 = vpop.f32.mrf.mxu0
    %v3643 = vadd.f32 %v3482, %v3642
    %v3644 = vpop.f32.mrf.mxu0
    %v3645 = vadd.f32 %v3484, %v3644
    %3646 = vmatprep.mubr.f32.mxu0 %v308
    %3647 = vmatmul.mubr.f32.gmra.mxu0 %v307
    %v3648 = vpop.f32.mrf.mxu0
    %v3649 = vadd.f32 %v3488, %v3648
    %v3650 = vpop.f32.mrf.mxu0
    %v3651 = vadd.f32 %v3490, %v3650
    %3652 = vmatprep.mubr.f32.mxu0 %v324
    %3653 = vmatmul.mubr.f32.gmra.mxu0 %v323
    %v3654 = vpop.f32.mrf.mxu0
    %v3655 = vadd.f32 %v3494, %v3654
    %v3656 = vpop.f32.mrf.mxu0
    %v3657 = vadd.f32 %v3496, %v3656
    %3658 = vmatprep.mubr.f32.mxu0 %v340
    %3659 = vmatmul.mubr.f32.gmra.mxu0 %v339
    %v3660 = vpop.f32.mrf.mxu0
    %v3661 = vadd.f32 %v3500, %v3660
    %v3662 = vpop.f32.mrf.mxu0
    %v3663 = vadd.f32 %v3502, %v3662
    %3664 = vmatprep.mubr.f32.mxu0 %v356
    %3665 = vmatmul.mubr.f32.gmra.mxu0 %v355
    %v3666 = vpop.f32.mrf.mxu0
    %v3667 = vadd.f32 %v3506, %v3666
    %v3668 = vpop.f32.mrf.mxu0
    %v3669 = vadd.f32 %v3508, %v3668
    %3670 = vmatprep.mubr.f32.mxu0 %v372
    %3671 = vmatmul.mubr.f32.gmra.mxu0 %v371
    %v3672 = vpop.f32.mrf.mxu0
    %v3673 = vadd.f32 %v3512, %v3672
    %v3674 = vpop.f32.mrf.mxu0
    %v3675 = vadd.f32 %v3514, %v3674
    %3676 = vdwg.mxu0
    %3677 = vmatprep.subr.mxu0 %v1208
    %3678 = vmatpush1.msra.mxu0 %v1207
    %3679 = vmatprep.subr.mxu0 %v1204
    %3680 = vmatpush1.msra.mxu0 %v1203
    %3681 = vmatprep.subr.mxu0 %v1200
    %3682 = vmatpush1.msra.mxu0 %v1199
    %3683 = vmatprep.subr.mxu0 %v1196
    %3684 = vmatpush1.msra.mxu0 %v1195
    %3685 = vmatprep.subr.mxu0 %v1192
    %3686 = vmatpush1.msra.mxu0 %v1191
    %3687 = vmatprep.subr.mxu0 %v1188
    %3688 = vmatpush1.msra.mxu0 %v1187
    %3689 = vmatprep.subr.mxu0 %v1184
    %3690 = vmatpush1.msra.mxu0 %v1183
    %3691 = vmatprep.subr.mxu0 %v1180
    %3692 = vmatpush1.msra.mxu0 %v1179
    %3693 = vmatprep.subr.mxu0 %v1176
    %3694 = vmatpush1.msra.mxu0 %v1175
    %3695 = vmatprep.subr.mxu0 %v1172
    %3696 = vmatpush1.msra.mxu0 %v1171
    %3697 = vmatprep.subr.mxu0 %v1168
    %3698 = vmatpush1.msra.mxu0 %v1167
    %3699 = vmatprep.subr.mxu0 %v1164
    %3700 = vmatpush1.msra.mxu0 %v1163
    %3701 = vmatprep.subr.mxu0 %v1160
    %3702 = vmatpush1.msra.mxu0 %v1159
    %3703 = vmatprep.subr.mxu0 %v1156
    %3704 = vmatpush1.msra.mxu0 %v1155
    %3705 = vmatprep.subr.mxu0 %v1152
    %3706 = vmatpush1.msra.mxu0 %v1151
    %3707 = vmatprep.subr.mxu0 %v1148
    %3708 = vmatpush1.msra.mxu0 %v1147
    %3709 = vmatprep.subr.mxu0 %v1272
    %3710 = vmatpush2.msra.mxu0 %v1271
    %3711 = vmatprep.subr.mxu0 %v1268
    %3712 = vmatpush2.msra.mxu0 %v1267
    %3713 = vmatprep.subr.mxu0 %v1264
    %3714 = vmatpush2.msra.mxu0 %v1263
    %3715 = vmatprep.subr.mxu0 %v1260
    %3716 = vmatpush2.msra.mxu0 %v1259
    %3717 = vmatprep.subr.mxu0 %v1256
    %3718 = vmatpush2.msra.mxu0 %v1255
    %3719 = vmatprep.subr.mxu0 %v1252
    %3720 = vmatpush2.msra.mxu0 %v1251
    %3721 = vmatprep.subr.mxu0 %v1248
    %3722 = vmatpush2.msra.mxu0 %v1247
    %3723 = vmatprep.subr.mxu0 %v1244
    %3724 = vmatpush2.msra.mxu0 %v1243
    %3725 = vmatprep.subr.mxu0 %v1240
    %3726 = vmatpush2.msra.mxu0 %v1239
    %3727 = vmatprep.subr.mxu0 %v1236
    %3728 = vmatpush2.msra.mxu0 %v1235
    %3729 = vmatprep.subr.mxu0 %v1232
    %3730 = vmatpush2.msra.mxu0 %v1231
    %3731 = vmatprep.subr.mxu0 %v1228
    %3732 = vmatpush2.msra.mxu0 %v1227
    %3733 = vmatprep.subr.mxu0 %v1224
    %3734 = vmatpush2.msra.mxu0 %v1223
    %3735 = vmatprep.subr.mxu0 %v1220
    %3736 = vmatpush2.msra.mxu0 %v1219
    %3737 = vmatprep.subr.mxu0 %v1216
    %3738 = vmatpush2.msra.mxu0 %v1215
    %3739 = vmatprep.subr.mxu0 %v1212
    %3740 = vmatpush2.msra.mxu0 %v1211
    %3741 = vmatprep.mubr.f32.mxu0 %v134
    %3742 = vmatmul.mubr.f32.gmra.mxu0 %v133
    %v3743 = vpop.f32.mrf.mxu0
    %v3744 = vadd.f32 %v3583, %v3743
    %v3745 = vpop.f32.mrf.mxu0
    %v3746 = vadd.f32 %v3585, %v3745
    %3747 = vmatprep.mubr.f32.mxu0 %v150
    %3748 = vmatmul.mubr.f32.gmra.mxu0 %v149
    %v3749 = vpop.f32.mrf.mxu0
    %v3750 = vadd.f32 %v3589, %v3749
    %v3751 = vpop.f32.mrf.mxu0
    %v3752 = vadd.f32 %v3591, %v3751
    %3753 = vmatprep.mubr.f32.mxu0 %v166
    %3754 = vmatmul.mubr.f32.gmra.mxu0 %v165
    %v3755 = vpop.f32.mrf.mxu0
    %v3756 = vadd.f32 %v3595, %v3755
    %v3757 = vpop.f32.mrf.mxu0
    %v3758 = vadd.f32 %v3597, %v3757
    %3759 = vmatprep.mubr.f32.mxu0 %v182
    %3760 = vmatmul.mubr.f32.gmra.mxu0 %v181
    %v3761 = vpop.f32.mrf.mxu0
    %v3762 = vadd.f32 %v3601, %v3761
    %v3763 = vpop.f32.mrf.mxu0
    %v3764 = vadd.f32 %v3603, %v3763
    %3765 = vmatprep.mubr.f32.mxu0 %v198
    %3766 = vmatmul.mubr.f32.gmra.mxu0 %v197
    %v3767 = vpop.f32.mrf.mxu0
    %v3768 = vadd.f32 %v3607, %v3767
    %v3769 = vpop.f32.mrf.mxu0
    %v3770 = vadd.f32 %v3609, %v3769
    %3771 = vmatprep.mubr.f32.mxu0 %v214
    %3772 = vmatmul.mubr.f32.gmra.mxu0 %v213
    %v3773 = vpop.f32.mrf.mxu0
    %v3774 = vadd.f32 %v3613, %v3773
    %v3775 = vpop.f32.mrf.mxu0
    %v3776 = vadd.f32 %v3615, %v3775
    %3777 = vmatprep.mubr.f32.mxu0 %v230
    %3778 = vmatmul.mubr.f32.gmra.mxu0 %v229
    %v3779 = vpop.f32.mrf.mxu0
    %v3780 = vadd.f32 %v3619, %v3779
    %v3781 = vpop.f32.mrf.mxu0
    %v3782 = vadd.f32 %v3621, %v3781
    %3783 = vmatprep.mubr.f32.mxu0 %v246
    %3784 = vmatmul.mubr.f32.gmra.mxu0 %v245
    %v3785 = vpop.f32.mrf.mxu0
    %v3786 = vadd.f32 %v3625, %v3785
    %v3787 = vpop.f32.mrf.mxu0
    %v3788 = vadd.f32 %v3627, %v3787
    %3789 = vmatprep.mubr.f32.mxu0 %v262
    %3790 = vmatmul.mubr.f32.gmra.mxu0 %v261
    %v3791 = vpop.f32.mrf.mxu0
    %v3792 = vadd.f32 %v3631, %v3791
    %v3793 = vpop.f32.mrf.mxu0
    %v3794 = vadd.f32 %v3633, %v3793
    %3795 = vmatprep.mubr.f32.mxu0 %v278
    %3796 = vmatmul.mubr.f32.gmra.mxu0 %v277
    %v3797 = vpop.f32.mrf.mxu0
    %v3798 = vadd.f32 %v3637, %v3797
    %v3799 = vpop.f32.mrf.mxu0
    %v3800 = vadd.f32 %v3639, %v3799
    %3801 = vmatprep.mubr.f32.mxu0 %v294
    %3802 = vmatmul.mubr.f32.gmra.mxu0 %v293
    %v3803 = vpop.f32.mrf.mxu0
    %v3804 = vadd.f32 %v3643, %v3803
    %v3805 = vpop.f32.mrf.mxu0
    %v3806 = vadd.f32 %v3645, %v3805
    %3807 = vmatprep.mubr.f32.mxu0 %v310
    %3808 = vmatmul.mubr.f32.gmra.mxu0 %v309
    %v3809 = vpop.f32.mrf.mxu0
    %v3810 = vadd.f32 %v3649, %v3809
    %v3811 = vpop.f32.mrf.mxu0
    %v3812 = vadd.f32 %v3651, %v3811
    %3813 = vmatprep.mubr.f32.mxu0 %v326
    %3814 = vmatmul.mubr.f32.gmra.mxu0 %v325
    %v3815 = vpop.f32.mrf.mxu0
    %v3816 = vadd.f32 %v3655, %v3815
    %v3817 = vpop.f32.mrf.mxu0
    %v3818 = vadd.f32 %v3657, %v3817
    %3819 = vmatprep.mubr.f32.mxu0 %v342
    %3820 = vmatmul.mubr.f32.gmra.mxu0 %v341
    %v3821 = vpop.f32.mrf.mxu0
    %v3822 = vadd.f32 %v3661, %v3821
    %v3823 = vpop.f32.mrf.mxu0
    %v3824 = vadd.f32 %v3663, %v3823
    %3825 = vmatprep.mubr.f32.mxu0 %v358
    %3826 = vmatmul.mubr.f32.gmra.mxu0 %v357
    %v3827 = vpop.f32.mrf.mxu0
    %v3828 = vadd.f32 %v3667, %v3827
    %v3829 = vpop.f32.mrf.mxu0
    %v3830 = vadd.f32 %v3669, %v3829
    %3831 = vmatprep.mubr.f32.mxu0 %v374
    %3832 = vmatmul.mubr.f32.gmra.mxu0 %v373
    %v3833 = vpop.f32.mrf.mxu0
    %v3834 = vadd.f32 %v3673, %v3833
    %v3835 = vpop.f32.mrf.mxu0
    %v3836 = vadd.f32 %v3675, %v3835
    %3837 = vdwg.mxu0
    %3838 = vmatprep.subr.mxu0 %v1336
    %3839 = vmatpush1.msra.mxu0 %v1335
    %3840 = vmatprep.subr.mxu0 %v1332
    %3841 = vmatpush1.msra.mxu0 %v1331
    %3842 = vmatprep.subr.mxu0 %v1328
    %3843 = vmatpush1.msra.mxu0 %v1327
    %3844 = vmatprep.subr.mxu0 %v1324
    %3845 = vmatpush1.msra.mxu0 %v1323
    %3846 = vmatprep.subr.mxu0 %v1320
    %3847 = vmatpush1.msra.mxu0 %v1319
    %3848 = vmatprep.subr.mxu0 %v1316
    %3849 = vmatpush1.msra.mxu0 %v1315
    %3850 = vmatprep.subr.mxu0 %v1312
    %3851 = vmatpush1.msra.mxu0 %v1311
    %3852 = vmatprep.subr.mxu0 %v1308
    %3853 = vmatpush1.msra.mxu0 %v1307
    %3854 = vmatprep.subr.mxu0 %v1304
    %3855 = vmatpush1.msra.mxu0 %v1303
    %3856 = vmatprep.subr.mxu0 %v1300
    %3857 = vmatpush1.msra.mxu0 %v1299
    %3858 = vmatprep.subr.mxu0 %v1296
    %3859 = vmatpush1.msra.mxu0 %v1295
    %3860 = vmatprep.subr.mxu0 %v1292
    %3861 = vmatpush1.msra.mxu0 %v1291
    %3862 = vmatprep.subr.mxu0 %v1288
    %3863 = vmatpush1.msra.mxu0 %v1287
    %3864 = vmatprep.subr.mxu0 %v1284
    %3865 = vmatpush1.msra.mxu0 %v1283
    %3866 = vmatprep.subr.mxu0 %v1280
    %3867 = vmatpush1.msra.mxu0 %v1279
    %3868 = vmatprep.subr.mxu0 %v1276
    %3869 = vmatpush1.msra.mxu0 %v1275
    %3870 = vmatprep.subr.mxu0 %v1400
    %3871 = vmatpush2.msra.mxu0 %v1399
    %3872 = vmatprep.subr.mxu0 %v1396
    %3873 = vmatpush2.msra.mxu0 %v1395
    %3874 = vmatprep.subr.mxu0 %v1392
    %3875 = vmatpush2.msra.mxu0 %v1391
    %3876 = vmatprep.subr.mxu0 %v1388
    %3877 = vmatpush2.msra.mxu0 %v1387
    %3878 = vmatprep.subr.mxu0 %v1384
    %3879 = vmatpush2.msra.mxu0 %v1383
    %3880 = vmatprep.subr.mxu0 %v1380
    %3881 = vmatpush2.msra.mxu0 %v1379
    %3882 = vmatprep.subr.mxu0 %v1376
    %3883 = vmatpush2.msra.mxu0 %v1375
    %3884 = vmatprep.subr.mxu0 %v1372
    %3885 = vmatpush2.msra.mxu0 %v1371
    %3886 = vmatprep.subr.mxu0 %v1368
    %3887 = vmatpush2.msra.mxu0 %v1367
    %3888 = vmatprep.subr.mxu0 %v1364
    %3889 = vmatpush2.msra.mxu0 %v1363
    %3890 = vmatprep.subr.mxu0 %v1360
    %3891 = vmatpush2.msra.mxu0 %v1359
    %3892 = vmatprep.subr.mxu0 %v1356
    %3893 = vmatpush2.msra.mxu0 %v1355
    %3894 = vmatprep.subr.mxu0 %v1352
    %3895 = vmatpush2.msra.mxu0 %v1351
    %3896 = vmatprep.subr.mxu0 %v1348
    %3897 = vmatpush2.msra.mxu0 %v1347
    %3898 = vmatprep.subr.mxu0 %v1344
    %3899 = vmatpush2.msra.mxu0 %v1343
    %3900 = vmatprep.subr.mxu0 %v1340
    %3901 = vmatpush2.msra.mxu0 %v1339
    %3902 = vmatprep.mubr.f32.mxu0 %v136
    %3903 = vmatmul.mubr.f32.gmra.mxu0 %v135
    %v3904 = vpop.f32.mrf.mxu0
    %v3905 = vadd.f32 %v3744, %v3904
    %v3906 = vpop.f32.mrf.mxu0
    %v3907 = vadd.f32 %v3746, %v3906
    %3908 = vmatprep.mubr.f32.mxu0 %v152
    %3909 = vmatmul.mubr.f32.gmra.mxu0 %v151
    %v3910 = vpop.f32.mrf.mxu0
    %v3911 = vadd.f32 %v3750, %v3910
    %v3912 = vpop.f32.mrf.mxu0
    %v3913 = vadd.f32 %v3752, %v3912
    %3914 = vmatprep.mubr.f32.mxu0 %v168
    %3915 = vmatmul.mubr.f32.gmra.mxu0 %v167
    %v3916 = vpop.f32.mrf.mxu0
    %v3917 = vadd.f32 %v3756, %v3916
    %v3918 = vpop.f32.mrf.mxu0
    %v3919 = vadd.f32 %v3758, %v3918
    %3920 = vmatprep.mubr.f32.mxu0 %v184
    %3921 = vmatmul.mubr.f32.gmra.mxu0 %v183
    %v3922 = vpop.f32.mrf.mxu0
    %v3923 = vadd.f32 %v3762, %v3922
    %v3924 = vpop.f32.mrf.mxu0
    %v3925 = vadd.f32 %v3764, %v3924
    %3926 = vmatprep.mubr.f32.mxu0 %v200
    %3927 = vmatmul.mubr.f32.gmra.mxu0 %v199
    %v3928 = vpop.f32.mrf.mxu0
    %v3929 = vadd.f32 %v3768, %v3928
    %v3930 = vpop.f32.mrf.mxu0
    %v3931 = vadd.f32 %v3770, %v3930
    %3932 = vmatprep.mubr.f32.mxu0 %v216
    %3933 = vmatmul.mubr.f32.gmra.mxu0 %v215
    %v3934 = vpop.f32.mrf.mxu0
    %v3935 = vadd.f32 %v3774, %v3934
    %v3936 = vpop.f32.mrf.mxu0
    %v3937 = vadd.f32 %v3776, %v3936
    %3938 = vmatprep.mubr.f32.mxu0 %v232
    %3939 = vmatmul.mubr.f32.gmra.mxu0 %v231
    %v3940 = vpop.f32.mrf.mxu0
    %v3941 = vadd.f32 %v3780, %v3940
    %v3942 = vpop.f32.mrf.mxu0
    %v3943 = vadd.f32 %v3782, %v3942
    %3944 = vmatprep.mubr.f32.mxu0 %v248
    %3945 = vmatmul.mubr.f32.gmra.mxu0 %v247
    %v3946 = vpop.f32.mrf.mxu0
    %v3947 = vadd.f32 %v3786, %v3946
    %v3948 = vpop.f32.mrf.mxu0
    %v3949 = vadd.f32 %v3788, %v3948
    %3950 = vmatprep.mubr.f32.mxu0 %v264
    %3951 = vmatmul.mubr.f32.gmra.mxu0 %v263
    %v3952 = vpop.f32.mrf.mxu0
    %v3953 = vadd.f32 %v3792, %v3952
    %v3954 = vpop.f32.mrf.mxu0
    %v3955 = vadd.f32 %v3794, %v3954
    %3956 = vmatprep.mubr.f32.mxu0 %v280
    %3957 = vmatmul.mubr.f32.gmra.mxu0 %v279
    %v3958 = vpop.f32.mrf.mxu0
    %v3959 = vadd.f32 %v3798, %v3958
    %v3960 = vpop.f32.mrf.mxu0
    %v3961 = vadd.f32 %v3800, %v3960
    %3962 = vmatprep.mubr.f32.mxu0 %v296
    %3963 = vmatmul.mubr.f32.gmra.mxu0 %v295
    %v3964 = vpop.f32.mrf.mxu0
    %v3965 = vadd.f32 %v3804, %v3964
    %v3966 = vpop.f32.mrf.mxu0
    %v3967 = vadd.f32 %v3806, %v3966
    %3968 = vmatprep.mubr.f32.mxu0 %v312
    %3969 = vmatmul.mubr.f32.gmra.mxu0 %v311
    %v3970 = vpop.f32.mrf.mxu0
    %v3971 = vadd.f32 %v3810, %v3970
    %v3972 = vpop.f32.mrf.mxu0
    %v3973 = vadd.f32 %v3812, %v3972
    %3974 = vmatprep.mubr.f32.mxu0 %v328
    %3975 = vmatmul.mubr.f32.gmra.mxu0 %v327
    %v3976 = vpop.f32.mrf.mxu0
    %v3977 = vadd.f32 %v3816, %v3976
    %v3978 = vpop.f32.mrf.mxu0
    %v3979 = vadd.f32 %v3818, %v3978
    %3980 = vmatprep.mubr.f32.mxu0 %v344
    %3981 = vmatmul.mubr.f32.gmra.mxu0 %v343
    %v3982 = vpop.f32.mrf.mxu0
    %v3983 = vadd.f32 %v3822, %v3982
    %v3984 = vpop.f32.mrf.mxu0
    %v3985 = vadd.f32 %v3824, %v3984
    %3986 = vmatprep.mubr.f32.mxu0 %v360
    %3987 = vmatmul.mubr.f32.gmra.mxu0 %v359
    %v3988 = vpop.f32.mrf.mxu0
    %v3989 = vadd.f32 %v3828, %v3988
    %v3990 = vpop.f32.mrf.mxu0
    %v3991 = vadd.f32 %v3830, %v3990
    %3992 = vmatprep.mubr.f32.mxu0 %v376
    %3993 = vmatmul.mubr.f32.gmra.mxu0 %v375
    %v3994 = vpop.f32.mrf.mxu0
    %v3995 = vadd.f32 %v3834, %v3994
    %v3996 = vpop.f32.mrf.mxu0
    %v3997 = vadd.f32 %v3836, %v3996
    %3998 = vdwg.mxu0
    %vm3999 = vcmp.gt.f32.partialorder %v2617, 0.0
    %vm4000 = vcmp.gt.f32.partialorder %v2619, 0.0
    %vm4001 = vcmp.gt.f32.partialorder %v3905, 0.0
    %vm4002 = vcmp.gt.f32.partialorder %v3907, 0.0
    %vm4003 = vcmp.gt.f32.partialorder %v2623, 0.0
    %vm4004 = vcmp.gt.f32.partialorder %v2625, 0.0
    %vm4005 = vcmp.gt.f32.partialorder %v3911, 0.0
    %vm4006 = vcmp.gt.f32.partialorder %v3913, 0.0
    %vm4007 = vcmp.gt.f32.partialorder %v2629, 0.0
    %vm4008 = vcmp.gt.f32.partialorder %v2631, 0.0
    %vm4009 = vcmp.gt.f32.partialorder %v3917, 0.0
    %vm4010 = vcmp.gt.f32.partialorder %v3919, 0.0
    %vm4011 = vcmp.gt.f32.partialorder %v2635, 0.0
    %vm4012 = vcmp.gt.f32.partialorder %v2637, 0.0
    %vm4013 = vcmp.gt.f32.partialorder %v3923, 0.0
    %vm4014 = vcmp.gt.f32.partialorder %v3925, 0.0
    %vm4015 = vcmp.gt.f32.partialorder %v2641, 0.0
    %vm4016 = vcmp.gt.f32.partialorder %v2643, 0.0
    %vm4017 = vcmp.gt.f32.partialorder %v3929, 0.0
    %vm4018 = vcmp.gt.f32.partialorder %v3931, 0.0
    %vm4019 = vcmp.gt.f32.partialorder %v2647, 0.0
    %vm4020 = vcmp.gt.f32.partialorder %v2649, 0.0
    %vm4021 = vcmp.gt.f32.partialorder %v3935, 0.0
    %vm4022 = vcmp.gt.f32.partialorder %v3937, 0.0
    %vm4023 = vcmp.gt.f32.partialorder %v2653, 0.0
    %vm4024 = vcmp.gt.f32.partialorder %v2655, 0.0
    %vm4025 = vcmp.gt.f32.partialorder %v3941, 0.0
    %vm4026 = vcmp.gt.f32.partialorder %v3943, 0.0
    %vm4027 = vcmp.gt.f32.partialorder %v2659, 0.0
    %vm4028 = vcmp.gt.f32.partialorder %v2661, 0.0
    %vm4029 = vcmp.gt.f32.partialorder %v3947, 0.0
    %vm4030 = vcmp.gt.f32.partialorder %v3949, 0.0
    %vm4031 = vcmp.gt.f32.partialorder %v2665, 0.0
    %vm4032 = vcmp.gt.f32.partialorder %v2667, 0.0
    %vm4033 = vcmp.gt.f32.partialorder %v3953, 0.0
    %vm4034 = vcmp.gt.f32.partialorder %v3955, 0.0
    %vm4035 = vcmp.gt.f32.partialorder %v2671, 0.0
    %vm4036 = vcmp.gt.f32.partialorder %v2673, 0.0
    %vm4037 = vcmp.gt.f32.partialorder %v3959, 0.0
    %vm4038 = vcmp.gt.f32.partialorder %v3961, 0.0
    %vm4039 = vcmp.gt.f32.partialorder %v2677, 0.0
    %vm4040 = vcmp.gt.f32.partialorder %v2679, 0.0
    %vm4041 = vcmp.gt.f32.partialorder %v3965, 0.0
    %vm4042 = vcmp.gt.f32.partialorder %v3967, 0.0
    %vm4043 = vcmp.gt.f32.partialorder %v2683, 0.0
    %vm4044 = vcmp.gt.f32.partialorder %v2685, 0.0
    %vm4045 = vcmp.gt.f32.partialorder %v3971, 0.0
    %vm4046 = vcmp.gt.f32.partialorder %v3973, 0.0
    %vm4047 = vcmp.gt.f32.partialorder %v2689, 0.0
    %vm4048 = vcmp.gt.f32.partialorder %v2691, 0.0
    %vm4049 = vcmp.gt.f32.partialorder %v3977, 0.0
    %vm4050 = vcmp.gt.f32.partialorder %v3979, 0.0
    %vm4051 = vcmp.gt.f32.partialorder %v2695, 0.0
    %vm4052 = vcmp.gt.f32.partialorder %v2697, 0.0
    %vm4053 = vcmp.gt.f32.partialorder %v3983, 0.0
    %vm4054 = vcmp.gt.f32.partialorder %v3985, 0.0
    %vm4055 = vcmp.gt.f32.partialorder %v2701, 0.0
    %vm4056 = vcmp.gt.f32.partialorder %v2703, 0.0
    %vm4057 = vcmp.gt.f32.partialorder %v3989, 0.0
    %vm4058 = vcmp.gt.f32.partialorder %v3991, 0.0
    %vm4059 = vcmp.gt.f32.partialorder %v2707, 0.0
    %vm4060 = vcmp.gt.f32.partialorder %v2709, 0.0
    %vm4061 = vcmp.gt.f32.partialorder %v3995, 0.0
    %vm4062 = vcmp.gt.f32.partialorder %v3997, 0.0
    %v4063 = vmul.f32 %v2617, 0.01
    %v4064 = vmul.f32 %v2619, 0.01
    %v4065 = vmul.f32 %v3905, 0.01
    %v4066 = vmul.f32 %v3907, 0.01
    %v4067 = vmul.f32 %v2623, 0.01
    %v4068 = vmul.f32 %v2625, 0.01
    %v4069 = vmul.f32 %v3911, 0.01
    %v4070 = vmul.f32 %v3913, 0.01
    %v4071 = vmul.f32 %v2629, 0.01
    %v4072 = vmul.f32 %v2631, 0.01
    %v4073 = vmul.f32 %v3917, 0.01
    %v4074 = vmul.f32 %v3919, 0.01
    %v4075 = vmul.f32 %v2635, 0.01
    %v4076 = vmul.f32 %v2637, 0.01
    %v4077 = vmul.f32 %v3923, 0.01
    %v4078 = vmul.f32 %v3925, 0.01
    %v4079 = vmul.f32 %v2641, 0.01
    %v4080 = vmul.f32 %v2643, 0.01
    %v4081 = vmul.f32 %v3929, 0.01
    %v4082 = vmul.f32 %v3931, 0.01
    %v4083 = vmul.f32 %v2647, 0.01
    %v4084 = vmul.f32 %v2649, 0.01
    %v4085 = vmul.f32 %v3935, 0.01
    %v4086 = vmul.f32 %v3937, 0.01
    %v4087 = vmul.f32 %v2653, 0.01
    %v4088 = vmul.f32 %v2655, 0.01
    %v4089 = vmul.f32 %v3941, 0.01
    %v4090 = vmul.f32 %v3943, 0.01
    %v4091 = vmul.f32 %v2659, 0.01
    %v4092 = vmul.f32 %v2661, 0.01
    %v4093 = vmul.f32 %v3947, 0.01
    %v4094 = vmul.f32 %v3949, 0.01
    %v4095 = vmul.f32 %v2665, 0.01
    %v4096 = vmul.f32 %v2667, 0.01
    %v4097 = vmul.f32 %v3953, 0.01
    %v4098 = vmul.f32 %v3955, 0.01
    %v4099 = vmul.f32 %v2671, 0.01
    %v4100 = vmul.f32 %v2673, 0.01
    %v4101 = vmul.f32 %v3959, 0.01
    %v4102 = vmul.f32 %v3961, 0.01
    %v4103 = vmul.f32 %v2677, 0.01
    %v4104 = vmul.f32 %v2679, 0.01
    %v4105 = vmul.f32 %v3965, 0.01
    %v4106 = vmul.f32 %v3967, 0.01
    %v4107 = vmul.f32 %v2683, 0.01
    %v4108 = vmul.f32 %v2685, 0.01
    %v4109 = vmul.f32 %v3971, 0.01
    %v4110 = vmul.f32 %v3973, 0.01
    %v4111 = vmul.f32 %v2689, 0.01
    %v4112 = vmul.f32 %v2691, 0.01
    %v4113 = vmul.f32 %v3977, 0.01
    %v4114 = vmul.f32 %v3979, 0.01
    %v4115 = vmul.f32 %v2695, 0.01
    %v4116 = vmul.f32 %v2697, 0.01
    %v4117 = vmul.f32 %v3983, 0.01
    %v4118 = vmul.f32 %v3985, 0.01
    %v4119 = vmul.f32 %v2701, 0.01
    %v4120 = vmul.f32 %v2703, 0.01
    %v4121 = vmul.f32 %v3989, 0.01
    %v4122 = vmul.f32 %v3991, 0.01
    %v4123 = vmul.f32 %v2707, 0.01
    %v4124 = vmul.f32 %v2709, 0.01
    %v4125 = vmul.f32 %v3995, 0.01
    %v4126 = vmul.f32 %v3997, 0.01
    %v4127 = vsel %vm3999, %v2617, %v4063
    %v4128 = vsel %vm4000, %v2619, %v4064
    %v4129 = vsel %vm4001, %v3905, %v4065
    %v4130 = vsel %vm4002, %v3907, %v4066
    %v4131 = vsel %vm4003, %v2623, %v4067
    %v4132 = vsel %vm4004, %v2625, %v4068
    %v4133 = vsel %vm4005, %v3911, %v4069
    %v4134 = vsel %vm4006, %v3913, %v4070
    %v4135 = vsel %vm4007, %v2629, %v4071
    %v4136 = vsel %vm4008, %v2631, %v4072
    %v4137 = vsel %vm4009, %v3917, %v4073
    %v4138 = vsel %vm4010, %v3919, %v4074
    %v4139 = vsel %vm4011, %v2635, %v4075
    %v4140 = vsel %vm4012, %v2637, %v4076
    %v4141 = vsel %vm4013, %v3923, %v4077
    %v4142 = vsel %vm4014, %v3925, %v4078
    %v4143 = vsel %vm4015, %v2641, %v4079
    %v4144 = vsel %vm4016, %v2643, %v4080
    %v4145 = vsel %vm4017, %v3929, %v4081
    %v4146 = vsel %vm4018, %v3931, %v4082
    %v4147 = vsel %vm4019, %v2647, %v4083
    %v4148 = vsel %vm4020, %v2649, %v4084
    %v4149 = vsel %vm4021, %v3935, %v4085
    %v4150 = vsel %vm4022, %v3937, %v4086
    %v4151 = vsel %vm4023, %v2653, %v4087
    %v4152 = vsel %vm4024, %v2655, %v4088
    %v4153 = vsel %vm4025, %v3941, %v4089
    %v4154 = vsel %vm4026, %v3943, %v4090
    %v4155 = vsel %vm4027, %v2659, %v4091
    %v4156 = vsel %vm4028, %v2661, %v4092
    %v4157 = vsel %vm4029, %v3947, %v4093
    %v4158 = vsel %vm4030, %v3949, %v4094
    %v4159 = vsel %vm4031, %v2665, %v4095
    %v4160 = vsel %vm4032, %v2667, %v4096
    %v4161 = vsel %vm4033, %v3953, %v4097
    %v4162 = vsel %vm4034, %v3955, %v4098
    %v4163 = vsel %vm4035, %v2671, %v4099
    %v4164 = vsel %vm4036, %v2673, %v4100
    %v4165 = vsel %vm4037, %v3959, %v4101
    %v4166 = vsel %vm4038, %v3961, %v4102
    %v4167 = vsel %vm4039, %v2677, %v4103
    %v4168 = vsel %vm4040, %v2679, %v4104
    %v4169 = vsel %vm4041, %v3965, %v4105
    %v4170 = vsel %vm4042, %v3967, %v4106
    %v4171 = vsel %vm4043, %v2683, %v4107
    %v4172 = vsel %vm4044, %v2685, %v4108
    %v4173 = vsel %vm4045, %v3971, %v4109
    %v4174 = vsel %vm4046, %v3973, %v4110
    %v4175 = vsel %vm4047, %v2689, %v4111
    %v4176 = vsel %vm4048, %v2691, %v4112
    %v4177 = vsel %vm4049, %v3977, %v4113
    %v4178 = vsel %vm4050, %v3979, %v4114
    %v4179 = vsel %vm4051, %v2695, %v4115
    %v4180 = vsel %vm4052, %v2697, %v4116
    %v4181 = vsel %vm4053, %v3983, %v4117
    %v4182 = vsel %vm4054, %v3985, %v4118
    %v4183 = vsel %vm4055, %v2701, %v4119
    %v4184 = vsel %vm4056, %v2703, %v4120
    %v4185 = vsel %vm4057, %v3989, %v4121
    %v4186 = vsel %vm4058, %v3991, %v4122
    %v4187 = vsel %vm4059, %v2707, %v4123
    %v4188 = vsel %vm4060, %v2709, %v4124
    %v4189 = vsel %vm4061, %v3995, %v4125
    %v4190 = vsel %vm4062, %v3997, %v4126
    %v4191 = vld [vmem:[#allocation7] sm:$0xff]
    %v4192 = vld [vmem:[#allocation7 + $0x8] sm:$0xff]
    %v4193 = vld [vmem:[#allocation7 + $0x10] sm:$0xff]
    %v4194 = vld [vmem:[#allocation7 + $0x18] sm:$0xff]
    %v4195 = vld [vmem:[#allocation7 + $0x20] sm:$0xff]
    %v4196 = vld [vmem:[#allocation7 + $0x28] sm:$0xff]
    %v4197 = vld [vmem:[#allocation7 + $0x30] sm:$0xff]
    %v4198 = vld [vmem:[#allocation7 + $0x38] sm:$0xff]
    %v4199 = vld [vmem:[#allocation7 + $0x40] sm:$0xff]
    %v4200 = vld [vmem:[#allocation7 + $0x48] sm:$0xff]
    %v4201 = vld [vmem:[#allocation7 + $0x50] sm:$0xff]
    %v4202 = vld [vmem:[#allocation7 + $0x58] sm:$0xff]
    %v4203 = vld [vmem:[#allocation7 + $0x60] sm:$0xff]
    %v4204 = vld [vmem:[#allocation7 + $0x68] sm:$0xff]
    %v4205 = vld [vmem:[#allocation7 + $0x70] sm:$0xff]
    %v4206 = vld [vmem:[#allocation7 + $0x78] sm:$0xff]
    %v4207 = vld [vmem:[#allocation7 + $0x80] sm:$0xff]
    %v4208 = vld [vmem:[#allocation7 + $0x88] sm:$0xff]
    %v4209 = vld [vmem:[#allocation7 + $0x90] sm:$0xff]
    %v4210 = vld [vmem:[#allocation7 + $0x98] sm:$0xff]
    %v4211 = vld [vmem:[#allocation7 + $0xa0] sm:$0xff]
    %v4212 = vld [vmem:[#allocation7 + $0xa8] sm:$0xff]
    %v4213 = vld [vmem:[#allocation7 + $0xb0] sm:$0xff]
    %v4214 = vld [vmem:[#allocation7 + $0xb8] sm:$0xff]
    %v4215 = vld [vmem:[#allocation7 + $0xc0] sm:$0xff]
    %v4216 = vld [vmem:[#allocation7 + $0xc8] sm:$0xff]
    %v4217 = vld [vmem:[#allocation7 + $0xd0] sm:$0xff]
    %v4218 = vld [vmem:[#allocation7 + $0xd8] sm:$0xff]
    %v4219 = vld [vmem:[#allocation7 + $0xe0] sm:$0xff]
    %v4220 = vld [vmem:[#allocation7 + $0xe8] sm:$0xff]
    %v4221 = vld [vmem:[#allocation7 + $0xf0] sm:$0xff]
    %v4222 = vld [vmem:[#allocation7 + $0xf8] sm:$0xff]
    %v4223 = vld [vmem:[#allocation7 + $0x100] sm:$0xff]
    %v4224 = vld [vmem:[#allocation7 + $0x108] sm:$0xff]
    %v4225 = vld [vmem:[#allocation7 + $0x110] sm:$0xff]
    %v4226 = vld [vmem:[#allocation7 + $0x118] sm:$0xff]
    %v4227 = vld [vmem:[#allocation7 + $0x120] sm:$0xff]
    %v4228 = vld [vmem:[#allocation7 + $0x128] sm:$0xff]
    %v4229 = vld [vmem:[#allocation7 + $0x130] sm:$0xff]
    %v4230 = vld [vmem:[#allocation7 + $0x138] sm:$0xff]
    %v4231 = vld [vmem:[#allocation7 + $0x140] sm:$0xff]
    %v4232 = vld [vmem:[#allocation7 + $0x148] sm:$0xff]
    %v4233 = vld [vmem:[#allocation7 + $0x150] sm:$0xff]
    %v4234 = vld [vmem:[#allocation7 + $0x158] sm:$0xff]
    %v4235 = vld [vmem:[#allocation7 + $0x160] sm:$0xff]
    %v4236 = vld [vmem:[#allocation7 + $0x168] sm:$0xff]
    %v4237 = vld [vmem:[#allocation7 + $0x170] sm:$0xff]
    %v4238 = vld [vmem:[#allocation7 + $0x178] sm:$0xff]
    %v4239 = vld [vmem:[#allocation7 + $0x180] sm:$0xff]
    %v4240 = vld [vmem:[#allocation7 + $0x188] sm:$0xff]
    %v4241 = vld [vmem:[#allocation7 + $0x190] sm:$0xff]
    %v4242 = vld [vmem:[#allocation7 + $0x198] sm:$0xff]
    %v4243 = vld [vmem:[#allocation7 + $0x1a0] sm:$0xff]
    %v4244 = vld [vmem:[#allocation7 + $0x1a8] sm:$0xff]
    %v4245 = vld [vmem:[#allocation7 + $0x1b0] sm:$0xff]
    %v4246 = vld [vmem:[#allocation7 + $0x1b8] sm:$0xff]
    %v4247 = vld [vmem:[#allocation7 + $0x1c0] sm:$0xff]
    %v4248 = vld [vmem:[#allocation7 + $0x1c8] sm:$0xff]
    %v4249 = vld [vmem:[#allocation7 + $0x1d0] sm:$0xff]
    %v4250 = vld [vmem:[#allocation7 + $0x1d8] sm:$0xff]
    %v4251 = vld [vmem:[#allocation7 + $0x1e0] sm:$0xff]
    %v4252 = vld [vmem:[#allocation7 + $0x1e8] sm:$0xff]
    %v4253 = vld [vmem:[#allocation7 + $0x1f0] sm:$0xff]
    %v4254 = vld [vmem:[#allocation7 + $0x1f8] sm:$0xff]
    %v4255 = vld [vmem:[#allocation7 + $0x200] sm:$0xff]
    %v4256 = vld [vmem:[#allocation7 + $0x208] sm:$0xff]
    %v4257 = vld [vmem:[#allocation7 + $0x210] sm:$0xff]
    %v4258 = vld [vmem:[#allocation7 + $0x218] sm:$0xff]
    %v4259 = vld [vmem:[#allocation7 + $0x220] sm:$0xff]
    %v4260 = vld [vmem:[#allocation7 + $0x228] sm:$0xff]
    %v4261 = vld [vmem:[#allocation7 + $0x230] sm:$0xff]
    %v4262 = vld [vmem:[#allocation7 + $0x238] sm:$0xff]
    %v4263 = vld [vmem:[#allocation7 + $0x240] sm:$0xff]
    %v4264 = vld [vmem:[#allocation7 + $0x248] sm:$0xff]
    %v4265 = vld [vmem:[#allocation7 + $0x250] sm:$0xff]
    %v4266 = vld [vmem:[#allocation7 + $0x258] sm:$0xff]
    %v4267 = vld [vmem:[#allocation7 + $0x260] sm:$0xff]
    %v4268 = vld [vmem:[#allocation7 + $0x268] sm:$0xff]
    %v4269 = vld [vmem:[#allocation7 + $0x270] sm:$0xff]
    %v4270 = vld [vmem:[#allocation7 + $0x278] sm:$0xff]
    %v4271 = vld [vmem:[#allocation7 + $0x280] sm:$0xff]
    %v4272 = vld [vmem:[#allocation7 + $0x288] sm:$0xff]
    %v4273 = vld [vmem:[#allocation7 + $0x290] sm:$0xff]
    %v4274 = vld [vmem:[#allocation7 + $0x298] sm:$0xff]
    %v4275 = vld [vmem:[#allocation7 + $0x2a0] sm:$0xff]
    %v4276 = vld [vmem:[#allocation7 + $0x2a8] sm:$0xff]
    %v4277 = vld [vmem:[#allocation7 + $0x2b0] sm:$0xff]
    %v4278 = vld [vmem:[#allocation7 + $0x2b8] sm:$0xff]
    %v4279 = vld [vmem:[#allocation7 + $0x2c0] sm:$0xff]
    %v4280 = vld [vmem:[#allocation7 + $0x2c8] sm:$0xff]
    %v4281 = vld [vmem:[#allocation7 + $0x2d0] sm:$0xff]
    %v4282 = vld [vmem:[#allocation7 + $0x2d8] sm:$0xff]
    %v4283 = vld [vmem:[#allocation7 + $0x2e0] sm:$0xff]
    %v4284 = vld [vmem:[#allocation7 + $0x2e8] sm:$0xff]
    %v4285 = vld [vmem:[#allocation7 + $0x2f0] sm:$0xff]
    %v4286 = vld [vmem:[#allocation7 + $0x2f8] sm:$0xff]
    %v4287 = vld [vmem:[#allocation7 + $0x300] sm:$0xff]
    %v4288 = vld [vmem:[#allocation7 + $0x308] sm:$0xff]
    %v4289 = vld [vmem:[#allocation7 + $0x310] sm:$0xff]
    %v4290 = vld [vmem:[#allocation7 + $0x318] sm:$0xff]
    %v4291 = vld [vmem:[#allocation7 + $0x320] sm:$0xff]
    %v4292 = vld [vmem:[#allocation7 + $0x328] sm:$0xff]
    %v4293 = vld [vmem:[#allocation7 + $0x330] sm:$0xff]
    %v4294 = vld [vmem:[#allocation7 + $0x338] sm:$0xff]
    %v4295 = vld [vmem:[#allocation7 + $0x340] sm:$0xff]
    %v4296 = vld [vmem:[#allocation7 + $0x348] sm:$0xff]
    %v4297 = vld [vmem:[#allocation7 + $0x350] sm:$0xff]
    %v4298 = vld [vmem:[#allocation7 + $0x358] sm:$0xff]
    %v4299 = vld [vmem:[#allocation7 + $0x360] sm:$0xff]
    %v4300 = vld [vmem:[#allocation7 + $0x368] sm:$0xff]
    %v4301 = vld [vmem:[#allocation7 + $0x370] sm:$0xff]
    %v4302 = vld [vmem:[#allocation7 + $0x378] sm:$0xff]
    %v4303 = vld [vmem:[#allocation7 + $0x380] sm:$0xff]
    %v4304 = vld [vmem:[#allocation7 + $0x388] sm:$0xff]
    %v4305 = vld [vmem:[#allocation7 + $0x390] sm:$0xff]
    %v4306 = vld [vmem:[#allocation7 + $0x398] sm:$0xff]
    %v4307 = vld [vmem:[#allocation7 + $0x3a0] sm:$0xff]
    %v4308 = vld [vmem:[#allocation7 + $0x3a8] sm:$0xff]
    %v4309 = vld [vmem:[#allocation7 + $0x3b0] sm:$0xff]
    %v4310 = vld [vmem:[#allocation7 + $0x3b8] sm:$0xff]
    %v4311 = vld [vmem:[#allocation7 + $0x3c0] sm:$0xff]
    %v4312 = vld [vmem:[#allocation7 + $0x3c8] sm:$0xff]
    %v4313 = vld [vmem:[#allocation7 + $0x3d0] sm:$0xff]
    %v4314 = vld [vmem:[#allocation7 + $0x3d8] sm:$0xff]
    %v4315 = vld [vmem:[#allocation7 + $0x3e0] sm:$0xff]
    %v4316 = vld [vmem:[#allocation7 + $0x3e8] sm:$0xff]
    %v4317 = vld [vmem:[#allocation7 + $0x3f0] sm:$0xff]
    %v4318 = vld [vmem:[#allocation7 + $0x3f8] sm:$0xff]
    %v4319 = vld [vmem:[#allocation8] sm:$0x3]
    %v4321 = vlaneseq
    %v4322 = vshrl.u32 %v4321, 7
    %v4323 = vsub.s32 0, %v4322
    %v4324 = vrot.slane %v4319, %v4323
    %v4325 = vlaneseq
    %v4326 = vshrl.u32 %v4325, 7
    %v4327 = vsub.s32 1, %v4326
    %v4328 = vrot.slane %v4319, %v4327
    %4331 = vmatprep.subr.mxu0 %v4222
    %4332 = vmatpush1.msra.mxu0 %v4221
    %4333 = vmatprep.subr.mxu0 %v4220
    %4334 = vmatpush1.msra.mxu0 %v4219
    %4335 = vmatprep.subr.mxu0 %v4218
    %4336 = vmatpush1.msra.mxu0 %v4217
    %4337 = vmatprep.subr.mxu0 %v4216
    %4338 = vmatpush1.msra.mxu0 %v4215
    %4339 = vmatprep.subr.mxu0 %v4214
    %4340 = vmatpush1.msra.mxu0 %v4213
    %4341 = vmatprep.subr.mxu0 %v4212
    %4342 = vmatpush1.msra.mxu0 %v4211
    %4343 = vmatprep.subr.mxu0 %v4210
    %4344 = vmatpush1.msra.mxu0 %v4209
    %4345 = vmatprep.subr.mxu0 %v4208
    %4346 = vmatpush1.msra.mxu0 %v4207
    %4347 = vmatprep.subr.mxu0 %v4206
    %4348 = vmatpush1.msra.mxu0 %v4205
    %4349 = vmatprep.subr.mxu0 %v4204
    %4350 = vmatpush1.msra.mxu0 %v4203
    %4351 = vmatprep.subr.mxu0 %v4202
    %4352 = vmatpush1.msra.mxu0 %v4201
    %4353 = vmatprep.subr.mxu0 %v4200
    %4354 = vmatpush1.msra.mxu0 %v4199
    %4355 = vmatprep.subr.mxu0 %v4198
    %4356 = vmatpush1.msra.mxu0 %v4197
    %4357 = vmatprep.subr.mxu0 %v4196
    %4358 = vmatpush1.msra.mxu0 %v4195
    %4359 = vmatprep.subr.mxu0 %v4194
    %4360 = vmatpush1.msra.mxu0 %v4193
    %4361 = vmatprep.subr.mxu0 %v4192
    %4362 = vmatpush1.msra.mxu0 %v4191
    %4363 = vmatprep.subr.mxu0 %v4254
    %4364 = vmatpush2.msra.mxu0 %v4253
    %4365 = vmatprep.subr.mxu0 %v4252
    %4366 = vmatpush2.msra.mxu0 %v4251
    %4367 = vmatprep.subr.mxu0 %v4250
    %4368 = vmatpush2.msra.mxu0 %v4249
    %4369 = vmatprep.subr.mxu0 %v4248
    %4370 = vmatpush2.msra.mxu0 %v4247
    %4371 = vmatprep.subr.mxu0 %v4246
    %4372 = vmatpush2.msra.mxu0 %v4245
    %4373 = vmatprep.subr.mxu0 %v4244
    %4374 = vmatpush2.msra.mxu0 %v4243
    %4375 = vmatprep.subr.mxu0 %v4242
    %4376 = vmatpush2.msra.mxu0 %v4241
    %4377 = vmatprep.subr.mxu0 %v4240
    %4378 = vmatpush2.msra.mxu0 %v4239
    %4379 = vmatprep.subr.mxu0 %v4238
    %4380 = vmatpush2.msra.mxu0 %v4237
    %4381 = vmatprep.subr.mxu0 %v4236
    %4382 = vmatpush2.msra.mxu0 %v4235
    %4383 = vmatprep.subr.mxu0 %v4234
    %4384 = vmatpush2.msra.mxu0 %v4233
    %4385 = vmatprep.subr.mxu0 %v4232
    %4386 = vmatpush2.msra.mxu0 %v4231
    %4387 = vmatprep.subr.mxu0 %v4230
    %4388 = vmatpush2.msra.mxu0 %v4229
    %4389 = vmatprep.subr.mxu0 %v4228
    %4390 = vmatpush2.msra.mxu0 %v4227
    %4391 = vmatprep.subr.mxu0 %v4226
    %4392 = vmatpush2.msra.mxu0 %v4225
    %4393 = vmatprep.subr.mxu0 %v4224
    %4394 = vmatpush2.msra.mxu0 %v4223
    %4395 = vmatprep.mubr.f32.mxu0 %v4128
    %4396 = vmatmul.mubr.f32.gmra.mxu0 %v4127
    %v4397 = vpop.f32.mrf.mxu0
    %v4398 = vadd.f32 %v4324, %v4397
    %v4399 = vpop.f32.mrf.mxu0
    %v4400 = vadd.f32 %v4328, %v4399
    %4401 = vmatprep.mubr.f32.mxu0 %v4132
    %4402 = vmatmul.mubr.f32.gmra.mxu0 %v4131
    %v4403 = vpop.f32.mrf.mxu0
    %v4404 = vadd.f32 %v4324, %v4403
    %v4405 = vpop.f32.mrf.mxu0
    %v4406 = vadd.f32 %v4328, %v4405
    %4407 = vmatprep.mubr.f32.mxu0 %v4136
    %4408 = vmatmul.mubr.f32.gmra.mxu0 %v4135
    %v4409 = vpop.f32.mrf.mxu0
    %v4410 = vadd.f32 %v4324, %v4409
    %v4411 = vpop.f32.mrf.mxu0
    %v4412 = vadd.f32 %v4328, %v4411
    %4413 = vmatprep.mubr.f32.mxu0 %v4140
    %4414 = vmatmul.mubr.f32.gmra.mxu0 %v4139
    %v4415 = vpop.f32.mrf.mxu0
    %v4416 = vadd.f32 %v4324, %v4415
    %v4417 = vpop.f32.mrf.mxu0
    %v4418 = vadd.f32 %v4328, %v4417
    %4419 = vmatprep.mubr.f32.mxu0 %v4144
    %4420 = vmatmul.mubr.f32.gmra.mxu0 %v4143
    %v4421 = vpop.f32.mrf.mxu0
    %v4422 = vadd.f32 %v4324, %v4421
    %v4423 = vpop.f32.mrf.mxu0
    %v4424 = vadd.f32 %v4328, %v4423
    %4425 = vmatprep.mubr.f32.mxu0 %v4148
    %4426 = vmatmul.mubr.f32.gmra.mxu0 %v4147
    %v4427 = vpop.f32.mrf.mxu0
    %v4428 = vadd.f32 %v4324, %v4427
    %v4429 = vpop.f32.mrf.mxu0
    %v4430 = vadd.f32 %v4328, %v4429
    %4431 = vmatprep.mubr.f32.mxu0 %v4152
    %4432 = vmatmul.mubr.f32.gmra.mxu0 %v4151
    %v4433 = vpop.f32.mrf.mxu0
    %v4434 = vadd.f32 %v4324, %v4433
    %v4435 = vpop.f32.mrf.mxu0
    %v4436 = vadd.f32 %v4328, %v4435
    %4437 = vmatprep.mubr.f32.mxu0 %v4156
    %4438 = vmatmul.mubr.f32.gmra.mxu0 %v4155
    %v4439 = vpop.f32.mrf.mxu0
    %v4440 = vadd.f32 %v4324, %v4439
    %v4441 = vpop.f32.mrf.mxu0
    %v4442 = vadd.f32 %v4328, %v4441
    %4443 = vmatprep.mubr.f32.mxu0 %v4160
    %4444 = vmatmul.mubr.f32.gmra.mxu0 %v4159
    %v4445 = vpop.f32.mrf.mxu0
    %v4446 = vadd.f32 %v4324, %v4445
    %v4447 = vpop.f32.mrf.mxu0
    %v4448 = vadd.f32 %v4328, %v4447
    %4449 = vmatprep.mubr.f32.mxu0 %v4164
    %4450 = vmatmul.mubr.f32.gmra.mxu0 %v4163
    %v4451 = vpop.f32.mrf.mxu0
    %v4452 = vadd.f32 %v4324, %v4451
    %v4453 = vpop.f32.mrf.mxu0
    %v4454 = vadd.f32 %v4328, %v4453
    %4455 = vmatprep.mubr.f32.mxu0 %v4168
    %4456 = vmatmul.mubr.f32.gmra.mxu0 %v4167
    %v4457 = vpop.f32.mrf.mxu0
    %v4458 = vadd.f32 %v4324, %v4457
    %v4459 = vpop.f32.mrf.mxu0
    %v4460 = vadd.f32 %v4328, %v4459
    %4461 = vmatprep.mubr.f32.mxu0 %v4172
    %4462 = vmatmul.mubr.f32.gmra.mxu0 %v4171
    %v4463 = vpop.f32.mrf.mxu0
    %v4464 = vadd.f32 %v4324, %v4463
    %v4465 = vpop.f32.mrf.mxu0
    %v4466 = vadd.f32 %v4328, %v4465
    %4467 = vmatprep.mubr.f32.mxu0 %v4176
    %4468 = vmatmul.mubr.f32.gmra.mxu0 %v4175
    %v4469 = vpop.f32.mrf.mxu0
    %v4470 = vadd.f32 %v4324, %v4469
    %v4471 = vpop.f32.mrf.mxu0
    %v4472 = vadd.f32 %v4328, %v4471
    %4473 = vmatprep.mubr.f32.mxu0 %v4180
    %4474 = vmatmul.mubr.f32.gmra.mxu0 %v4179
    %v4475 = vpop.f32.mrf.mxu0
    %v4476 = vadd.f32 %v4324, %v4475
    %v4477 = vpop.f32.mrf.mxu0
    %v4478 = vadd.f32 %v4328, %v4477
    %4479 = vmatprep.mubr.f32.mxu0 %v4184
    %4480 = vmatmul.mubr.f32.gmra.mxu0 %v4183
    %v4481 = vpop.f32.mrf.mxu0
    %v4482 = vadd.f32 %v4324, %v4481
    %v4483 = vpop.f32.mrf.mxu0
    %v4484 = vadd.f32 %v4328, %v4483
    %4485 = vmatprep.mubr.f32.mxu0 %v4188
    %4486 = vmatmul.mubr.f32.gmra.mxu0 %v4187
    %v4487 = vpop.f32.mrf.mxu0
    %v4488 = vadd.f32 %v4324, %v4487
    %v4489 = vpop.f32.mrf.mxu0
    %v4490 = vadd.f32 %v4328, %v4489
    %4491 = vdwg.mxu0
    %4492 = vmatprep.subr.mxu0 %v4286
    %4493 = vmatpush1.msra.mxu0 %v4285
    %4494 = vmatprep.subr.mxu0 %v4284
    %4495 = vmatpush1.msra.mxu0 %v4283
    %4496 = vmatprep.subr.mxu0 %v4282
    %4497 = vmatpush1.msra.mxu0 %v4281
    %4498 = vmatprep.subr.mxu0 %v4280
    %4499 = vmatpush1.msra.mxu0 %v4279
    %4500 = vmatprep.subr.mxu0 %v4278
    %4501 = vmatpush1.msra.mxu0 %v4277
    %4502 = vmatprep.subr.mxu0 %v4276
    %4503 = vmatpush1.msra.mxu0 %v4275
    %4504 = vmatprep.subr.mxu0 %v4274
    %4505 = vmatpush1.msra.mxu0 %v4273
    %4506 = vmatprep.subr.mxu0 %v4272
    %4507 = vmatpush1.msra.mxu0 %v4271
    %4508 = vmatprep.subr.mxu0 %v4270
    %4509 = vmatpush1.msra.mxu0 %v4269
    %4510 = vmatprep.subr.mxu0 %v4268
    %4511 = vmatpush1.msra.mxu0 %v4267
    %4512 = vmatprep.subr.mxu0 %v4266
    %4513 = vmatpush1.msra.mxu0 %v4265
    %4514 = vmatprep.subr.mxu0 %v4264
    %4515 = vmatpush1.msra.mxu0 %v4263
    %4516 = vmatprep.subr.mxu0 %v4262
    %4517 = vmatpush1.msra.mxu0 %v4261
    %4518 = vmatprep.subr.mxu0 %v4260
    %4519 = vmatpush1.msra.mxu0 %v4259
    %4520 = vmatprep.subr.mxu0 %v4258
    %4521 = vmatpush1.msra.mxu0 %v4257
    %4522 = vmatprep.subr.mxu0 %v4256
    %4523 = vmatpush1.msra.mxu0 %v4255
    %4524 = vmatprep.subr.mxu0 %v4318
    %4525 = vmatpush2.msra.mxu0 %v4317
    %4526 = vmatprep.subr.mxu0 %v4316
    %4527 = vmatpush2.msra.mxu0 %v4315
    %4528 = vmatprep.subr.mxu0 %v4314
    %4529 = vmatpush2.msra.mxu0 %v4313
    %4530 = vmatprep.subr.mxu0 %v4312
    %4531 = vmatpush2.msra.mxu0 %v4311
    %4532 = vmatprep.subr.mxu0 %v4310
    %4533 = vmatpush2.msra.mxu0 %v4309
    %4534 = vmatprep.subr.mxu0 %v4308
    %4535 = vmatpush2.msra.mxu0 %v4307
    %4536 = vmatprep.subr.mxu0 %v4306
    %4537 = vmatpush2.msra.mxu0 %v4305
    %4538 = vmatprep.subr.mxu0 %v4304
    %4539 = vmatpush2.msra.mxu0 %v4303
    %4540 = vmatprep.subr.mxu0 %v4302
    %4541 = vmatpush2.msra.mxu0 %v4301
    %4542 = vmatprep.subr.mxu0 %v4300
    %4543 = vmatpush2.msra.mxu0 %v4299
    %4544 = vmatprep.subr.mxu0 %v4298
    %4545 = vmatpush2.msra.mxu0 %v4297
    %4546 = vmatprep.subr.mxu0 %v4296
    %4547 = vmatpush2.msra.mxu0 %v4295
    %4548 = vmatprep.subr.mxu0 %v4294
    %4549 = vmatpush2.msra.mxu0 %v4293
    %4550 = vmatprep.subr.mxu0 %v4292
    %4551 = vmatpush2.msra.mxu0 %v4291
    %4552 = vmatprep.subr.mxu0 %v4290
    %4553 = vmatpush2.msra.mxu0 %v4289
    %4554 = vmatprep.subr.mxu0 %v4288
    %4555 = vmatpush2.msra.mxu0 %v4287
    %4556 = vmatprep.mubr.f32.mxu0 %v4130
    %4557 = vmatmul.mubr.f32.gmra.mxu0 %v4129
    %v4558 = vpop.f32.mrf.mxu0
    %v4559 = vadd.f32 %v4398, %v4558
    %v4560 = vpop.f32.mrf.mxu0
    %v4561 = vadd.f32 %v4400, %v4560
    %4562 = vmatprep.mubr.f32.mxu0 %v4134
    %4563 = vmatmul.mubr.f32.gmra.mxu0 %v4133
    %v4564 = vpop.f32.mrf.mxu0
    %v4565 = vadd.f32 %v4404, %v4564
    %v4566 = vpop.f32.mrf.mxu0
    %v4567 = vadd.f32 %v4406, %v4566
    %4568 = vmatprep.mubr.f32.mxu0 %v4138
    %4569 = vmatmul.mubr.f32.gmra.mxu0 %v4137
    %v4570 = vpop.f32.mrf.mxu0
    %v4571 = vadd.f32 %v4410, %v4570
    %v4572 = vpop.f32.mrf.mxu0
    %v4573 = vadd.f32 %v4412, %v4572
    %4574 = vmatprep.mubr.f32.mxu0 %v4142
    %4575 = vmatmul.mubr.f32.gmra.mxu0 %v4141
    %v4576 = vpop.f32.mrf.mxu0
    %v4577 = vadd.f32 %v4416, %v4576
    %v4578 = vpop.f32.mrf.mxu0
    %v4579 = vadd.f32 %v4418, %v4578
    %4580 = vmatprep.mubr.f32.mxu0 %v4146
    %4581 = vmatmul.mubr.f32.gmra.mxu0 %v4145
    %v4582 = vpop.f32.mrf.mxu0
    %v4583 = vadd.f32 %v4422, %v4582
    %v4584 = vpop.f32.mrf.mxu0
    %v4585 = vadd.f32 %v4424, %v4584
    %4586 = vmatprep.mubr.f32.mxu0 %v4150
    %4587 = vmatmul.mubr.f32.gmra.mxu0 %v4149
    %v4588 = vpop.f32.mrf.mxu0
    %v4589 = vadd.f32 %v4428, %v4588
    %v4590 = vpop.f32.mrf.mxu0
    %v4591 = vadd.f32 %v4430, %v4590
    %4592 = vmatprep.mubr.f32.mxu0 %v4154
    %4593 = vmatmul.mubr.f32.gmra.mxu0 %v4153
    %v4594 = vpop.f32.mrf.mxu0
    %v4595 = vadd.f32 %v4434, %v4594
    %v4596 = vpop.f32.mrf.mxu0
    %v4597 = vadd.f32 %v4436, %v4596
    %4598 = vmatprep.mubr.f32.mxu0 %v4158
    %4599 = vmatmul.mubr.f32.gmra.mxu0 %v4157
    %v4600 = vpop.f32.mrf.mxu0
    %v4601 = vadd.f32 %v4440, %v4600
    %v4602 = vpop.f32.mrf.mxu0
    %v4603 = vadd.f32 %v4442, %v4602
    %4604 = vmatprep.mubr.f32.mxu0 %v4162
    %4605 = vmatmul.mubr.f32.gmra.mxu0 %v4161
    %v4606 = vpop.f32.mrf.mxu0
    %v4607 = vadd.f32 %v4446, %v4606
    %v4608 = vpop.f32.mrf.mxu0
    %v4609 = vadd.f32 %v4448, %v4608
    %4610 = vmatprep.mubr.f32.mxu0 %v4166
    %4611 = vmatmul.mubr.f32.gmra.mxu0 %v4165
    %v4612 = vpop.f32.mrf.mxu0
    %v4613 = vadd.f32 %v4452, %v4612
    %v4614 = vpop.f32.mrf.mxu0
    %v4615 = vadd.f32 %v4454, %v4614
    %4616 = vmatprep.mubr.f32.mxu0 %v4170
    %4617 = vmatmul.mubr.f32.gmra.mxu0 %v4169
    %v4618 = vpop.f32.mrf.mxu0
    %v4619 = vadd.f32 %v4458, %v4618
    %v4620 = vpop.f32.mrf.mxu0
    %v4621 = vadd.f32 %v4460, %v4620
    %4622 = vmatprep.mubr.f32.mxu0 %v4174
    %4623 = vmatmul.mubr.f32.gmra.mxu0 %v4173
    %v4624 = vpop.f32.mrf.mxu0
    %v4625 = vadd.f32 %v4464, %v4624
    %v4626 = vpop.f32.mrf.mxu0
    %v4627 = vadd.f32 %v4466, %v4626
    %4628 = vmatprep.mubr.f32.mxu0 %v4178
    %4629 = vmatmul.mubr.f32.gmra.mxu0 %v4177
    %v4630 = vpop.f32.mrf.mxu0
    %v4631 = vadd.f32 %v4470, %v4630
    %v4632 = vpop.f32.mrf.mxu0
    %v4633 = vadd.f32 %v4472, %v4632
    %4634 = vmatprep.mubr.f32.mxu0 %v4182
    %4635 = vmatmul.mubr.f32.gmra.mxu0 %v4181
    %v4636 = vpop.f32.mrf.mxu0
    %v4637 = vadd.f32 %v4476, %v4636
    %v4638 = vpop.f32.mrf.mxu0
    %v4639 = vadd.f32 %v4478, %v4638
    %4640 = vmatprep.mubr.f32.mxu0 %v4186
    %4641 = vmatmul.mubr.f32.gmra.mxu0 %v4185
    %v4642 = vpop.f32.mrf.mxu0
    %v4643 = vadd.f32 %v4482, %v4642
    %v4644 = vpop.f32.mrf.mxu0
    %v4645 = vadd.f32 %v4484, %v4644
    %4646 = vmatprep.mubr.f32.mxu0 %v4190
    %4647 = vmatmul.mubr.f32.gmra.mxu0 %v4189
    %v4648 = vpop.f32.mrf.mxu0
    %v4649 = vadd.f32 %v4488, %v4648
    %v4650 = vpop.f32.mrf.mxu0
    %v4651 = vadd.f32 %v4490, %v4650
    %4652 = vdwg.mxu0
    %vm4653 = vcmp.gt.f32.partialorder %v4559, 0.0
    %vm4654 = vcmp.gt.f32.partialorder %v4561, 0.0
    %vm4655 = vcmp.gt.f32.partialorder %v4565, 0.0
    %vm4656 = vcmp.gt.f32.partialorder %v4567, 0.0
    %vm4657 = vcmp.gt.f32.partialorder %v4571, 0.0
    %vm4658 = vcmp.gt.f32.partialorder %v4573, 0.0
    %vm4659 = vcmp.gt.f32.partialorder %v4577, 0.0
    %vm4660 = vcmp.gt.f32.partialorder %v4579, 0.0
    %vm4661 = vcmp.gt.f32.partialorder %v4583, 0.0
    %vm4662 = vcmp.gt.f32.partialorder %v4585, 0.0
    %vm4663 = vcmp.gt.f32.partialorder %v4589, 0.0
    %vm4664 = vcmp.gt.f32.partialorder %v4591, 0.0
    %vm4665 = vcmp.gt.f32.partialorder %v4595, 0.0
    %vm4666 = vcmp.gt.f32.partialorder %v4597, 0.0
    %vm4667 = vcmp.gt.f32.partialorder %v4601, 0.0
    %vm4668 = vcmp.gt.f32.partialorder %v4603, 0.0
    %vm4669 = vcmp.gt.f32.partialorder %v4607, 0.0
    %vm4670 = vcmp.gt.f32.partialorder %v4609, 0.0
    %vm4671 = vcmp.gt.f32.partialorder %v4613, 0.0
    %vm4672 = vcmp.gt.f32.partialorder %v4615, 0.0
    %vm4673 = vcmp.gt.f32.partialorder %v4619, 0.0
    %vm4674 = vcmp.gt.f32.partialorder %v4621, 0.0
    %vm4675 = vcmp.gt.f32.partialorder %v4625, 0.0
    %vm4676 = vcmp.gt.f32.partialorder %v4627, 0.0
    %vm4677 = vcmp.gt.f32.partialorder %v4631, 0.0
    %vm4678 = vcmp.gt.f32.partialorder %v4633, 0.0
    %vm4679 = vcmp.gt.f32.partialorder %v4637, 0.0
    %vm4680 = vcmp.gt.f32.partialorder %v4639, 0.0
    %vm4681 = vcmp.gt.f32.partialorder %v4643, 0.0
    %vm4682 = vcmp.gt.f32.partialorder %v4645, 0.0
    %vm4683 = vcmp.gt.f32.partialorder %v4649, 0.0
    %vm4684 = vcmp.gt.f32.partialorder %v4651, 0.0
    %v4685 = vmul.f32 %v4559, 0.01
    %v4686 = vmul.f32 %v4561, 0.01
    %v4687 = vmul.f32 %v4565, 0.01
    %v4688 = vmul.f32 %v4567, 0.01
    %v4689 = vmul.f32 %v4571, 0.01
    %v4690 = vmul.f32 %v4573, 0.01
    %v4691 = vmul.f32 %v4577, 0.01
    %v4692 = vmul.f32 %v4579, 0.01
    %v4693 = vmul.f32 %v4583, 0.01
    %v4694 = vmul.f32 %v4585, 0.01
    %v4695 = vmul.f32 %v4589, 0.01
    %v4696 = vmul.f32 %v4591, 0.01
    %v4697 = vmul.f32 %v4595, 0.01
    %v4698 = vmul.f32 %v4597, 0.01
    %v4699 = vmul.f32 %v4601, 0.01
    %v4700 = vmul.f32 %v4603, 0.01
    %v4701 = vmul.f32 %v4607, 0.01
    %v4702 = vmul.f32 %v4609, 0.01
    %v4703 = vmul.f32 %v4613, 0.01
    %v4704 = vmul.f32 %v4615, 0.01
    %v4705 = vmul.f32 %v4619, 0.01
    %v4706 = vmul.f32 %v4621, 0.01
    %v4707 = vmul.f32 %v4625, 0.01
    %v4708 = vmul.f32 %v4627, 0.01
    %v4709 = vmul.f32 %v4631, 0.01
    %v4710 = vmul.f32 %v4633, 0.01
    %v4711 = vmul.f32 %v4637, 0.01
    %v4712 = vmul.f32 %v4639, 0.01
    %v4713 = vmul.f32 %v4643, 0.01
    %v4714 = vmul.f32 %v4645, 0.01
    %v4715 = vmul.f32 %v4649, 0.01
    %v4716 = vmul.f32 %v4651, 0.01
    %v4717 = vsel %vm4653, %v4559, %v4685
    %v4718 = vsel %vm4654, %v4561, %v4686
    %v4719 = vsel %vm4655, %v4565, %v4687
    %v4720 = vsel %vm4656, %v4567, %v4688
    %v4721 = vsel %vm4657, %v4571, %v4689
    %v4722 = vsel %vm4658, %v4573, %v4690
    %v4723 = vsel %vm4659, %v4577, %v4691
    %v4724 = vsel %vm4660, %v4579, %v4692
    %v4725 = vsel %vm4661, %v4583, %v4693
    %v4726 = vsel %vm4662, %v4585, %v4694
    %v4727 = vsel %vm4663, %v4589, %v4695
    %v4728 = vsel %vm4664, %v4591, %v4696
    %v4729 = vsel %vm4665, %v4595, %v4697
    %v4730 = vsel %vm4666, %v4597, %v4698
    %v4731 = vsel %vm4667, %v4601, %v4699
    %v4732 = vsel %vm4668, %v4603, %v4700
    %v4733 = vsel %vm4669, %v4607, %v4701
    %v4734 = vsel %vm4670, %v4609, %v4702
    %v4735 = vsel %vm4671, %v4613, %v4703
    %v4736 = vsel %vm4672, %v4615, %v4704
    %v4737 = vsel %vm4673, %v4619, %v4705
    %v4738 = vsel %vm4674, %v4621, %v4706
    %v4739 = vsel %vm4675, %v4625, %v4707
    %v4740 = vsel %vm4676, %v4627, %v4708
    %v4741 = vsel %vm4677, %v4631, %v4709
    %v4742 = vsel %vm4678, %v4633, %v4710
    %v4743 = vsel %vm4679, %v4637, %v4711
    %v4744 = vsel %vm4680, %v4639, %v4712
    %v4745 = vsel %vm4681, %v4643, %v4713
    %v4746 = vsel %vm4682, %v4645, %v4714
    %v4747 = vsel %vm4683, %v4649, %v4715
    %v4748 = vsel %vm4684, %v4651, %v4716
    %v4749 = vld [vmem:[#allocation10] sm:$0xff]
    %v4750 = vld [vmem:[#allocation10 + $0x8] sm:$0xff]
    %v4751 = vld [vmem:[#allocation10 + $0x10] sm:$0xff]
    %v4752 = vld [vmem:[#allocation10 + $0x18] sm:$0xff]
    %v4753 = vld [vmem:[#allocation10 + $0x20] sm:$0xff]
    %v4754 = vld [vmem:[#allocation10 + $0x28] sm:$0xff]
    %v4755 = vld [vmem:[#allocation10 + $0x30] sm:$0xff]
    %v4756 = vld [vmem:[#allocation10 + $0x38] sm:$0xff]
    %v4757 = vld [vmem:[#allocation10 + $0x40] sm:$0xff]
    %v4758 = vld [vmem:[#allocation10 + $0x48] sm:$0xff]
    %v4759 = vld [vmem:[#allocation10 + $0x50] sm:$0xff]
    %v4760 = vld [vmem:[#allocation10 + $0x58] sm:$0xff]
    %v4761 = vld [vmem:[#allocation10 + $0x60] sm:$0xff]
    %v4762 = vld [vmem:[#allocation10 + $0x68] sm:$0xff]
    %v4763 = vld [vmem:[#allocation10 + $0x70] sm:$0xff]
    %v4764 = vld [vmem:[#allocation10 + $0x78] sm:$0xff]
    %v4765 = vld [vmem:[#allocation10 + $0x80] sm:$0xff]
    %v4766 = vld [vmem:[#allocation10 + $0x88] sm:$0xff]
    %v4767 = vld [vmem:[#allocation10 + $0x90] sm:$0xff]
    %v4768 = vld [vmem:[#allocation10 + $0x98] sm:$0xff]
    %v4769 = vld [vmem:[#allocation10 + $0xa0] sm:$0xff]
    %v4770 = vld [vmem:[#allocation10 + $0xa8] sm:$0xff]
    %v4771 = vld [vmem:[#allocation10 + $0xb0] sm:$0xff]
    %v4772 = vld [vmem:[#allocation10 + $0xb8] sm:$0xff]
    %v4773 = vld [vmem:[#allocation10 + $0xc0] sm:$0xff]
    %v4774 = vld [vmem:[#allocation10 + $0xc8] sm:$0xff]
    %v4775 = vld [vmem:[#allocation10 + $0xd0] sm:$0xff]
    %v4776 = vld [vmem:[#allocation10 + $0xd8] sm:$0xff]
    %v4777 = vld [vmem:[#allocation10 + $0xe0] sm:$0xff]
    %v4778 = vld [vmem:[#allocation10 + $0xe8] sm:$0xff]
    %v4779 = vld [vmem:[#allocation10 + $0xf0] sm:$0xff]
    %v4780 = vld [vmem:[#allocation10 + $0xf8] sm:$0xff]
    %v4781 = vld [vmem:[#allocation11] sm:$0x1]
    %v4783 = vlaneseq
    %v4784 = vshrl.u32 %v4783, 7
    %v4785 = vsub.s32 0, %v4784
    %v4786 = vrot.slane %v4781, %v4785
    %4788 = vmatprep.subr.mxu0 0.0
    %4789 = vmatpush1.msra.mxu0 %v4764
    %4790 = vmatprep.subr.mxu0 0.0
    %4791 = vmatpush1.msra.mxu0 %v4763
    %4792 = vmatprep.subr.mxu0 0.0
    %4793 = vmatpush1.msra.mxu0 %v4762
    %4794 = vmatprep.subr.mxu0 0.0
    %4795 = vmatpush1.msra.mxu0 %v4761
    %4796 = vmatprep.subr.mxu0 0.0
    %4797 = vmatpush1.msra.mxu0 %v4760
    %4798 = vmatprep.subr.mxu0 0.0
    %4799 = vmatpush1.msra.mxu0 %v4759
    %4800 = vmatprep.subr.mxu0 0.0
    %4801 = vmatpush1.msra.mxu0 %v4758
    %4802 = vmatprep.subr.mxu0 0.0
    %4803 = vmatpush1.msra.mxu0 %v4757
    %4804 = vmatprep.subr.mxu0 0.0
    %4805 = vmatpush1.msra.mxu0 %v4756
    %4806 = vmatprep.subr.mxu0 0.0
    %4807 = vmatpush1.msra.mxu0 %v4755
    %4808 = vmatprep.subr.mxu0 0.0
    %4809 = vmatpush1.msra.mxu0 %v4754
    %4810 = vmatprep.subr.mxu0 0.0
    %4811 = vmatpush1.msra.mxu0 %v4753
    %4812 = vmatprep.subr.mxu0 0.0
    %4813 = vmatpush1.msra.mxu0 %v4752
    %4814 = vmatprep.subr.mxu0 0.0
    %4815 = vmatpush1.msra.mxu0 %v4751
    %4816 = vmatprep.subr.mxu0 0.0
    %4817 = vmatpush1.msra.mxu0 %v4750
    %4818 = vmatprep.subr.mxu0 0.0
    %4819 = vmatpush1.msra.mxu0 %v4749
    %4820 = vmatprep.subr.mxu0 0.0
    %4821 = vmatpush2.msra.mxu0 %v4780
    %4822 = vmatprep.subr.mxu0 0.0
    %4823 = vmatpush2.msra.mxu0 %v4779
    %4824 = vmatprep.subr.mxu0 0.0
    %4825 = vmatpush2.msra.mxu0 %v4778
    %4826 = vmatprep.subr.mxu0 0.0
    %4827 = vmatpush2.msra.mxu0 %v4777
    %4828 = vmatprep.subr.mxu0 0.0
    %4829 = vmatpush2.msra.mxu0 %v4776
    %4830 = vmatprep.subr.mxu0 0.0
    %4831 = vmatpush2.msra.mxu0 %v4775
    %4832 = vmatprep.subr.mxu0 0.0
    %4833 = vmatpush2.msra.mxu0 %v4774
    %4834 = vmatprep.subr.mxu0 0.0
    %4835 = vmatpush2.msra.mxu0 %v4773
    %4836 = vmatprep.subr.mxu0 0.0
    %4837 = vmatpush2.msra.mxu0 %v4772
    %4838 = vmatprep.subr.mxu0 0.0
    %4839 = vmatpush2.msra.mxu0 %v4771
    %4840 = vmatprep.subr.mxu0 0.0
    %4841 = vmatpush2.msra.mxu0 %v4770
    %4842 = vmatprep.subr.mxu0 0.0
    %4843 = vmatpush2.msra.mxu0 %v4769
    %4844 = vmatprep.subr.mxu0 0.0
    %4845 = vmatpush2.msra.mxu0 %v4768
    %4846 = vmatprep.subr.mxu0 0.0
    %4847 = vmatpush2.msra.mxu0 %v4767
    %4848 = vmatprep.subr.mxu0 0.0
    %4849 = vmatpush2.msra.mxu0 %v4766
    %4850 = vmatprep.subr.mxu0 0.0
    %4851 = vmatpush2.msra.mxu0 %v4765
    %4852 = vmatprep.mubr.f32.mxu0 %v4718
    %4853 = vmatmul.mubr.f32.gmra.mxu0 %v4717
    %v4854 = vpop.f32.mrf.mxu0
    %v4855 = vadd.f32 %v4786, %v4854
    %v4856 = vpop.f32.mrf.mxu0
    %4857 = vmatprep.mubr.f32.mxu0 %v4720
    %4858 = vmatmul.mubr.f32.gmra.mxu0 %v4719
    %v4859 = vpop.f32.mrf.mxu0
    %v4860 = vadd.f32 %v4786, %v4859
    %v4861 = vpop.f32.mrf.mxu0
    %4862 = vmatprep.mubr.f32.mxu0 %v4722
    %4863 = vmatmul.mubr.f32.gmra.mxu0 %v4721
    %v4864 = vpop.f32.mrf.mxu0
    %v4865 = vadd.f32 %v4786, %v4864
    %v4866 = vpop.f32.mrf.mxu0
    %4867 = vmatprep.mubr.f32.mxu0 %v4724
    %4868 = vmatmul.mubr.f32.gmra.mxu0 %v4723
    %v4869 = vpop.f32.mrf.mxu0
    %v4870 = vadd.f32 %v4786, %v4869
    %v4871 = vpop.f32.mrf.mxu0
    %4872 = vmatprep.mubr.f32.mxu0 %v4726
    %4873 = vmatmul.mubr.f32.gmra.mxu0 %v4725
    %v4874 = vpop.f32.mrf.mxu0
    %v4875 = vadd.f32 %v4786, %v4874
    %v4876 = vpop.f32.mrf.mxu0
    %4877 = vmatprep.mubr.f32.mxu0 %v4728
    %4878 = vmatmul.mubr.f32.gmra.mxu0 %v4727
    %v4879 = vpop.f32.mrf.mxu0
    %v4880 = vadd.f32 %v4786, %v4879
    %v4881 = vpop.f32.mrf.mxu0
    %4882 = vmatprep.mubr.f32.mxu0 %v4730
    %4883 = vmatmul.mubr.f32.gmra.mxu0 %v4729
    %v4884 = vpop.f32.mrf.mxu0
    %v4885 = vadd.f32 %v4786, %v4884
    %v4886 = vpop.f32.mrf.mxu0
    %4887 = vmatprep.mubr.f32.mxu0 %v4732
    %4888 = vmatmul.mubr.f32.gmra.mxu0 %v4731
    %v4889 = vpop.f32.mrf.mxu0
    %v4890 = vadd.f32 %v4786, %v4889
    %v4891 = vpop.f32.mrf.mxu0
    %4892 = vmatprep.mubr.f32.mxu0 %v4734
    %4893 = vmatmul.mubr.f32.gmra.mxu0 %v4733
    %v4894 = vpop.f32.mrf.mxu0
    %v4895 = vadd.f32 %v4786, %v4894
    %v4896 = vpop.f32.mrf.mxu0
    %4897 = vmatprep.mubr.f32.mxu0 %v4736
    %4898 = vmatmul.mubr.f32.gmra.mxu0 %v4735
    %v4899 = vpop.f32.mrf.mxu0
    %v4900 = vadd.f32 %v4786, %v4899
    %v4901 = vpop.f32.mrf.mxu0
    %4902 = vmatprep.mubr.f32.mxu0 %v4738
    %4903 = vmatmul.mubr.f32.gmra.mxu0 %v4737
    %v4904 = vpop.f32.mrf.mxu0
    %v4905 = vadd.f32 %v4786, %v4904
    %v4906 = vpop.f32.mrf.mxu0
    %4907 = vmatprep.mubr.f32.mxu0 %v4740
    %4908 = vmatmul.mubr.f32.gmra.mxu0 %v4739
    %v4909 = vpop.f32.mrf.mxu0
    %v4910 = vadd.f32 %v4786, %v4909
    %v4911 = vpop.f32.mrf.mxu0
    %4912 = vmatprep.mubr.f32.mxu0 %v4742
    %4913 = vmatmul.mubr.f32.gmra.mxu0 %v4741
    %v4914 = vpop.f32.mrf.mxu0
    %v4915 = vadd.f32 %v4786, %v4914
    %v4916 = vpop.f32.mrf.mxu0
    %4917 = vmatprep.mubr.f32.mxu0 %v4744
    %4918 = vmatmul.mubr.f32.gmra.mxu0 %v4743
    %v4919 = vpop.f32.mrf.mxu0
    %v4920 = vadd.f32 %v4786, %v4919
    %v4921 = vpop.f32.mrf.mxu0
    %4922 = vmatprep.mubr.f32.mxu0 %v4746
    %4923 = vmatmul.mubr.f32.gmra.mxu0 %v4745
    %v4924 = vpop.f32.mrf.mxu0
    %v4925 = vadd.f32 %v4786, %v4924
    %v4926 = vpop.f32.mrf.mxu0
    %4927 = vmatprep.mubr.f32.mxu0 %v4748
    %4928 = vmatmul.mubr.f32.gmra.mxu0 %v4747
    %v4929 = vpop.f32.mrf.mxu0
    %v4930 = vadd.f32 %v4786, %v4929
    %v4931 = vpop.f32.mrf.mxu0
    %4932 = vdwg.mxu0
    %vm4933 = vcmp.gt.f32.partialorder %v4855, 0.0
    %vm4934 = vcmp.gt.f32.partialorder %v4860, 0.0
    %vm4935 = vcmp.gt.f32.partialorder %v4865, 0.0
    %vm4936 = vcmp.gt.f32.partialorder %v4870, 0.0
    %vm4937 = vcmp.gt.f32.partialorder %v4875, 0.0
    %vm4938 = vcmp.gt.f32.partialorder %v4880, 0.0
    %vm4939 = vcmp.gt.f32.partialorder %v4885, 0.0
    %vm4940 = vcmp.gt.f32.partialorder %v4890, 0.0
    %vm4941 = vcmp.gt.f32.partialorder %v4895, 0.0
    %vm4942 = vcmp.gt.f32.partialorder %v4900, 0.0
    %vm4943 = vcmp.gt.f32.partialorder %v4905, 0.0
    %vm4944 = vcmp.gt.f32.partialorder %v4910, 0.0
    %vm4945 = vcmp.gt.f32.partialorder %v4915, 0.0
    %vm4946 = vcmp.gt.f32.partialorder %v4920, 0.0
    %vm4947 = vcmp.gt.f32.partialorder %v4925, 0.0
    %vm4948 = vcmp.gt.f32.partialorder %v4930, 0.0
    %v4949 = vmul.f32 %v4855, 0.01
    %v4950 = vmul.f32 %v4860, 0.01
    %v4951 = vmul.f32 %v4865, 0.01
    %v4952 = vmul.f32 %v4870, 0.01
    %v4953 = vmul.f32 %v4875, 0.01
    %v4954 = vmul.f32 %v4880, 0.01
    %v4955 = vmul.f32 %v4885, 0.01
    %v4956 = vmul.f32 %v4890, 0.01
    %v4957 = vmul.f32 %v4895, 0.01
    %v4958 = vmul.f32 %v4900, 0.01
    %v4959 = vmul.f32 %v4905, 0.01
    %v4960 = vmul.f32 %v4910, 0.01
    %v4961 = vmul.f32 %v4915, 0.01
    %v4962 = vmul.f32 %v4920, 0.01
    %v4963 = vmul.f32 %v4925, 0.01
    %v4964 = vmul.f32 %v4930, 0.01
    %v4965 = vsel %vm4933, %v4855, %v4949
    %v4966 = vsel %vm4934, %v4860, %v4950
    %v4967 = vsel %vm4935, %v4865, %v4951
    %v4968 = vsel %vm4936, %v4870, %v4952
    %v4969 = vsel %vm4937, %v4875, %v4953
    %v4970 = vsel %vm4938, %v4880, %v4954
    %v4971 = vsel %vm4939, %v4885, %v4955
    %v4972 = vsel %vm4940, %v4890, %v4956
    %v4973 = vsel %vm4941, %v4895, %v4957
    %v4974 = vsel %vm4942, %v4900, %v4958
    %v4975 = vsel %vm4943, %v4905, %v4959
    %v4976 = vsel %vm4944, %v4910, %v4960
    %v4977 = vsel %vm4945, %v4915, %v4961
    %v4978 = vsel %vm4946, %v4920, %v4962
    %v4979 = vsel %vm4947, %v4925, %v4963
    %v4980 = vsel %vm4948, %v4930, %v4964
    %v4981 = vld [vmem:[#allocation13] sm:$0x1]
    %v4983 = vlaneseq
    %v4984 = vshrl.u32 %v4983, 7
    %v4985 = vsub.s32 0, %v4984
    %v4986 = vrot.slane %v4981, %v4985
    %v4988 = vmul.f32 %v4965, %v4986
    %v4989 = vmul.f32 %v4966, %v4986
    %v4990 = vmul.f32 %v4967, %v4986
    %v4991 = vmul.f32 %v4968, %v4986
    %v4992 = vmul.f32 %v4969, %v4986
    %v4993 = vmul.f32 %v4970, %v4986
    %v4994 = vmul.f32 %v4971, %v4986
    %v4995 = vmul.f32 %v4972, %v4986
    %v4996 = vmul.f32 %v4973, %v4986
    %v4997 = vmul.f32 %v4974, %v4986
    %v4998 = vmul.f32 %v4975, %v4986
    %v4999 = vmul.f32 %v4976, %v4986
    %v5000 = vmul.f32 %v4977, %v4986
    %v5001 = vmul.f32 %v4978, %v4986
    %v5002 = vmul.f32 %v4979, %v4986
    %v5003 = vmul.f32 %v4980, %v4986
    %5004 = vadd.xlane.f32.xlu0 %v4988
    %v5005 = vpop.xlane.xlu0 %5004
    %5006 = vadd.xlane.f32.xlu0 %v4989
    %v5007 = vpop.xlane.xlu0 %5006
    %5008 = vadd.xlane.f32.xlu0 %v4990
    %v5009 = vpop.xlane.xlu0 %5008
    %5010 = vadd.xlane.f32.xlu0 %v4991
    %v5011 = vpop.xlane.xlu0 %5010
    %5012 = vadd.xlane.f32.xlu0 %v4992
    %v5013 = vpop.xlane.xlu0 %5012
    %5014 = vadd.xlane.f32.xlu0 %v4993
    %v5015 = vpop.xlane.xlu0 %5014
    %5016 = vadd.xlane.f32.xlu0 %v4994
    %v5017 = vpop.xlane.xlu0 %5016
    %5018 = vadd.xlane.f32.xlu0 %v4995
    %v5019 = vpop.xlane.xlu0 %5018
    %5020 = vadd.xlane.f32.xlu0 %v4996
    %v5021 = vpop.xlane.xlu0 %5020
    %5022 = vadd.xlane.f32.xlu0 %v4997
    %v5023 = vpop.xlane.xlu0 %5022
    %5024 = vadd.xlane.f32.xlu0 %v4998
    %v5025 = vpop.xlane.xlu0 %5024
    %5026 = vadd.xlane.f32.xlu0 %v4999
    %v5027 = vpop.xlane.xlu0 %5026
    %5028 = vadd.xlane.f32.xlu0 %v5000
    %v5029 = vpop.xlane.xlu0 %5028
    %5030 = vadd.xlane.f32.xlu0 %v5001
    %v5031 = vpop.xlane.xlu0 %5030
    %5032 = vadd.xlane.f32.xlu0 %v5002
    %v5033 = vpop.xlane.xlu0 %5032
    %5034 = vadd.xlane.f32.xlu0 %v5003
    %v5035 = vpop.xlane.xlu0 %5034
    %v5036 = vld [vmem:[#allocation2] sm:$0x1]
    %v5038 = vlaneseq
    %v5039 = vshrl.u32 %v5038, 7
    %v5040 = vsub.s32 0, %v5039
    %v5041 = vrot.slane %v5036, %v5040
    %v5043 = vadd.f32 %v5005, %v5041
    %v5044 = vadd.f32 %v5007, %v5041
    %v5045 = vadd.f32 %v5009, %v5041
    %v5046 = vadd.f32 %v5011, %v5041
    %v5047 = vadd.f32 %v5013, %v5041
    %v5048 = vadd.f32 %v5015, %v5041
    %v5049 = vadd.f32 %v5017, %v5041
    %v5050 = vadd.f32 %v5019, %v5041
    %v5051 = vadd.f32 %v5021, %v5041
    %v5052 = vadd.f32 %v5023, %v5041
    %v5053 = vadd.f32 %v5025, %v5041
    %v5054 = vadd.f32 %v5027, %v5041
    %v5055 = vadd.f32 %v5029, %v5041
    %v5056 = vadd.f32 %v5031, %v5041
    %v5057 = vadd.f32 %v5033, %v5041
    %v5058 = vadd.f32 %v5035, %v5041
    %v5059 = vsub.f32 0.0, %v5043
    %v5060 = vsub.f32 0.0, %v5044
    %v5061 = vsub.f32 0.0, %v5045
    %v5062 = vsub.f32 0.0, %v5046
    %v5063 = vsub.f32 0.0, %v5047
    %v5064 = vsub.f32 0.0, %v5048
    %v5065 = vsub.f32 0.0, %v5049
    %v5066 = vsub.f32 0.0, %v5050
    %v5067 = vsub.f32 0.0, %v5051
    %v5068 = vsub.f32 0.0, %v5052
    %v5069 = vsub.f32 0.0, %v5053
    %v5070 = vsub.f32 0.0, %v5054
    %v5071 = vsub.f32 0.0, %v5055
    %v5072 = vsub.f32 0.0, %v5056
    %v5073 = vsub.f32 0.0, %v5057
    %v5074 = vsub.f32 0.0, %v5058
    %v5075 = vmul.f32 %v5059, 1.442695
    %v5076 = vpow.pop %v5075
    %v5077 = vmul.f32 %v5060, 1.442695
    %v5078 = vpow.pop %v5077
    %v5079 = vmul.f32 %v5061, 1.442695
    %v5080 = vpow.pop %v5079
    %v5081 = vmul.f32 %v5062, 1.442695
    %v5082 = vpow.pop %v5081
    %v5083 = vmul.f32 %v5063, 1.442695
    %v5084 = vpow.pop %v5083
    %v5085 = vmul.f32 %v5064, 1.442695
    %v5086 = vpow.pop %v5085
    %v5087 = vmul.f32 %v5065, 1.442695
    %v5088 = vpow.pop %v5087
    %v5089 = vmul.f32 %v5066, 1.442695
    %v5090 = vpow.pop %v5089
    %v5091 = vmul.f32 %v5067, 1.442695
    %v5092 = vpow.pop %v5091
    %v5093 = vmul.f32 %v5068, 1.442695
    %v5094 = vpow.pop %v5093
    %v5095 = vmul.f32 %v5069, 1.442695
    %v5096 = vpow.pop %v5095
    %v5097 = vmul.f32 %v5070, 1.442695
    %v5098 = vpow.pop %v5097
    %v5099 = vmul.f32 %v5071, 1.442695
    %v5100 = vpow.pop %v5099
    %v5101 = vmul.f32 %v5072, 1.442695
    %v5102 = vpow.pop %v5101
    %v5103 = vmul.f32 %v5073, 1.442695
    %v5104 = vpow.pop %v5103
    %v5105 = vmul.f32 %v5074, 1.442695
    %v5106 = vpow.pop %v5105
    %v5107 = vadd.f32 %v5076, 1.0
    %v5108 = vadd.f32 %v5078, 1.0
    %v5109 = vadd.f32 %v5080, 1.0
    %v5110 = vadd.f32 %v5082, 1.0
    %v5111 = vadd.f32 %v5084, 1.0
    %v5112 = vadd.f32 %v5086, 1.0
    %v5113 = vadd.f32 %v5088, 1.0
    %v5114 = vadd.f32 %v5090, 1.0
    %v5115 = vadd.f32 %v5092, 1.0
    %v5116 = vadd.f32 %v5094, 1.0
    %v5117 = vadd.f32 %v5096, 1.0
    %v5118 = vadd.f32 %v5098, 1.0
    %v5119 = vadd.f32 %v5100, 1.0
    %v5120 = vadd.f32 %v5102, 1.0
    %v5121 = vadd.f32 %v5104, 1.0
    %v5122 = vadd.f32 %v5106, 1.0
    %v5123 = vrcp.pop %v5107
    %v5124 = vmul.f32 1.0, %v5123
    %v5125 = vrcp.pop %v5108
    %v5126 = vmul.f32 1.0, %v5125
    %v5127 = vrcp.pop %v5109
    %v5128 = vmul.f32 1.0, %v5127
    %v5129 = vrcp.pop %v5110
    %v5130 = vmul.f32 1.0, %v5129
    %v5131 = vrcp.pop %v5111
    %v5132 = vmul.f32 1.0, %v5131
    %v5133 = vrcp.pop %v5112
    %v5134 = vmul.f32 1.0, %v5133
    %v5135 = vrcp.pop %v5113
    %v5136 = vmul.f32 1.0, %v5135
    %v5137 = vrcp.pop %v5114
    %v5138 = vmul.f32 1.0, %v5137
    %v5139 = vrcp.pop %v5115
    %v5140 = vmul.f32 1.0, %v5139
    %v5141 = vrcp.pop %v5116
    %v5142 = vmul.f32 1.0, %v5141
    %v5143 = vrcp.pop %v5117
    %v5144 = vmul.f32 1.0, %v5143
    %v5145 = vrcp.pop %v5118
    %v5146 = vmul.f32 1.0, %v5145
    %v5147 = vrcp.pop %v5119
    %v5148 = vmul.f32 1.0, %v5147
    %v5149 = vrcp.pop %v5120
    %v5150 = vmul.f32 1.0, %v5149
    %v5151 = vrcp.pop %v5121
    %v5152 = vmul.f32 1.0, %v5151
    %v5153 = vrcp.pop %v5122
    %v5154 = vmul.f32 1.0, %v5153
    %vm5155 = vcmask 7168
    %5156 = vst.msk [vmem:[%s9] sm:$0xff] %vm5155, %v5124
    %5157 = vst.msk [vmem:[%s9 + $0x8] sm:$0xff] %vm5155, %v5126
    %5158 = vst.msk [vmem:[%s9 + $0x10] sm:$0xff] %vm5155, %v5128
    %5159 = vst.msk [vmem:[%s9 + $0x18] sm:$0xff] %vm5155, %v5130
    %5160 = vst.msk [vmem:[%s9 + $0x20] sm:$0xff] %vm5155, %v5132
    %5161 = vst.msk [vmem:[%s9 + $0x28] sm:$0xff] %vm5155, %v5134
    %5162 = vst.msk [vmem:[%s9 + $0x30] sm:$0xff] %vm5155, %v5136
    %5163 = vst.msk [vmem:[%s9 + $0x38] sm:$0xff] %vm5155, %v5138
    %5164 = vst.msk [vmem:[%s9 + $0x40] sm:$0xff] %vm5155, %v5140
    %5165 = vst.msk [vmem:[%s9 + $0x48] sm:$0xff] %vm5155, %v5142
    %5166 = vst.msk [vmem:[%s9 + $0x50] sm:$0xff] %vm5155, %v5144
    %5167 = vst.msk [vmem:[%s9 + $0x58] sm:$0xff] %vm5155, %v5146
    %5168 = vst.msk [vmem:[%s9 + $0x60] sm:$0xff] %vm5155, %v5148
    %5169 = vst.msk [vmem:[%s9 + $0x68] sm:$0xff] %vm5155, %v5150
    %5170 = vst.msk [vmem:[%s9 + $0x70] sm:$0xff] %vm5155, %v5152
    %5171 = vst.msk [vmem:[%s9 + $0x78] sm:$0xff] %vm5155, %v5154
    // Predicated region
    $region66: #{global_discriminator.1} parent=1 // pred_check
      _
    $region67: #{global_discriminator.1} parent=1 // pred_check_branch
      %5173 = sbr.rel (0) target = $region69
    $region68: #{global_discriminator.1} parent=1 // pred_region
      _
    $region69: #{global_discriminator.1} parent=1 // pred_fallthru
      _
    // Predicated region
    $region70: #{global_discriminator.1} parent=1 // pred_check
      _
    $region71: #{global_discriminator.1} parent=1 // pred_check_branch
      %5175 = sbr.rel (0) target = $region73
    $region72: #{global_discriminator.1} parent=1 // pred_region
      _
    $region73: #{global_discriminator.1} parent=1 // pred_fallthru
      _
    %5176 = vsyncpa [#allocation4], 1
    %5177 = vsyncpa [#allocation6], 1
    %5178 = vsyncpa [#allocation9], 1
    %5179 = vsyncpa [#allocation12], 1

</llo_original>
